<compile_context>
chip_gen: v7x
topology: tpu7x:2x2x1
jax: 0.10.0
libtpu: 0.0.40
codegen_flags: <defaults>
</compile_context>

<pallas_src>
import functools
import math

import jax
import jax.numpy as jnp
from jax.experimental import pallas as pl
from jax.experimental.pallas import tpu as pltpu


# ---------------------------------------------------------------------------
# helpers
# ---------------------------------------------------------------------------
def _ln(x, g, b, eps=1e-5):
    mu = jnp.mean(x, axis=-1, keepdims=True)
    var = jnp.mean((x - mu) ** 2, axis=-1, keepdims=True)
    return (x - mu) * jax.lax.rsqrt(var + eps) * g + b


# ---------------------------------------------------------------------------
# single fused kernel: pos-encode(cat) + pre_encoder + nlayers encoder layers
# ---------------------------------------------------------------------------
def _attn_encoder_kernel(nhead,
                         src_ref, pos_ref, w_src_ref, w_pos_ref, b_pre_ref,
                         wqkv_ref, bqkv_ref, wo_ref, bo_ref,
                         ln1g_ref, ln1b_ref,
                         w1_ref, b1_ref, w2_ref, b2_ref,
                         ln2g_ref, ln2b_ref,
                         o_ref):
    B, S, ninp = src_ref.shape
    D = w_src_ref.shape[1]
    nlayers = wqkv_ref.shape[0]
    hd = D // nhead
    f32 = jnp.float32

    # --- PositionalEncoding('cat') fused with pre_encoder Linear -----------
    #   concat([src, pos], -1) @ W + b == src @ W[:ninp] + pos @ W[ninp:] + b
    src2 = src_ref[...].reshape(B * S, ninp)
    pos_proj = jnp.dot(pos_ref[...], w_pos_ref[...], preferred_element_type=f32)
    x = jnp.dot(src2, w_src_ref[...], preferred_element_type=f32)
    x = x + jnp.concatenate([pos_proj] * B, axis=0) + b_pre_ref[...]

    # --- nlayers x post-norm TransformerEncoderLayer ------------------------
    for l in range(nlayers):                       # static, nlayers is small
        # fused QKV projection (1/sqrt(hd) already folded into Wq/bq)
        qkv = jnp.dot(x, wqkv_ref[l], preferred_element_type=f32) + bqkv_ref[l]

        heads = []
        for h in range(nhead):                     # static loop over heads
            qh = qkv[:, h * hd:(h + 1) * hd].reshape(B, S, hd)
            kh = qkv[:, D + h * hd:D + (h + 1) * hd].reshape(B, S, hd)
            vh = qkv[:, 2 * D + h * hd:2 * D + (h + 1) * hd].reshape(B, S, hd)
            # batched over B, contract on hd -> no explicit k transpose
            s = jnp.einsum('bqd,bkd->bqk', qh, kh, preferred_element_type=f32)
            s = s - jnp.max(s, axis=-1, keepdims=True)
            p = jnp.exp(s)
            p = p * pl.reciprocal(jnp.sum(p, axis=-1, keepdims=True), approx=True)
            oh = jnp.einsum('bqk,bkd->bqd', p, vh, preferred_element_type=f32)
            heads.append(oh.reshape(B * S, hd))
        attn = jnp.concatenate(heads, axis=-1)     # (B*S, D)

        attn = jnp.dot(attn, wo_ref[l], preferred_element_type=f32) + bo_ref[l]
        x = _ln(x + attn, ln1g_ref[l], ln1b_ref[l])

        h1 = jnp.maximum(
            jnp.dot(x, w1_ref[l], preferred_element_type=f32) + b1_ref[l], 0.0)
        h2 = jnp.dot(h1, w2_ref[l], preferred_element_type=f32) + b2_ref[l]
        x = _ln(x + h2, ln2g_ref[l], ln2b_ref[l])

    o_ref[...] = x                                 # (B*S, D)


# ---------------------------------------------------------------------------
# parameter prep (one-time repack of PyTorch-layout params -> kernel layout)
# ---------------------------------------------------------------------------
def prepare_params(params, ninp, nhead):
    D = params["pre_w"].shape[1]
    hd = D // nhead
    scale = 1.0 / math.sqrt(hd)

    kp = {
        "pos_table": params["pos_table"],
        "pre_w_src": params["pre_w"][:ninp],
        "pre_w_pos": params["pre_w"][ninp:],
        "pre_b": params["pre_b"],
    }

    def stack(fn):
        return jnp.stack([fn(lp) for lp in params["layers"]], axis=0)

    # fold attention scale into Wq/bq, fuse QKV weights/biases
    kp["wqkv"] = stack(lambda lp: jnp.concatenate(
        [lp["wq"] * scale, lp["wk"], lp["wv"]], axis=1))
    kp["bqkv"] = stack(lambda lp: jnp.concatenate(
        [lp["bq"] * scale, lp["bk"], lp["bv"]], axis=1))
    for name in ("wo", "bo", "ln1g", "ln1b",
                 "w1", "b1", "w2", "b2", "ln2g", "ln2b"):
        kp[name] = stack(lambda lp, n=name: lp[n])
    return kp


# ---------------------------------------------------------------------------
# wrapper: one pallas_call for the whole forward
# ---------------------------------------------------------------------------
def attn_encoder_forward(src, kp, nhead):
    B, S, _ = src.shape
    D = kp["pre_w_src"].shape[1]
    pos = kp["pos_table"][:S]

    vmem = pl.BlockSpec(memory_space=pltpu.MemorySpace.VMEM)
    args = (src, pos,
            kp["pre_w_src"], kp["pre_w_pos"], kp["pre_b"],
            kp["wqkv"], kp["bqkv"], kp["wo"], kp["bo"],
            kp["ln1g"], kp["ln1b"],
            kp["w1"], kp["b1"], kp["w2"], kp["b2"],
            kp["ln2g"], kp["ln2b"])

    out = pl.pallas_call(
        functools.partial(_attn_encoder_kernel, nhead),
        out_shape=jax.ShapeDtypeStruct((B * S, D), jnp.float32),
        in_specs=[vmem] * len(args),
        out_specs=vmem,
    )(*args)
    return out.reshape(B, S, D)


# ---------------------------------------------------------------------------
# pure-JAX reference (same math as the PyTorch module, no Pallas)
# ---------------------------------------------------------------------------
def _reference(src, params, nhead):
    B, S, _ = src.shape
    pos = jnp.broadcast_to(params["pos_table"][:S][None],
                           (B, S, params["pos_table"].shape[-1]))
    x = jnp.concatenate([src, pos], axis=-1) @ params["pre_w"] + params["pre_b"][0]
    for lp in params["layers"]:
        D = x.shape[-1]
        hd = D // nhead
        q = (x @ lp["wq"] + lp["bq"][0]).reshape(B, S, nhead, hd).transpose(0, 2, 1, 3)
        k = (x @ lp["wk"] + lp["bk"][0]).reshape(B, S, nhead, hd).transpose(0, 2, 1, 3)
        v = (x @ lp["wv"] + lp["bv"][0]).reshape(B, S, nhead, hd).transpose(0, 2, 1, 3)
        s = jnp.einsum("bhqd,bhkd->bhqk", q, k) / math.sqrt(hd)
        p = jax.nn.softmax(s, axis=-1)
        a = jnp.einsum("bhqk,bhkd->bhqd", p, v).transpose(0, 2, 1, 3).reshape(B, S, D)
        a = a @ lp["wo"] + lp["bo"][0]
        x = _ln(x + a, lp["ln1g"][0], lp["ln1b"][0])
        h = jnp.maximum(x @ lp["w1"] + lp["b1"][0], 0.0) @ lp["w2"] + lp["b2"][0]
        x = _ln(x + h, lp["ln2g"][0], lp["ln2b"][0])
    return x


# ---------------------------------------------------------------------------
if __name__ == "__main__":
    # small shapes consistent with the module's forward
    B, S = 2, 8
    ninp, pos_nhid, nhead, nhid, nlayers, kvdim = 32, 32, 4, 32, 2, 64
    max_len = 512
    enc_inp = ninp + pos_nhid                       # pos_comb == 'cat'

    key = jax.random.PRNGKey(0)

    def nxt():
        global key
        key, sub = jax.random.split(key)
        return sub

    f32 = jnp.float32
    params = {
        # PositionalEncoding (absolute): position_table ~ N(0, 1)
        "pos_table": jax.random.normal(nxt(), (max_len, pos_nhid), f32),
        # pre_encoder: Linear(enc_inp, kvdim), uniform(-0.1, 0.1)
        "pre_w": jax.random.uniform(nxt(), (enc_inp, kvdim), f32, -0.1, 0.1),
        "pre_b": jax.random.uniform(nxt(), (1, kvdim), f32, -0.1, 0.1),
        "layers": [],
    }
    for _ in range(nlayers):
        lp = {
            "wq": jax.random.normal(nxt(), (kvdim, kvdim), f32) * 0.05,
            "wk": jax.random.normal(nxt(), (kvdim, kvdim), f32) * 0.05,
            "wv": jax.random.normal(nxt(), (kvdim, kvdim), f32) * 0.05,
            "bq": jnp.zeros((1, kvdim), f32),
            "bk": jnp.zeros((1, kvdim), f32),
            "bv": jnp.zeros((1, kvdim), f32),
            "wo": jax.random.normal(nxt(), (kvdim, kvdim), f32) * 0.05,
            "bo": jnp.zeros((1, kvdim), f32),
            "ln1g": jnp.ones((1, kvdim), f32),
            "ln1b": jnp.zeros((1, kvdim), f32),
            "w1": jax.random.normal(nxt(), (kvdim, nhid), f32) * 0.05,
            "b1": jnp.zeros((1, nhid), f32),
            "w2": jax.random.normal(nxt(), (nhid, kvdim), f32) * 0.05,
            "b2": jnp.zeros((1, kvdim), f32),
            "ln2g": jnp.ones((1, kvdim), f32),
            "ln2b": jnp.zeros((1, kvdim), f32),
        }
        params["layers"].append(lp)

    src = jax.random.normal(nxt(), (B, S, ninp), f32)

    kparams = prepare_params(params, ninp, nhead)   # one-time weight repack
    out = attn_encoder_forward(src, kparams, nhead)
    out = jax.block_until_ready(out)

    ref = _reference(src, params, nhead)
    assert out.shape == (B, S, kvdim)
    assert bool(jnp.all(jnp.isfinite(out)))
    # tolerance loosened vs the pure-f32 check because the kernel uses the
    # EUP approximate reciprocal for the softmax normalization.
    assert bool(jnp.allclose(out, ref, atol=2e-2, rtol=2e-2)), "mismatch vs reference"

    print("KERNEL_OK")
</pallas_src>

<mosaic_0001>
module attributes {stable_mosaic.version = 11 : i64} {
  func.func @_attn_encoder_kernel(%arg0: memref<2x8x32xf32, #tpu.memory_space<vmem>>, %arg1: memref<8x32xf32, #tpu.memory_space<vmem>>, %arg2: memref<32x64xf32, #tpu.memory_space<vmem>>, %arg3: memref<32x64xf32, #tpu.memory_space<vmem>>, %arg4: memref<1x64xf32, #tpu.memory_space<vmem>>, %arg5: memref<2x64x192xf32, #tpu.memory_space<vmem>>, %arg6: memref<2x1x192xf32, #tpu.memory_space<vmem>>, %arg7: memref<2x64x64xf32, #tpu.memory_space<vmem>>, %arg8: memref<2x1x64xf32, #tpu.memory_space<vmem>>, %arg9: memref<2x1x64xf32, #tpu.memory_space<vmem>>, %arg10: memref<2x1x64xf32, #tpu.memory_space<vmem>>, %arg11: memref<2x64x32xf32, #tpu.memory_space<vmem>>, %arg12: memref<2x1x32xf32, #tpu.memory_space<vmem>>, %arg13: memref<2x32x64xf32, #tpu.memory_space<vmem>>, %arg14: memref<2x1x64xf32, #tpu.memory_space<vmem>>, %arg15: memref<2x1x64xf32, #tpu.memory_space<vmem>>, %arg16: memref<2x1x64xf32, #tpu.memory_space<vmem>>, %arg17: memref<16x64xf32, #tpu.memory_space<vmem>>) attributes {dimension_semantics = [], scalar_prefetch = 0 : i64, scratch_operands = 0 : i64, tpu.core_type = #tpu.core_type<tc>} {
    %c0 = arith.constant 0 : index
    %c0_0 = arith.constant 0 : index
    %c0_1 = arith.constant 0 : index
    %0 = vector.load %arg0[%c0, %c0_0, %c0_1] : memref<2x8x32xf32, #tpu.memory_space<vmem>>, vector<2x8x32xf32>
    %1 = vector.shape_cast %0 : vector<2x8x32xf32> to vector<16x32xf32>
    %c0_2 = arith.constant 0 : index
    %c0_3 = arith.constant 0 : index
    %2 = vector.load %arg1[%c0_2, %c0_3] : memref<8x32xf32, #tpu.memory_space<vmem>>, vector<8x32xf32>
    %c0_4 = arith.constant 0 : index
    %c0_5 = arith.constant 0 : index
    %3 = vector.load %arg3[%c0_4, %c0_5] : memref<32x64xf32, #tpu.memory_space<vmem>>, vector<32x64xf32>
    %cst = arith.constant dense<0.000000e+00> : vector<8x64xf32>
    %4 = tpu.matmul %2, %3, %cst {dimension_numbers = #tpu.dot_dimension_numbers<[1], [0], [0], [1], [0, 0, 1, 1], [], []>} : vector<8x32xf32>, vector<32x64xf32>, vector<8x64xf32> -> vector<8x64xf32>
    %c0_6 = arith.constant 0 : index
    %c0_7 = arith.constant 0 : index
    %5 = vector.load %arg2[%c0_6, %c0_7] : memref<32x64xf32, #tpu.memory_space<vmem>>, vector<32x64xf32>
    %cst_8 = arith.constant dense<0.000000e+00> : vector<16x64xf32>
    %6 = tpu.matmul %1, %5, %cst_8 {dimension_numbers = #tpu.dot_dimension_numbers<[1], [0], [0], [1], [0, 0, 1, 1], [], []>} : vector<16x32xf32>, vector<32x64xf32>, vector<16x64xf32> -> vector<16x64xf32>
    %7 = tpu.concatenate %4, %4 in 0 : vector<8x64xf32>, vector<8x64xf32> -> vector<16x64xf32>
    %8 = arith.addf %6, %7 : vector<16x64xf32>
    %c0_9 = arith.constant 0 : index
    %c0_10 = arith.constant 0 : index
    %9 = vector.load %arg4[%c0_9, %c0_10] : memref<1x64xf32, #tpu.memory_space<vmem>>, vector<1x64xf32>
    %10 = vector.broadcast %9 : vector<1x64xf32> to vector<16x64xf32>
    %11 = arith.addf %8, %10 : vector<16x64xf32>
    %c0_11 = arith.constant 0 : index
    %c0_12 = arith.constant 0 : index
    %c0_13 = arith.constant 0 : index
    %12 = vector.load %arg5[%c0_11, %c0_12, %c0_13] : memref<2x64x192xf32, #tpu.memory_space<vmem>>, vector<1x64x192xf32>
    %13 = vector.shape_cast %12 : vector<1x64x192xf32> to vector<64x192xf32>
    %cst_14 = arith.constant dense<0.000000e+00> : vector<16x192xf32>
    %14 = tpu.matmul %11, %13, %cst_14 {dimension_numbers = #tpu.dot_dimension_numbers<[1], [0], [0], [1], [0, 0, 1, 1], [], []>} : vector<16x64xf32>, vector<64x192xf32>, vector<16x192xf32> -> vector<16x192xf32>
    %c0_15 = arith.constant 0 : index
    %c0_16 = arith.constant 0 : index
    %c0_17 = arith.constant 0 : index
    %15 = vector.load %arg6[%c0_15, %c0_16, %c0_17] : memref<2x1x192xf32, #tpu.memory_space<vmem>>, vector<1x1x192xf32>
    %16 = vector.shape_cast %15 : vector<1x1x192xf32> to vector<1x192xf32>
    %17 = vector.broadcast %16 : vector<1x192xf32> to vector<16x192xf32>
    %18 = arith.addf %14, %17 : vector<16x192xf32>
    %19 = vector.extract_strided_slice %18 {offsets = [0, 0], sizes = [16, 16], strides = [1, 1]} : vector<16x192xf32> to vector<16x16xf32>
    %20 = vector.shape_cast %19 : vector<16x16xf32> to vector<2x8x16xf32>
    %21 = vector.extract_strided_slice %18 {offsets = [0, 64], sizes = [16, 16], strides = [1, 1]} : vector<16x192xf32> to vector<16x16xf32>
    %22 = vector.shape_cast %21 : vector<16x16xf32> to vector<2x8x16xf32>
    %23 = vector.extract_strided_slice %18 {offsets = [0, 128], sizes = [16, 16], strides = [1, 1]} : vector<16x192xf32> to vector<16x16xf32>
    %24 = vector.shape_cast %23 : vector<16x16xf32> to vector<2x8x16xf32>
    "tpu.trace_start"() <{level = 10 : i32, message = "bqd,bkd->bqk"}> : () -> ()
    %cst_18 = arith.constant dense<0.000000e+00> : vector<2x8x8xf32>
    %25 = tpu.matmul %20, %22, %cst_18 {dimension_numbers = #tpu.dot_dimension_numbers<[2], [2], [1], [1], [0, 0, 0, 1, 1, 1], [0], [0]>} : vector<2x8x16xf32>, vector<2x8x16xf32>, vector<2x8x8xf32> -> vector<2x8x8xf32>
    "tpu.trace_stop"() : () -> ()
    %cst_19 = arith.constant dense<0xFF800000> : vector<2x8xf32>
    %26 = vector.multi_reduction <maximumf>, %25, %cst_19 [2] : vector<2x8x8xf32> to vector<2x8xf32>
    %27 = vector.shape_cast %26 : vector<2x8xf32> to vector<2x8x1xf32>
    %28 = vector.broadcast %27 : vector<2x8x1xf32> to vector<2x8x8xf32>
    %29 = arith.subf %25, %28 : vector<2x8x8xf32>
    %30 = math.exp %29 : vector<2x8x8xf32>
    %cst_20 = arith.constant dense<0.000000e+00> : vector<2x8xf32>
    %31 = vector.multi_reduction <add>, %30, %cst_20 [2] : vector<2x8x8xf32> to vector<2x8xf32>
    %32 = vector.shape_cast %31 : vector<2x8xf32> to vector<2x8x1xf32>
    %33 = tpu.reciprocal %32 {approx = true} : vector<2x8x1xf32> -> vector<2x8x1xf32>
    %34 = vector.broadcast %33 : vector<2x8x1xf32> to vector<2x8x8xf32>
    %35 = arith.mulf %30, %34 : vector<2x8x8xf32>
    "tpu.trace_start"() <{level = 10 : i32, message = "bqk,bkd->bqd"}> : () -> ()
    %cst_21 = arith.constant dense<0.000000e+00> : vector<2x8x16xf32>
    %36 = tpu.matmul %35, %24, %cst_21 {dimension_numbers = #tpu.dot_dimension_numbers<[2], [1], [1], [2], [0, 0, 0, 1, 1, 2], [0], [0]>} : vector<2x8x8xf32>, vector<2x8x16xf32>, vector<2x8x16xf32> -> vector<2x8x16xf32>
    "tpu.trace_stop"() : () -> ()
    %37 = vector.shape_cast %36 : vector<2x8x16xf32> to vector<16x16xf32>
    %38 = vector.extract_strided_slice %18 {offsets = [0, 16], sizes = [16, 16], strides = [1, 1]} : vector<16x192xf32> to vector<16x16xf32>
    %39 = vector.shape_cast %38 : vector<16x16xf32> to vector<2x8x16xf32>
    %40 = vector.extract_strided_slice %18 {offsets = [0, 80], sizes = [16, 16], strides = [1, 1]} : vector<16x192xf32> to vector<16x16xf32>
    %41 = vector.shape_cast %40 : vector<16x16xf32> to vector<2x8x16xf32>
    %42 = vector.extract_strided_slice %18 {offsets = [0, 144], sizes = [16, 16], strides = [1, 1]} : vector<16x192xf32> to vector<16x16xf32>
    %43 = vector.shape_cast %42 : vector<16x16xf32> to vector<2x8x16xf32>
    "tpu.trace_start"() <{level = 10 : i32, message = "bqd,bkd->bqk"}> : () -> ()
    %cst_22 = arith.constant dense<0.000000e+00> : vector<2x8x8xf32>
    %44 = tpu.matmul %39, %41, %cst_22 {dimension_numbers = #tpu.dot_dimension_numbers<[2], [2], [1], [1], [0, 0, 0, 1, 1, 1], [0], [0]>} : vector<2x8x16xf32>, vector<2x8x16xf32>, vector<2x8x8xf32> -> vector<2x8x8xf32>
    "tpu.trace_stop"() : () -> ()
    %cst_23 = arith.constant dense<0xFF800000> : vector<2x8xf32>
    %45 = vector.multi_reduction <maximumf>, %44, %cst_23 [2] : vector<2x8x8xf32> to vector<2x8xf32>
    %46 = vector.shape_cast %45 : vector<2x8xf32> to vector<2x8x1xf32>
    %47 = vector.broadcast %46 : vector<2x8x1xf32> to vector<2x8x8xf32>
    %48 = arith.subf %44, %47 : vector<2x8x8xf32>
    %49 = math.exp %48 : vector<2x8x8xf32>
    %cst_24 = arith.constant dense<0.000000e+00> : vector<2x8xf32>
    %50 = vector.multi_reduction <add>, %49, %cst_24 [2] : vector<2x8x8xf32> to vector<2x8xf32>
    %51 = vector.shape_cast %50 : vector<2x8xf32> to vector<2x8x1xf32>
    %52 = tpu.reciprocal %51 {approx = true} : vector<2x8x1xf32> -> vector<2x8x1xf32>
    %53 = vector.broadcast %52 : vector<2x8x1xf32> to vector<2x8x8xf32>
    %54 = arith.mulf %49, %53 : vector<2x8x8xf32>
    "tpu.trace_start"() <{level = 10 : i32, message = "bqk,bkd->bqd"}> : () -> ()
    %cst_25 = arith.constant dense<0.000000e+00> : vector<2x8x16xf32>
    %55 = tpu.matmul %54, %43, %cst_25 {dimension_numbers = #tpu.dot_dimension_numbers<[2], [1], [1], [2], [0, 0, 0, 1, 1, 2], [0], [0]>} : vector<2x8x8xf32>, vector<2x8x16xf32>, vector<2x8x16xf32> -> vector<2x8x16xf32>
    "tpu.trace_stop"() : () -> ()
    %56 = vector.shape_cast %55 : vector<2x8x16xf32> to vector<16x16xf32>
    %57 = vector.extract_strided_slice %18 {offsets = [0, 32], sizes = [16, 16], strides = [1, 1]} : vector<16x192xf32> to vector<16x16xf32>
    %58 = vector.shape_cast %57 : vector<16x16xf32> to vector<2x8x16xf32>
    %59 = vector.extract_strided_slice %18 {offsets = [0, 96], sizes = [16, 16], strides = [1, 1]} : vector<16x192xf32> to vector<16x16xf32>
    %60 = vector.shape_cast %59 : vector<16x16xf32> to vector<2x8x16xf32>
    %61 = vector.extract_strided_slice %18 {offsets = [0, 160], sizes = [16, 16], strides = [1, 1]} : vector<16x192xf32> to vector<16x16xf32>
    %62 = vector.shape_cast %61 : vector<16x16xf32> to vector<2x8x16xf32>
    "tpu.trace_start"() <{level = 10 : i32, message = "bqd,bkd->bqk"}> : () -> ()
    %cst_26 = arith.constant dense<0.000000e+00> : vector<2x8x8xf32>
    %63 = tpu.matmul %58, %60, %cst_26 {dimension_numbers = #tpu.dot_dimension_numbers<[2], [2], [1], [1], [0, 0, 0, 1, 1, 1], [0], [0]>} : vector<2x8x16xf32>, vector<2x8x16xf32>, vector<2x8x8xf32> -> vector<2x8x8xf32>
    "tpu.trace_stop"() : () -> ()
    %cst_27 = arith.constant dense<0xFF800000> : vector<2x8xf32>
    %64 = vector.multi_reduction <maximumf>, %63, %cst_27 [2] : vector<2x8x8xf32> to vector<2x8xf32>
    %65 = vector.shape_cast %64 : vector<2x8xf32> to vector<2x8x1xf32>
    %66 = vector.broadcast %65 : vector<2x8x1xf32> to vector<2x8x8xf32>
    %67 = arith.subf %63, %66 : vector<2x8x8xf32>
    %68 = math.exp %67 : vector<2x8x8xf32>
    %cst_28 = arith.constant dense<0.000000e+00> : vector<2x8xf32>
    %69 = vector.multi_reduction <add>, %68, %cst_28 [2] : vector<2x8x8xf32> to vector<2x8xf32>
    %70 = vector.shape_cast %69 : vector<2x8xf32> to vector<2x8x1xf32>
    %71 = tpu.reciprocal %70 {approx = true} : vector<2x8x1xf32> -> vector<2x8x1xf32>
    %72 = vector.broadcast %71 : vector<2x8x1xf32> to vector<2x8x8xf32>
    %73 = arith.mulf %68, %72 : vector<2x8x8xf32>
    "tpu.trace_start"() <{level = 10 : i32, message = "bqk,bkd->bqd"}> : () -> ()
    %cst_29 = arith.constant dense<0.000000e+00> : vector<2x8x16xf32>
    %74 = tpu.matmul %73, %62, %cst_29 {dimension_numbers = #tpu.dot_dimension_numbers<[2], [1], [1], [2], [0, 0, 0, 1, 1, 2], [0], [0]>} : vector<2x8x8xf32>, vector<2x8x16xf32>, vector<2x8x16xf32> -> vector<2x8x16xf32>
    "tpu.trace_stop"() : () -> ()
    %75 = vector.shape_cast %74 : vector<2x8x16xf32> to vector<16x16xf32>
    %76 = vector.extract_strided_slice %18 {offsets = [0, 48], sizes = [16, 16], strides = [1, 1]} : vector<16x192xf32> to vector<16x16xf32>
    %77 = vector.shape_cast %76 : vector<16x16xf32> to vector<2x8x16xf32>
    %78 = vector.extract_strided_slice %18 {offsets = [0, 112], sizes = [16, 16], strides = [1, 1]} : vector<16x192xf32> to vector<16x16xf32>
    %79 = vector.shape_cast %78 : vector<16x16xf32> to vector<2x8x16xf32>
    %80 = vector.extract_strided_slice %18 {offsets = [0, 176], sizes = [16, 16], strides = [1, 1]} : vector<16x192xf32> to vector<16x16xf32>
    %81 = vector.shape_cast %80 : vector<16x16xf32> to vector<2x8x16xf32>
    "tpu.trace_start"() <{level = 10 : i32, message = "bqd,bkd->bqk"}> : () -> ()
    %cst_30 = arith.constant dense<0.000000e+00> : vector<2x8x8xf32>
    %82 = tpu.matmul %77, %79, %cst_30 {dimension_numbers = #tpu.dot_dimension_numbers<[2], [2], [1], [1], [0, 0, 0, 1, 1, 1], [0], [0]>} : vector<2x8x16xf32>, vector<2x8x16xf32>, vector<2x8x8xf32> -> vector<2x8x8xf32>
    "tpu.trace_stop"() : () -> ()
    %cst_31 = arith.constant dense<0xFF800000> : vector<2x8xf32>
    %83 = vector.multi_reduction <maximumf>, %82, %cst_31 [2] : vector<2x8x8xf32> to vector<2x8xf32>
    %84 = vector.shape_cast %83 : vector<2x8xf32> to vector<2x8x1xf32>
    %85 = vector.broadcast %84 : vector<2x8x1xf32> to vector<2x8x8xf32>
    %86 = arith.subf %82, %85 : vector<2x8x8xf32>
    %87 = math.exp %86 : vector<2x8x8xf32>
    %cst_32 = arith.constant dense<0.000000e+00> : vector<2x8xf32>
    %88 = vector.multi_reduction <add>, %87, %cst_32 [2] : vector<2x8x8xf32> to vector<2x8xf32>
    %89 = vector.shape_cast %88 : vector<2x8xf32> to vector<2x8x1xf32>
    %90 = tpu.reciprocal %89 {approx = true} : vector<2x8x1xf32> -> vector<2x8x1xf32>
    %91 = vector.broadcast %90 : vector<2x8x1xf32> to vector<2x8x8xf32>
    %92 = arith.mulf %87, %91 : vector<2x8x8xf32>
    "tpu.trace_start"() <{level = 10 : i32, message = "bqk,bkd->bqd"}> : () -> ()
    %cst_33 = arith.constant dense<0.000000e+00> : vector<2x8x16xf32>
    %93 = tpu.matmul %92, %81, %cst_33 {dimension_numbers = #tpu.dot_dimension_numbers<[2], [1], [1], [2], [0, 0, 0, 1, 1, 2], [0], [0]>} : vector<2x8x8xf32>, vector<2x8x16xf32>, vector<2x8x16xf32> -> vector<2x8x16xf32>
    "tpu.trace_stop"() : () -> ()
    %94 = vector.shape_cast %93 : vector<2x8x16xf32> to vector<16x16xf32>
    %95 = tpu.concatenate %37, %56, %75, %94 in 1 : vector<16x16xf32>, vector<16x16xf32>, vector<16x16xf32>, vector<16x16xf32> -> vector<16x64xf32>
    %c0_34 = arith.constant 0 : index
    %c0_35 = arith.constant 0 : index
    %c0_36 = arith.constant 0 : index
    %96 = vector.load %arg7[%c0_34, %c0_35, %c0_36] : memref<2x64x64xf32, #tpu.memory_space<vmem>>, vector<1x64x64xf32>
    %97 = vector.shape_cast %96 : vector<1x64x64xf32> to vector<64x64xf32>
    %cst_37 = arith.constant dense<0.000000e+00> : vector<16x64xf32>
    %98 = tpu.matmul %95, %97, %cst_37 {dimension_numbers = #tpu.dot_dimension_numbers<[1], [0], [0], [1], [0, 0, 1, 1], [], []>} : vector<16x64xf32>, vector<64x64xf32>, vector<16x64xf32> -> vector<16x64xf32>
    %c0_38 = arith.constant 0 : index
    %c0_39 = arith.constant 0 : index
    %c0_40 = arith.constant 0 : index
    %99 = vector.load %arg8[%c0_38, %c0_39, %c0_40] : memref<2x1x64xf32, #tpu.memory_space<vmem>>, vector<1x1x64xf32>
    %100 = vector.shape_cast %99 : vector<1x1x64xf32> to vector<1x64xf32>
    %101 = vector.broadcast %100 : vector<1x64xf32> to vector<16x64xf32>
    %102 = arith.addf %98, %101 : vector<16x64xf32>
    %103 = arith.addf %11, %102 : vector<16x64xf32>
    %c0_41 = arith.constant 0 : index
    %c0_42 = arith.constant 0 : index
    %c0_43 = arith.constant 0 : index
    %104 = vector.load %arg9[%c0_41, %c0_42, %c0_43] : memref<2x1x64xf32, #tpu.memory_space<vmem>>, vector<1x1x64xf32>
    %105 = vector.shape_cast %104 : vector<1x1x64xf32> to vector<1x64xf32>
    %c0_44 = arith.constant 0 : index
    %c0_45 = arith.constant 0 : index
    %c0_46 = arith.constant 0 : index
    %106 = vector.load %arg10[%c0_44, %c0_45, %c0_46] : memref<2x1x64xf32, #tpu.memory_space<vmem>>, vector<1x1x64xf32>
    %107 = vector.shape_cast %106 : vector<1x1x64xf32> to vector<1x64xf32>
    %cst_47 = arith.constant dense<0.000000e+00> : vector<16xf32>
    %108 = vector.multi_reduction <add>, %103, %cst_47 [1] : vector<16x64xf32> to vector<16xf32>
    %109 = vector.shape_cast %108 : vector<16xf32> to vector<16x1xf32>
    %cst_48 = arith.constant 6.400000e+01 : f32
    %110 = vector.broadcast %cst_48 : f32 to vector<16x1xf32>
    %111 = arith.divf %109, %110 : vector<16x1xf32>
    %112 = vector.broadcast %111 : vector<16x1xf32> to vector<16x64xf32>
    %113 = arith.subf %103, %112 : vector<16x64xf32>
    %114 = arith.mulf %113, %113 : vector<16x64xf32>
    %cst_49 = arith.constant dense<0.000000e+00> : vector<16xf32>
    %115 = vector.multi_reduction <add>, %114, %cst_49 [1] : vector<16x64xf32> to vector<16xf32>
    %116 = vector.shape_cast %115 : vector<16xf32> to vector<16x1xf32>
    %cst_50 = arith.constant 6.400000e+01 : f32
    %117 = vector.broadcast %cst_50 : f32 to vector<16x1xf32>
    %118 = arith.divf %116, %117 : vector<16x1xf32>
    %119 = vector.broadcast %111 : vector<16x1xf32> to vector<16x64xf32>
    %120 = arith.subf %103, %119 : vector<16x64xf32>
    %cst_51 = arith.constant 9.99999974E-6 : f32
    %121 = vector.broadcast %cst_51 : f32 to vector<16x1xf32>
    %122 = arith.addf %118, %121 : vector<16x1xf32>
    %123 = math.rsqrt %122 : vector<16x1xf32>
    %124 = vector.broadcast %123 : vector<16x1xf32> to vector<16x64xf32>
    %125 = arith.mulf %120, %124 : vector<16x64xf32>
    %126 = vector.broadcast %105 : vector<1x64xf32> to vector<16x64xf32>
    %127 = arith.mulf %125, %126 : vector<16x64xf32>
    %128 = vector.broadcast %107 : vector<1x64xf32> to vector<16x64xf32>
    %129 = arith.addf %127, %128 : vector<16x64xf32>
    %c0_52 = arith.constant 0 : index
    %c0_53 = arith.constant 0 : index
    %c0_54 = arith.constant 0 : index
    %130 = vector.load %arg11[%c0_52, %c0_53, %c0_54] : memref<2x64x32xf32, #tpu.memory_space<vmem>>, vector<1x64x32xf32>
    %131 = vector.shape_cast %130 : vector<1x64x32xf32> to vector<64x32xf32>
    %cst_55 = arith.constant dense<0.000000e+00> : vector<16x32xf32>
    %132 = tpu.matmul %129, %131, %cst_55 {dimension_numbers = #tpu.dot_dimension_numbers<[1], [0], [0], [1], [0, 0, 1, 1], [], []>} : vector<16x64xf32>, vector<64x32xf32>, vector<16x32xf32> -> vector<16x32xf32>
    %c0_56 = arith.constant 0 : index
    %c0_57 = arith.constant 0 : index
    %c0_58 = arith.constant 0 : index
    %133 = vector.load %arg12[%c0_56, %c0_57, %c0_58] : memref<2x1x32xf32, #tpu.memory_space<vmem>>, vector<1x1x32xf32>
    %134 = vector.shape_cast %133 : vector<1x1x32xf32> to vector<1x32xf32>
    %135 = vector.broadcast %134 : vector<1x32xf32> to vector<16x32xf32>
    %136 = arith.addf %132, %135 : vector<16x32xf32>
    %cst_59 = arith.constant 0.000000e+00 : f32
    %137 = vector.broadcast %cst_59 : f32 to vector<16x32xf32>
    %138 = arith.maximumf %136, %137 : vector<16x32xf32>
    %c0_60 = arith.constant 0 : index
    %c0_61 = arith.constant 0 : index
    %c0_62 = arith.constant 0 : index
    %139 = vector.load %arg13[%c0_60, %c0_61, %c0_62] : memref<2x32x64xf32, #tpu.memory_space<vmem>>, vector<1x32x64xf32>
    %140 = vector.shape_cast %139 : vector<1x32x64xf32> to vector<32x64xf32>
    %cst_63 = arith.constant dense<0.000000e+00> : vector<16x64xf32>
    %141 = tpu.matmul %138, %140, %cst_63 {dimension_numbers = #tpu.dot_dimension_numbers<[1], [0], [0], [1], [0, 0, 1, 1], [], []>} : vector<16x32xf32>, vector<32x64xf32>, vector<16x64xf32> -> vector<16x64xf32>
    %c0_64 = arith.constant 0 : index
    %c0_65 = arith.constant 0 : index
    %c0_66 = arith.constant 0 : index
    %142 = vector.load %arg14[%c0_64, %c0_65, %c0_66] : memref<2x1x64xf32, #tpu.memory_space<vmem>>, vector<1x1x64xf32>
    %143 = vector.shape_cast %142 : vector<1x1x64xf32> to vector<1x64xf32>
    %144 = vector.broadcast %143 : vector<1x64xf32> to vector<16x64xf32>
    %145 = arith.addf %141, %144 : vector<16x64xf32>
    %146 = arith.addf %129, %145 : vector<16x64xf32>
    %c0_67 = arith.constant 0 : index
    %c0_68 = arith.constant 0 : index
    %c0_69 = arith.constant 0 : index
    %147 = vector.load %arg15[%c0_67, %c0_68, %c0_69] : memref<2x1x64xf32, #tpu.memory_space<vmem>>, vector<1x1x64xf32>
    %148 = vector.shape_cast %147 : vector<1x1x64xf32> to vector<1x64xf32>
    %c0_70 = arith.constant 0 : index
    %c0_71 = arith.constant 0 : index
    %c0_72 = arith.constant 0 : index
    %149 = vector.load %arg16[%c0_70, %c0_71, %c0_72] : memref<2x1x64xf32, #tpu.memory_space<vmem>>, vector<1x1x64xf32>
    %150 = vector.shape_cast %149 : vector<1x1x64xf32> to vector<1x64xf32>
    %cst_73 = arith.constant dense<0.000000e+00> : vector<16xf32>
    %151 = vector.multi_reduction <add>, %146, %cst_73 [1] : vector<16x64xf32> to vector<16xf32>
    %152 = vector.shape_cast %151 : vector<16xf32> to vector<16x1xf32>
    %cst_74 = arith.constant 6.400000e+01 : f32
    %153 = vector.broadcast %cst_74 : f32 to vector<16x1xf32>
    %154 = arith.divf %152, %153 : vector<16x1xf32>
    %155 = vector.broadcast %154 : vector<16x1xf32> to vector<16x64xf32>
    %156 = arith.subf %146, %155 : vector<16x64xf32>
    %157 = arith.mulf %156, %156 : vector<16x64xf32>
    %cst_75 = arith.constant dense<0.000000e+00> : vector<16xf32>
    %158 = vector.multi_reduction <add>, %157, %cst_75 [1] : vector<16x64xf32> to vector<16xf32>
    %159 = vector.shape_cast %158 : vector<16xf32> to vector<16x1xf32>
    %cst_76 = arith.constant 6.400000e+01 : f32
    %160 = vector.broadcast %cst_76 : f32 to vector<16x1xf32>
    %161 = arith.divf %159, %160 : vector<16x1xf32>
    %162 = vector.broadcast %154 : vector<16x1xf32> to vector<16x64xf32>
    %163 = arith.subf %146, %162 : vector<16x64xf32>
    %cst_77 = arith.constant 9.99999974E-6 : f32
    %164 = vector.broadcast %cst_77 : f32 to vector<16x1xf32>
    %165 = arith.addf %161, %164 : vector<16x1xf32>
    %166 = math.rsqrt %165 : vector<16x1xf32>
    %167 = vector.broadcast %166 : vector<16x1xf32> to vector<16x64xf32>
    %168 = arith.mulf %163, %167 : vector<16x64xf32>
    %169 = vector.broadcast %148 : vector<1x64xf32> to vector<16x64xf32>
    %170 = arith.mulf %168, %169 : vector<16x64xf32>
    %171 = vector.broadcast %150 : vector<1x64xf32> to vector<16x64xf32>
    %172 = arith.addf %170, %171 : vector<16x64xf32>
    %c1 = arith.constant 1 : index
    %c0_78 = arith.constant 0 : index
    %c0_79 = arith.constant 0 : index
    %173 = vector.load %arg5[%c1, %c0_78, %c0_79] : memref<2x64x192xf32, #tpu.memory_space<vmem>>, vector<1x64x192xf32>
    %174 = vector.shape_cast %173 : vector<1x64x192xf32> to vector<64x192xf32>
    %cst_80 = arith.constant dense<0.000000e+00> : vector<16x192xf32>
    %175 = tpu.matmul %172, %174, %cst_80 {dimension_numbers = #tpu.dot_dimension_numbers<[1], [0], [0], [1], [0, 0, 1, 1], [], []>} : vector<16x64xf32>, vector<64x192xf32>, vector<16x192xf32> -> vector<16x192xf32>
    %c1_81 = arith.constant 1 : index
    %c0_82 = arith.constant 0 : index
    %c0_83 = arith.constant 0 : index
    %176 = vector.load %arg6[%c1_81, %c0_82, %c0_83] : memref<2x1x192xf32, #tpu.memory_space<vmem>>, vector<1x1x192xf32>
    %177 = vector.shape_cast %176 : vector<1x1x192xf32> to vector<1x192xf32>
    %178 = vector.broadcast %177 : vector<1x192xf32> to vector<16x192xf32>
    %179 = arith.addf %175, %178 : vector<16x192xf32>
    %180 = vector.extract_strided_slice %179 {offsets = [0, 0], sizes = [16, 16], strides = [1, 1]} : vector<16x192xf32> to vector<16x16xf32>
    %181 = vector.shape_cast %180 : vector<16x16xf32> to vector<2x8x16xf32>
    %182 = vector.extract_strided_slice %179 {offsets = [0, 64], sizes = [16, 16], strides = [1, 1]} : vector<16x192xf32> to vector<16x16xf32>
    %183 = vector.shape_cast %182 : vector<16x16xf32> to vector<2x8x16xf32>
    %184 = vector.extract_strided_slice %179 {offsets = [0, 128], sizes = [16, 16], strides = [1, 1]} : vector<16x192xf32> to vector<16x16xf32>
    %185 = vector.shape_cast %184 : vector<16x16xf32> to vector<2x8x16xf32>
    "tpu.trace_start"() <{level = 10 : i32, message = "bqd,bkd->bqk"}> : () -> ()
    %cst_84 = arith.constant dense<0.000000e+00> : vector<2x8x8xf32>
    %186 = tpu.matmul %181, %183, %cst_84 {dimension_numbers = #tpu.dot_dimension_numbers<[2], [2], [1], [1], [0, 0, 0, 1, 1, 1], [0], [0]>} : vector<2x8x16xf32>, vector<2x8x16xf32>, vector<2x8x8xf32> -> vector<2x8x8xf32>
    "tpu.trace_stop"() : () -> ()
    %cst_85 = arith.constant dense<0xFF800000> : vector<2x8xf32>
    %187 = vector.multi_reduction <maximumf>, %186, %cst_85 [2] : vector<2x8x8xf32> to vector<2x8xf32>
    %188 = vector.shape_cast %187 : vector<2x8xf32> to vector<2x8x1xf32>
    %189 = vector.broadcast %188 : vector<2x8x1xf32> to vector<2x8x8xf32>
    %190 = arith.subf %186, %189 : vector<2x8x8xf32>
    %191 = math.exp %190 : vector<2x8x8xf32>
    %cst_86 = arith.constant dense<0.000000e+00> : vector<2x8xf32>
    %192 = vector.multi_reduction <add>, %191, %cst_86 [2] : vector<2x8x8xf32> to vector<2x8xf32>
    %193 = vector.shape_cast %192 : vector<2x8xf32> to vector<2x8x1xf32>
    %194 = tpu.reciprocal %193 {approx = true} : vector<2x8x1xf32> -> vector<2x8x1xf32>
    %195 = vector.broadcast %194 : vector<2x8x1xf32> to vector<2x8x8xf32>
    %196 = arith.mulf %191, %195 : vector<2x8x8xf32>
    "tpu.trace_start"() <{level = 10 : i32, message = "bqk,bkd->bqd"}> : () -> ()
    %cst_87 = arith.constant dense<0.000000e+00> : vector<2x8x16xf32>
    %197 = tpu.matmul %196, %185, %cst_87 {dimension_numbers = #tpu.dot_dimension_numbers<[2], [1], [1], [2], [0, 0, 0, 1, 1, 2], [0], [0]>} : vector<2x8x8xf32>, vector<2x8x16xf32>, vector<2x8x16xf32> -> vector<2x8x16xf32>
    "tpu.trace_stop"() : () -> ()
    %198 = vector.shape_cast %197 : vector<2x8x16xf32> to vector<16x16xf32>
    %199 = vector.extract_strided_slice %179 {offsets = [0, 16], sizes = [16, 16], strides = [1, 1]} : vector<16x192xf32> to vector<16x16xf32>
    %200 = vector.shape_cast %199 : vector<16x16xf32> to vector<2x8x16xf32>
    %201 = vector.extract_strided_slice %179 {offsets = [0, 80], sizes = [16, 16], strides = [1, 1]} : vector<16x192xf32> to vector<16x16xf32>
    %202 = vector.shape_cast %201 : vector<16x16xf32> to vector<2x8x16xf32>
    %203 = vector.extract_strided_slice %179 {offsets = [0, 144], sizes = [16, 16], strides = [1, 1]} : vector<16x192xf32> to vector<16x16xf32>
    %204 = vector.shape_cast %203 : vector<16x16xf32> to vector<2x8x16xf32>
    "tpu.trace_start"() <{level = 10 : i32, message = "bqd,bkd->bqk"}> : () -> ()
    %cst_88 = arith.constant dense<0.000000e+00> : vector<2x8x8xf32>
    %205 = tpu.matmul %200, %202, %cst_88 {dimension_numbers = #tpu.dot_dimension_numbers<[2], [2], [1], [1], [0, 0, 0, 1, 1, 1], [0], [0]>} : vector<2x8x16xf32>, vector<2x8x16xf32>, vector<2x8x8xf32> -> vector<2x8x8xf32>
    "tpu.trace_stop"() : () -> ()
    %cst_89 = arith.constant dense<0xFF800000> : vector<2x8xf32>
    %206 = vector.multi_reduction <maximumf>, %205, %cst_89 [2] : vector<2x8x8xf32> to vector<2x8xf32>
    %207 = vector.shape_cast %206 : vector<2x8xf32> to vector<2x8x1xf32>
    %208 = vector.broadcast %207 : vector<2x8x1xf32> to vector<2x8x8xf32>
    %209 = arith.subf %205, %208 : vector<2x8x8xf32>
    %210 = math.exp %209 : vector<2x8x8xf32>
    %cst_90 = arith.constant dense<0.000000e+00> : vector<2x8xf32>
    %211 = vector.multi_reduction <add>, %210, %cst_90 [2] : vector<2x8x8xf32> to vector<2x8xf32>
    %212 = vector.shape_cast %211 : vector<2x8xf32> to vector<2x8x1xf32>
    %213 = tpu.reciprocal %212 {approx = true} : vector<2x8x1xf32> -> vector<2x8x1xf32>
    %214 = vector.broadcast %213 : vector<2x8x1xf32> to vector<2x8x8xf32>
    %215 = arith.mulf %210, %214 : vector<2x8x8xf32>
    "tpu.trace_start"() <{level = 10 : i32, message = "bqk,bkd->bqd"}> : () -> ()
    %cst_91 = arith.constant dense<0.000000e+00> : vector<2x8x16xf32>
    %216 = tpu.matmul %215, %204, %cst_91 {dimension_numbers = #tpu.dot_dimension_numbers<[2], [1], [1], [2], [0, 0, 0, 1, 1, 2], [0], [0]>} : vector<2x8x8xf32>, vector<2x8x16xf32>, vector<2x8x16xf32> -> vector<2x8x16xf32>
    "tpu.trace_stop"() : () -> ()
    %217 = vector.shape_cast %216 : vector<2x8x16xf32> to vector<16x16xf32>
    %218 = vector.extract_strided_slice %179 {offsets = [0, 32], sizes = [16, 16], strides = [1, 1]} : vector<16x192xf32> to vector<16x16xf32>
    %219 = vector.shape_cast %218 : vector<16x16xf32> to vector<2x8x16xf32>
    %220 = vector.extract_strided_slice %179 {offsets = [0, 96], sizes = [16, 16], strides = [1, 1]} : vector<16x192xf32> to vector<16x16xf32>
    %221 = vector.shape_cast %220 : vector<16x16xf32> to vector<2x8x16xf32>
    %222 = vector.extract_strided_slice %179 {offsets = [0, 160], sizes = [16, 16], strides = [1, 1]} : vector<16x192xf32> to vector<16x16xf32>
    %223 = vector.shape_cast %222 : vector<16x16xf32> to vector<2x8x16xf32>
    "tpu.trace_start"() <{level = 10 : i32, message = "bqd,bkd->bqk"}> : () -> ()
    %cst_92 = arith.constant dense<0.000000e+00> : vector<2x8x8xf32>
    %224 = tpu.matmul %219, %221, %cst_92 {dimension_numbers = #tpu.dot_dimension_numbers<[2], [2], [1], [1], [0, 0, 0, 1, 1, 1], [0], [0]>} : vector<2x8x16xf32>, vector<2x8x16xf32>, vector<2x8x8xf32> -> vector<2x8x8xf32>
    "tpu.trace_stop"() : () -> ()
    %cst_93 = arith.constant dense<0xFF800000> : vector<2x8xf32>
    %225 = vector.multi_reduction <maximumf>, %224, %cst_93 [2] : vector<2x8x8xf32> to vector<2x8xf32>
    %226 = vector.shape_cast %225 : vector<2x8xf32> to vector<2x8x1xf32>
    %227 = vector.broadcast %226 : vector<2x8x1xf32> to vector<2x8x8xf32>
    %228 = arith.subf %224, %227 : vector<2x8x8xf32>
    %229 = math.exp %228 : vector<2x8x8xf32>
    %cst_94 = arith.constant dense<0.000000e+00> : vector<2x8xf32>
    %230 = vector.multi_reduction <add>, %229, %cst_94 [2] : vector<2x8x8xf32> to vector<2x8xf32>
    %231 = vector.shape_cast %230 : vector<2x8xf32> to vector<2x8x1xf32>
    %232 = tpu.reciprocal %231 {approx = true} : vector<2x8x1xf32> -> vector<2x8x1xf32>
    %233 = vector.broadcast %232 : vector<2x8x1xf32> to vector<2x8x8xf32>
    %234 = arith.mulf %229, %233 : vector<2x8x8xf32>
    "tpu.trace_start"() <{level = 10 : i32, message = "bqk,bkd->bqd"}> : () -> ()
    %cst_95 = arith.constant dense<0.000000e+00> : vector<2x8x16xf32>
    %235 = tpu.matmul %234, %223, %cst_95 {dimension_numbers = #tpu.dot_dimension_numbers<[2], [1], [1], [2], [0, 0, 0, 1, 1, 2], [0], [0]>} : vector<2x8x8xf32>, vector<2x8x16xf32>, vector<2x8x16xf32> -> vector<2x8x16xf32>
    "tpu.trace_stop"() : () -> ()
    %236 = vector.shape_cast %235 : vector<2x8x16xf32> to vector<16x16xf32>
    %237 = vector.extract_strided_slice %179 {offsets = [0, 48], sizes = [16, 16], strides = [1, 1]} : vector<16x192xf32> to vector<16x16xf32>
    %238 = vector.shape_cast %237 : vector<16x16xf32> to vector<2x8x16xf32>
    %239 = vector.extract_strided_slice %179 {offsets = [0, 112], sizes = [16, 16], strides = [1, 1]} : vector<16x192xf32> to vector<16x16xf32>
    %240 = vector.shape_cast %239 : vector<16x16xf32> to vector<2x8x16xf32>
    %241 = vector.extract_strided_slice %179 {offsets = [0, 176], sizes = [16, 16], strides = [1, 1]} : vector<16x192xf32> to vector<16x16xf32>
    %242 = vector.shape_cast %241 : vector<16x16xf32> to vector<2x8x16xf32>
    "tpu.trace_start"() <{level = 10 : i32, message = "bqd,bkd->bqk"}> : () -> ()
    %cst_96 = arith.constant dense<0.000000e+00> : vector<2x8x8xf32>
    %243 = tpu.matmul %238, %240, %cst_96 {dimension_numbers = #tpu.dot_dimension_numbers<[2], [2], [1], [1], [0, 0, 0, 1, 1, 1], [0], [0]>} : vector<2x8x16xf32>, vector<2x8x16xf32>, vector<2x8x8xf32> -> vector<2x8x8xf32>
    "tpu.trace_stop"() : () -> ()
    %cst_97 = arith.constant dense<0xFF800000> : vector<2x8xf32>
    %244 = vector.multi_reduction <maximumf>, %243, %cst_97 [2] : vector<2x8x8xf32> to vector<2x8xf32>
    %245 = vector.shape_cast %244 : vector<2x8xf32> to vector<2x8x1xf32>
    %246 = vector.broadcast %245 : vector<2x8x1xf32> to vector<2x8x8xf32>
    %247 = arith.subf %243, %246 : vector<2x8x8xf32>
    %248 = math.exp %247 : vector<2x8x8xf32>
    %cst_98 = arith.constant dense<0.000000e+00> : vector<2x8xf32>
    %249 = vector.multi_reduction <add>, %248, %cst_98 [2] : vector<2x8x8xf32> to vector<2x8xf32>
    %250 = vector.shape_cast %249 : vector<2x8xf32> to vector<2x8x1xf32>
    %251 = tpu.reciprocal %250 {approx = true} : vector<2x8x1xf32> -> vector<2x8x1xf32>
    %252 = vector.broadcast %251 : vector<2x8x1xf32> to vector<2x8x8xf32>
    %253 = arith.mulf %248, %252 : vector<2x8x8xf32>
    "tpu.trace_start"() <{level = 10 : i32, message = "bqk,bkd->bqd"}> : () -> ()
    %cst_99 = arith.constant dense<0.000000e+00> : vector<2x8x16xf32>
    %254 = tpu.matmul %253, %242, %cst_99 {dimension_numbers = #tpu.dot_dimension_numbers<[2], [1], [1], [2], [0, 0, 0, 1, 1, 2], [0], [0]>} : vector<2x8x8xf32>, vector<2x8x16xf32>, vector<2x8x16xf32> -> vector<2x8x16xf32>
    "tpu.trace_stop"() : () -> ()
    %255 = vector.shape_cast %254 : vector<2x8x16xf32> to vector<16x16xf32>
    %256 = tpu.concatenate %198, %217, %236, %255 in 1 : vector<16x16xf32>, vector<16x16xf32>, vector<16x16xf32>, vector<16x16xf32> -> vector<16x64xf32>
    %c1_100 = arith.constant 1 : index
    %c0_101 = arith.constant 0 : index
    %c0_102 = arith.constant 0 : index
    %257 = vector.load %arg7[%c1_100, %c0_101, %c0_102] : memref<2x64x64xf32, #tpu.memory_space<vmem>>, vector<1x64x64xf32>
    %258 = vector.shape_cast %257 : vector<1x64x64xf32> to vector<64x64xf32>
    %cst_103 = arith.constant dense<0.000000e+00> : vector<16x64xf32>
    %259 = tpu.matmul %256, %258, %cst_103 {dimension_numbers = #tpu.dot_dimension_numbers<[1], [0], [0], [1], [0, 0, 1, 1], [], []>} : vector<16x64xf32>, vector<64x64xf32>, vector<16x64xf32> -> vector<16x64xf32>
    %c1_104 = arith.constant 1 : index
    %c0_105 = arith.constant 0 : index
    %c0_106 = arith.constant 0 : index
    %260 = vector.load %arg8[%c1_104, %c0_105, %c0_106] : memref<2x1x64xf32, #tpu.memory_space<vmem>>, vector<1x1x64xf32>
    %261 = vector.shape_cast %260 : vector<1x1x64xf32> to vector<1x64xf32>
    %262 = vector.broadcast %261 : vector<1x64xf32> to vector<16x64xf32>
    %263 = arith.addf %259, %262 : vector<16x64xf32>
    %264 = arith.addf %172, %263 : vector<16x64xf32>
    %c1_107 = arith.constant 1 : index
    %c0_108 = arith.constant 0 : index
    %c0_109 = arith.constant 0 : index
    %265 = vector.load %arg9[%c1_107, %c0_108, %c0_109] : memref<2x1x64xf32, #tpu.memory_space<vmem>>, vector<1x1x64xf32>
    %266 = vector.shape_cast %265 : vector<1x1x64xf32> to vector<1x64xf32>
    %c1_110 = arith.constant 1 : index
    %c0_111 = arith.constant 0 : index
    %c0_112 = arith.constant 0 : index
    %267 = vector.load %arg10[%c1_110, %c0_111, %c0_112] : memref<2x1x64xf32, #tpu.memory_space<vmem>>, vector<1x1x64xf32>
    %268 = vector.shape_cast %267 : vector<1x1x64xf32> to vector<1x64xf32>
    %cst_113 = arith.constant dense<0.000000e+00> : vector<16xf32>
    %269 = vector.multi_reduction <add>, %264, %cst_113 [1] : vector<16x64xf32> to vector<16xf32>
    %270 = vector.shape_cast %269 : vector<16xf32> to vector<16x1xf32>
    %cst_114 = arith.constant 6.400000e+01 : f32
    %271 = vector.broadcast %cst_114 : f32 to vector<16x1xf32>
    %272 = arith.divf %270, %271 : vector<16x1xf32>
    %273 = vector.broadcast %272 : vector<16x1xf32> to vector<16x64xf32>
    %274 = arith.subf %264, %273 : vector<16x64xf32>
    %275 = arith.mulf %274, %274 : vector<16x64xf32>
    %cst_115 = arith.constant dense<0.000000e+00> : vector<16xf32>
    %276 = vector.multi_reduction <add>, %275, %cst_115 [1] : vector<16x64xf32> to vector<16xf32>
    %277 = vector.shape_cast %276 : vector<16xf32> to vector<16x1xf32>
    %cst_116 = arith.constant 6.400000e+01 : f32
    %278 = vector.broadcast %cst_116 : f32 to vector<16x1xf32>
    %279 = arith.divf %277, %278 : vector<16x1xf32>
    %280 = vector.broadcast %272 : vector<16x1xf32> to vector<16x64xf32>
    %281 = arith.subf %264, %280 : vector<16x64xf32>
    %cst_117 = arith.constant 9.99999974E-6 : f32
    %282 = vector.broadcast %cst_117 : f32 to vector<16x1xf32>
    %283 = arith.addf %279, %282 : vector<16x1xf32>
    %284 = math.rsqrt %283 : vector<16x1xf32>
    %285 = vector.broadcast %284 : vector<16x1xf32> to vector<16x64xf32>
    %286 = arith.mulf %281, %285 : vector<16x64xf32>
    %287 = vector.broadcast %266 : vector<1x64xf32> to vector<16x64xf32>
    %288 = arith.mulf %286, %287 : vector<16x64xf32>
    %289 = vector.broadcast %268 : vector<1x64xf32> to vector<16x64xf32>
    %290 = arith.addf %288, %289 : vector<16x64xf32>
    %c1_118 = arith.constant 1 : index
    %c0_119 = arith.constant 0 : index
    %c0_120 = arith.constant 0 : index
    %291 = vector.load %arg11[%c1_118, %c0_119, %c0_120] : memref<2x64x32xf32, #tpu.memory_space<vmem>>, vector<1x64x32xf32>
    %292 = vector.shape_cast %291 : vector<1x64x32xf32> to vector<64x32xf32>
    %cst_121 = arith.constant dense<0.000000e+00> : vector<16x32xf32>
    %293 = tpu.matmul %290, %292, %cst_121 {dimension_numbers = #tpu.dot_dimension_numbers<[1], [0], [0], [1], [0, 0, 1, 1], [], []>} : vector<16x64xf32>, vector<64x32xf32>, vector<16x32xf32> -> vector<16x32xf32>
    %c1_122 = arith.constant 1 : index
    %c0_123 = arith.constant 0 : index
    %c0_124 = arith.constant 0 : index
    %294 = vector.load %arg12[%c1_122, %c0_123, %c0_124] : memref<2x1x32xf32, #tpu.memory_space<vmem>>, vector<1x1x32xf32>
    %295 = vector.shape_cast %294 : vector<1x1x32xf32> to vector<1x32xf32>
    %296 = vector.broadcast %295 : vector<1x32xf32> to vector<16x32xf32>
    %297 = arith.addf %293, %296 : vector<16x32xf32>
    %cst_125 = arith.constant 0.000000e+00 : f32
    %298 = vector.broadcast %cst_125 : f32 to vector<16x32xf32>
    %299 = arith.maximumf %297, %298 : vector<16x32xf32>
    %c1_126 = arith.constant 1 : index
    %c0_127 = arith.constant 0 : index
    %c0_128 = arith.constant 0 : index
    %300 = vector.load %arg13[%c1_126, %c0_127, %c0_128] : memref<2x32x64xf32, #tpu.memory_space<vmem>>, vector<1x32x64xf32>
    %301 = vector.shape_cast %300 : vector<1x32x64xf32> to vector<32x64xf32>
    %cst_129 = arith.constant dense<0.000000e+00> : vector<16x64xf32>
    %302 = tpu.matmul %299, %301, %cst_129 {dimension_numbers = #tpu.dot_dimension_numbers<[1], [0], [0], [1], [0, 0, 1, 1], [], []>} : vector<16x32xf32>, vector<32x64xf32>, vector<16x64xf32> -> vector<16x64xf32>
    %c1_130 = arith.constant 1 : index
    %c0_131 = arith.constant 0 : index
    %c0_132 = arith.constant 0 : index
    %303 = vector.load %arg14[%c1_130, %c0_131, %c0_132] : memref<2x1x64xf32, #tpu.memory_space<vmem>>, vector<1x1x64xf32>
    %304 = vector.shape_cast %303 : vector<1x1x64xf32> to vector<1x64xf32>
    %305 = vector.broadcast %304 : vector<1x64xf32> to vector<16x64xf32>
    %306 = arith.addf %302, %305 : vector<16x64xf32>
    %307 = arith.addf %290, %306 : vector<16x64xf32>
    %c1_133 = arith.constant 1 : index
    %c0_134 = arith.constant 0 : index
    %c0_135 = arith.constant 0 : index
    %308 = vector.load %arg15[%c1_133, %c0_134, %c0_135] : memref<2x1x64xf32, #tpu.memory_space<vmem>>, vector<1x1x64xf32>
    %309 = vector.shape_cast %308 : vector<1x1x64xf32> to vector<1x64xf32>
    %c1_136 = arith.constant 1 : index
    %c0_137 = arith.constant 0 : index
    %c0_138 = arith.constant 0 : index
    %310 = vector.load %arg16[%c1_136, %c0_137, %c0_138] : memref<2x1x64xf32, #tpu.memory_space<vmem>>, vector<1x1x64xf32>
    %311 = vector.shape_cast %310 : vector<1x1x64xf32> to vector<1x64xf32>
    %cst_139 = arith.constant dense<0.000000e+00> : vector<16xf32>
    %312 = vector.multi_reduction <add>, %307, %cst_139 [1] : vector<16x64xf32> to vector<16xf32>
    %313 = vector.shape_cast %312 : vector<16xf32> to vector<16x1xf32>
    %cst_140 = arith.constant 6.400000e+01 : f32
    %314 = vector.broadcast %cst_140 : f32 to vector<16x1xf32>
    %315 = arith.divf %313, %314 : vector<16x1xf32>
    %316 = vector.broadcast %315 : vector<16x1xf32> to vector<16x64xf32>
    %317 = arith.subf %307, %316 : vector<16x64xf32>
    %318 = arith.mulf %317, %317 : vector<16x64xf32>
    %cst_141 = arith.constant dense<0.000000e+00> : vector<16xf32>
    %319 = vector.multi_reduction <add>, %318, %cst_141 [1] : vector<16x64xf32> to vector<16xf32>
    %320 = vector.shape_cast %319 : vector<16xf32> to vector<16x1xf32>
    %cst_142 = arith.constant 6.400000e+01 : f32
    %321 = vector.broadcast %cst_142 : f32 to vector<16x1xf32>
    %322 = arith.divf %320, %321 : vector<16x1xf32>
    %323 = vector.broadcast %315 : vector<16x1xf32> to vector<16x64xf32>
    %324 = arith.subf %307, %323 : vector<16x64xf32>
    %cst_143 = arith.constant 9.99999974E-6 : f32
    %325 = vector.broadcast %cst_143 : f32 to vector<16x1xf32>
    %326 = arith.addf %322, %325 : vector<16x1xf32>
    %327 = math.rsqrt %326 : vector<16x1xf32>
    %328 = vector.broadcast %327 : vector<16x1xf32> to vector<16x64xf32>
    %329 = arith.mulf %324, %328 : vector<16x64xf32>
    %330 = vector.broadcast %309 : vector<1x64xf32> to vector<16x64xf32>
    %331 = arith.mulf %329, %330 : vector<16x64xf32>
    %332 = vector.broadcast %311 : vector<1x64xf32> to vector<16x64xf32>
    %333 = arith.addf %331, %332 : vector<16x64xf32>
    %c0_144 = arith.constant 0 : index
    %c0_145 = arith.constant 0 : index
    %334 = vector.load %arg17[%c0_144, %c0_145] : memref<16x64xf32, #tpu.memory_space<vmem>>, vector<16x64xf32>
    tpu.vector_store %arg17[%c0_144, %c0_145], %333 {strides = array<i32>} : memref<16x64xf32, #tpu.memory_space<vmem>>, vector<16x64xf32>,
    return
  }
}

</mosaic_0001>

<llo_original>
// kernel: tpu_custom_call.1
$region0: #{tpu_custom_call.1}
  #allocation0 [shape = 'u32[]', space=smem, size = 0x4, offset = 0x4, fixed_abs, tag = 'smem constant byte address 0x4 - core index']
  #allocation1 [shape = 'u32[144,128]{1,0:T(1,128)}', space=vmem, size = 0x12000, scoped, tag = 'internal scratch']
  %s0 = inlined_call_operand.vmem [shape: f32[2,8,32], index: 0, kind: input, shape index: {}]
  %s1 = inlined_call_operand.vmem [shape: f32[8,32], index: 1, kind: input, shape index: {}]
  %s2 = inlined_call_operand.hbm [shape: f32[32,64], index: 2, kind: input, shape index: {}]
  %s3 = inlined_call_operand.hbm [shape: f32[32,64], index: 3, kind: input, shape index: {}]
  %s4 = inlined_call_operand.hbm [shape: f32[1,64], index: 4, kind: input, shape index: {}]
  %s5 = inlined_call_operand.hbm [shape: f32[2,64,192], index: 5, kind: input, shape index: {}]
  %s6 = inlined_call_operand.hbm [shape: f32[2,1,192], index: 6, kind: input, shape index: {}]
  %s7 = inlined_call_operand.vmem [shape: f32[2,64,64], index: 7, kind: input, shape index: {}]
  %s8 = inlined_call_operand.vmem [shape: f32[2,1,64], index: 8, kind: input, shape index: {}]
  %s9 = inlined_call_operand.vmem [shape: f32[2,1,64], index: 9, kind: input, shape index: {}]
  %s10 = inlined_call_operand.vmem [shape: f32[2,1,64], index: 10, kind: input, shape index: {}]
  %s11 = inlined_call_operand.vmem [shape: f32[2,64,32], index: 11, kind: input, shape index: {}]
  %s12 = inlined_call_operand.vmem [shape: f32[2,1,32], index: 12, kind: input, shape index: {}]
  %s13 = inlined_call_operand.vmem [shape: f32[2,32,64], index: 13, kind: input, shape index: {}]
  %s14 = inlined_call_operand.vmem [shape: f32[2,1,64], index: 14, kind: input, shape index: {}]
  %s15 = inlined_call_operand.vmem [shape: f32[2,1,64], index: 15, kind: input, shape index: {}]
  %s16 = inlined_call_operand.vmem [shape: f32[2,1,64], index: 16, kind: input, shape index: {}]
  %s17 = inlined_call_operand.hbm [shape: f32[16,64], index: 17, kind: output, shape index: {}]
  %s18 = sld [smem:[#allocation0]]
  $region98: #{tpu_custom_call.1} parent=0
    _
  %s20 = ssub.s32 1, %s18
  %s21 = scalar_select 0, %s20, %s18
  $region1: #{tpu_custom_call.1} parent=0
    #allocation2 [shape = 'u8[16384]{0}', space=vmem, size = 0x4000, scoped, tag = 'input window, operand 2, single buffered']
    #allocation3 [shape = 's32[1]{0}', space=sflag, size = 0x4, scoped, tag = 'scoped memory for tpu_custom_call.1']
    #allocation4 [shape = 's32[1]{0}', space=sflag, size = 0x4, scoped, tag = 'scoped memory for tpu_custom_call.1']
    #allocation5 [shape = 'u8[16384]{0}', space=vmem, size = 0x4000, scoped, tag = 'input window, operand 3, single buffered']
    #allocation6 [shape = 's32[1]{0}', space=sflag, size = 0x4, scoped, tag = 'scoped memory for tpu_custom_call.1']
    #allocation7 [shape = 'u8[512]{0}', space=vmem, size = 0x400, scoped, tag = 'input window, operand 4, single buffered']
    #allocation8 [shape = 'u8[131072]{0}', space=vmem, size = 0x20000, scoped, tag = 'input window, operand 5, single buffered']
    #allocation9 [shape = 's32[1]{0}', space=sflag, size = 0x4, scoped, tag = 'scoped memory for tpu_custom_call.1']
    #allocation10 [shape = 'u8[2048]{0}', space=vmem, size = 0x800, scoped, tag = 'input window, operand 6, single buffered']
    #allocation11 [shape = 'u8[8192]{0}', space=vmem, size = 0x2000, scoped, tag = 'output window, operand 0, single buffered']
    %22 = vsyncpa [#allocation3], 0
    %23 = vsyncpa [#allocation6], 0
    %24 = vsyncpa [#allocation9], 0
    %25 = vsyncpa [#allocation4], 0
    // Predicated region
    $region2: #{tpu_custom_call.1} parent=1 // pred_check
      _
    $region3: #{tpu_custom_call.1} parent=1 // pred_check_branch
      %27 = sbr.rel (0) target = $region5
    $region4: #{tpu_custom_call.1} parent=1 // pred_region
      _
    $region5: #{tpu_custom_call.1} parent=1 // pred_fallthru
      _
    // Predicated region
    $region6: #{tpu_custom_call.1} parent=1 // pred_check
      _
    $region7: #{tpu_custom_call.1} parent=1 // pred_check_branch
      %29 = sbr.rel (0) target = $region9
    $region8: #{tpu_custom_call.1} parent=1 // pred_region
      _
    $region9: #{tpu_custom_call.1} parent=1 // pred_fallthru
      _
    // Predicated region
    $region10: #{tpu_custom_call.1} parent=1 // pred_check
      _
    $region11: #{tpu_custom_call.1} parent=1 // pred_check_branch
      %31 = sbr.rel (0) target = $region13
    $region12: #{tpu_custom_call.1} parent=1 // pred_region
      %s33 = ssub.s32 512, 512
      %34 = vsyncadd [#allocation3], %s33
      %s35 = sshll.u32 [#allocation2], 4
      %s36 = int_to_ptr.vmem [resolvable:$true] %s35
      %41 = dma.hbm_to_vmem [thread:$0]  %s2, 512, %s36, [#allocation3], 128, 128, 8
    $region13: #{tpu_custom_call.1} parent=1 // pred_fallthru
      _
    // Predicated region
    $region14: #{tpu_custom_call.1} parent=1 // pred_check
      _
    $region15: #{tpu_custom_call.1} parent=1 // pred_check_branch
      %43 = sbr.rel (0) target = $region17
    $region16: #{tpu_custom_call.1} parent=1 // pred_region
      %s45 = ssub.s32 512, 512
      %46 = vsyncadd [#allocation6], %s45
      %s47 = sshll.u32 [#allocation5], 4
      %s48 = int_to_ptr.vmem [resolvable:$true] %s47
      %53 = dma.hbm_to_vmem [thread:$0]  %s3, 512, %s48, [#allocation6], 128, 128, 8
    $region17: #{tpu_custom_call.1} parent=1 // pred_fallthru
      _
    // Predicated region
    $region18: #{tpu_custom_call.1} parent=1 // pred_check
      _
    $region19: #{tpu_custom_call.1} parent=1 // pred_check_branch
      %55 = sbr.rel (0) target = $region21
    $region20: #{tpu_custom_call.1} parent=1 // pred_region
      %s57 = ssub.s32 16, 16
      %58 = vsyncadd [#allocation6], %s57
      %s60 = sshll.u32 [#allocation7], 4
      %s61 = int_to_ptr.vmem [resolvable:$true] %s60
      %63 = dma.hbm_to_vmem [thread:$0]  %s4, 16, %s61, [#allocation6]
    $region21: #{tpu_custom_call.1} parent=1 // pred_fallthru
      _
    // Predicated region
    $region22: #{tpu_custom_call.1} parent=1 // pred_check
      _
    $region23: #{tpu_custom_call.1} parent=1 // pred_check_branch
      %65 = sbr.rel (0) target = $region25
    $region24: #{tpu_custom_call.1} parent=1 // pred_region
      %s67 = ssub.s32 4096, 4096
      %68 = vsyncadd [#allocation9], %s67
      %s69 = sshll.u32 [#allocation8], 4
      %s70 = int_to_ptr.vmem [resolvable:$true] %s69
      %75 = dma.hbm_to_vmem [thread:$0]  %s5, 4096, %s70, [#allocation9], 256, 256, 16
    $region25: #{tpu_custom_call.1} parent=1 // pred_fallthru
      _
    // Predicated region
    $region26: #{tpu_custom_call.1} parent=1 // pred_check
      _
    $region27: #{tpu_custom_call.1} parent=1 // pred_check_branch
      %77 = sbr.rel (0) target = $region29
    $region28: #{tpu_custom_call.1} parent=1 // pred_region
      %s79 = ssub.s32 64, 64
      %80 = vsyncadd [#allocation9], %s79
      %s81 = sshll.u32 [#allocation10], 4
      %s82 = int_to_ptr.vmem [resolvable:$true] %s81
      %87 = dma.hbm_to_vmem [thread:$0]  %s6, 64, %s82, [#allocation9], 32, 32, 2
    $region29: #{tpu_custom_call.1} parent=1 // pred_fallthru
      _
    // Predicated region
    $region30: #{tpu_custom_call.1} parent=1 // pred_check
      _
    $region31: #{tpu_custom_call.1} parent=1 // pred_check_branch
      %89 = sbr.rel (0) target = $region33
    $region32: #{tpu_custom_call.1} parent=1 // pred_region
      _
    $region33: #{tpu_custom_call.1} parent=1 // pred_fallthru
      _
    // Predicated region
    $region34: #{tpu_custom_call.1} parent=1 // pred_check
      _
    $region35: #{tpu_custom_call.1} parent=1 // pred_check_branch
      %91 = sbr.rel (0) target = $region37
    $region36: #{tpu_custom_call.1} parent=1 // pred_region
      _
    $region37: #{tpu_custom_call.1} parent=1 // pred_fallthru
      _
    // Predicated region
    $region38: #{tpu_custom_call.1} parent=1 // pred_check
      _
    $region39: #{tpu_custom_call.1} parent=1 // pred_check_branch
      %93 = sbr.rel (0) target = $region41
    $region40: #{tpu_custom_call.1} parent=1 // pred_region
      _
    $region41: #{tpu_custom_call.1} parent=1 // pred_fallthru
      _
    // Predicated region
    $region42: #{tpu_custom_call.1} parent=1 // pred_check
      _
    $region43: #{tpu_custom_call.1} parent=1 // pred_check_branch
      %95 = sbr.rel (0) target = $region45
    $region44: #{tpu_custom_call.1} parent=1 // pred_region
      _
    $region45: #{tpu_custom_call.1} parent=1 // pred_fallthru
      _
    // Predicated region
    $region46: #{tpu_custom_call.1} parent=1 // pred_check
      _
    $region47: #{tpu_custom_call.1} parent=1 // pred_check_branch
      %97 = sbr.rel (0) target = $region49
    $region48: #{tpu_custom_call.1} parent=1 // pred_region
      _
    $region49: #{tpu_custom_call.1} parent=1 // pred_fallthru
      _
    // Predicated region
    $region50: #{tpu_custom_call.1} parent=1 // pred_check
      _
    $region51: #{tpu_custom_call.1} parent=1 // pred_check_branch
      %99 = sbr.rel (0) target = $region53
    $region52: #{tpu_custom_call.1} parent=1 // pred_region
      _
    $region53: #{tpu_custom_call.1} parent=1 // pred_fallthru
      _
    // Predicated region
    $region54: #{tpu_custom_call.1} parent=1 // pred_check
      _
    $region55: #{tpu_custom_call.1} parent=1 // pred_check_branch
      %101 = sbr.rel (0) target = $region57
    $region56: #{tpu_custom_call.1} parent=1 // pred_region
      _
    $region57: #{tpu_custom_call.1} parent=1 // pred_fallthru
      _
    // Predicated region
    $region58: #{tpu_custom_call.1} parent=1 // pred_check
      _
    $region59: #{tpu_custom_call.1} parent=1 // pred_check_branch
      %103 = sbr.rel (0) target = $region61
    $region60: #{tpu_custom_call.1} parent=1 // pred_region
      _
    $region61: #{tpu_custom_call.1} parent=1 // pred_fallthru
      _
    // Predicated region
    $region62: #{tpu_custom_call.1} parent=1 // pred_check
      _
    $region63: #{tpu_custom_call.1} parent=1 // pred_check_branch
      %105 = sbr.rel (0) target = $region65
    $region64: #{tpu_custom_call.1} parent=1 // pred_region
      _
    $region65: #{tpu_custom_call.1} parent=1 // pred_fallthru
      _
    // Predicated region
    $region66: #{tpu_custom_call.1} parent=1 // pred_check
      _
    $region67: #{tpu_custom_call.1} parent=1 // pred_check_branch
      %107 = sbr.rel (0) target = $region69
    $region68: #{tpu_custom_call.1} parent=1 // pred_region
      _
    $region69: #{tpu_custom_call.1} parent=1 // pred_fallthru
      _
    // Predicated region
    $region70: #{tpu_custom_call.1} parent=1 // pred_check
      _
    $region71: #{tpu_custom_call.1} parent=1 // pred_check_branch
      %109 = sbr.rel (0) target = $region73
    $region72: #{tpu_custom_call.1} parent=1 // pred_region
      %110 = dma.done [#allocation3], 512
    $region73: #{tpu_custom_call.1} parent=1 // pred_fallthru
      _
    // Predicated region
    $region74: #{tpu_custom_call.1} parent=1 // pred_check
      _
    $region75: #{tpu_custom_call.1} parent=1 // pred_check_branch
      %112 = sbr.rel (0) target = $region77
    $region76: #{tpu_custom_call.1} parent=1 // pred_region
      %113 = dma.done [#allocation6], 512
    $region77: #{tpu_custom_call.1} parent=1 // pred_fallthru
      _
    // Predicated region
    $region78: #{tpu_custom_call.1} parent=1 // pred_check
      _
    $region79: #{tpu_custom_call.1} parent=1 // pred_check_branch
      %115 = sbr.rel (0) target = $region81
    $region80: #{tpu_custom_call.1} parent=1 // pred_region
      %116 = dma.done [#allocation6], 16
    $region81: #{tpu_custom_call.1} parent=1 // pred_fallthru
      _
    // Predicated region
    $region82: #{tpu_custom_call.1} parent=1 // pred_check
      _
    $region83: #{tpu_custom_call.1} parent=1 // pred_check_branch
      %118 = sbr.rel (0) target = $region85
    $region84: #{tpu_custom_call.1} parent=1 // pred_region
      %119 = dma.done [#allocation9], 4096
    $region85: #{tpu_custom_call.1} parent=1 // pred_fallthru
      _
    // Predicated region
    $region86: #{tpu_custom_call.1} parent=1 // pred_check
      _
    $region87: #{tpu_custom_call.1} parent=1 // pred_check_branch
      %121 = sbr.rel (0) target = $region89
    $region88: #{tpu_custom_call.1} parent=1 // pred_region
      %122 = dma.done [#allocation9], 64
    $region89: #{tpu_custom_call.1} parent=1 // pred_fallthru
      _
    %v123 = vld [vmem:[%s0] sm:$0xff]
    %v124 = vld [vmem:[%s0 + $0x8] sm:$0xff]
    %v125 = vld [vmem:[%s1] sm:$0xff]
    %v126 = vld [vmem:[#allocation5] sm:$0xff]
    %v127 = vld [vmem:[#allocation5 + $0x8] sm:$0xff]
    %v128 = vld [vmem:[#allocation5 + $0x10] sm:$0xff]
    %v129 = vld [vmem:[#allocation5 + $0x18] sm:$0xff]
    %vm130 = vcmask 261120
    %v132 = vsel %vm130, %v125, 0
    %134 = vmatprep.subr.mxu0 0.0
    %135 = vmatpush1.msra.mxu0 %v126
    %136 = vmatprep.subr.mxu0 0.0
    %137 = vmatpush1.msra.mxu0 %v127
    %138 = vmatprep.subr.mxu0 0.0
    %139 = vmatpush1.msra.mxu0 %v128
    %140 = vmatprep.subr.mxu0 0.0
    %141 = vmatpush1.msra.mxu0 %v129
    %142 = vmatprep.subr.mxu0 0.0
    %143 = vmatpush1.msra.mxu0 0.0
    %144 = vmatprep.subr.mxu0 0.0
    %145 = vmatpush1.msra.mxu0 0.0
    %146 = vmatprep.subr.mxu0 0.0
    %147 = vmatpush1.msra.mxu0 0.0
    %148 = vmatprep.subr.mxu0 0.0
    %149 = vmatpush1.msra.mxu0 0.0
    %150 = vmatprep.subr.mxu0 0.0
    %151 = vmatpush1.msra.mxu0 0.0
    %152 = vmatprep.subr.mxu0 0.0
    %153 = vmatpush1.msra.mxu0 0.0
    %154 = vmatprep.subr.mxu0 0.0
    %155 = vmatpush1.msra.mxu0 0.0
    %156 = vmatprep.subr.mxu0 0.0
    %157 = vmatpush1.msra.mxu0 0.0
    %158 = vmatprep.subr.mxu0 0.0
    %159 = vmatpush1.msra.mxu0 0.0
    %160 = vmatprep.subr.mxu0 0.0
    %161 = vmatpush1.msra.mxu0 0.0
    %162 = vmatprep.subr.mxu0 0.0
    %163 = vmatpush1.msra.mxu0 0.0
    %164 = vmatprep.subr.mxu0 0.0
    %165 = vmatpush1.msra.mxu0 0.0
    %166 = vmatprep.subr.mxu0 0.0
    %167 = vmatpush1.msra.mxu0 0.0
    %168 = vmatprep.subr.mxu0 0.0
    %169 = vmatpush1.msra.mxu0 0.0
    %170 = vmatprep.subr.mxu0 0.0
    %171 = vmatpush1.msra.mxu0 0.0
    %172 = vmatprep.subr.mxu0 0.0
    %173 = vmatpush1.msra.mxu0 0.0
    %174 = vmatprep.subr.mxu0 0.0
    %175 = vmatpush1.msra.mxu0 0.0
    %176 = vmatprep.subr.mxu0 0.0
    %177 = vmatpush1.msra.mxu0 0.0
    %178 = vmatprep.subr.mxu0 0.0
    %179 = vmatpush1.msra.mxu0 0.0
    %180 = vmatprep.subr.mxu0 0.0
    %181 = vmatpush1.msra.mxu0 0.0
    %182 = vmatprep.subr.mxu0 0.0
    %183 = vmatpush1.msra.mxu0 0.0
    %184 = vmatprep.subr.mxu0 0.0
    %185 = vmatpush1.msra.mxu0 0.0
    %186 = vmatprep.subr.mxu0 0.0
    %187 = vmatpush1.msra.mxu0 0.0
    %188 = vmatprep.subr.mxu0 0.0
    %189 = vmatpush1.msra.mxu0 0.0
    %190 = vmatprep.subr.mxu0 0.0
    %191 = vmatpush1.msra.mxu0 0.0
    %192 = vmatprep.subr.mxu0 0.0
    %193 = vmatpush1.msra.mxu0 0.0
    %194 = vmatprep.subr.mxu0 0.0
    %195 = vmatpush1.msra.mxu0 0.0
    %196 = vmatprep.subr.mxu0 0.0
    %197 = vmatpush1.msra.mxu0 0.0
    %198 = vmatprep.mubr.f32.mxu0 0.0
    %199 = vmatmul.mubr.f32.gmra.mrb[0].mxu0 %v132
    %v200 = vpop.f32.mrb[0].mxu0
    %v201 = vadd.f32 0.0, %v200
    %v202 = vpop.f32.mrb[0].mxu0
    %203 = vdwg.mxu0
    %v204 = vld [vmem:[#allocation2] sm:$0xff]
    %v205 = vld [vmem:[#allocation2 + $0x8] sm:$0xff]
    %v206 = vld [vmem:[#allocation2 + $0x10] sm:$0xff]
    %v207 = vld [vmem:[#allocation2 + $0x18] sm:$0xff]
    %v209 = vsel %vm130, %v123, 0
    %v212 = vsel %vm130, %v124, 0
    %214 = vmatprep.subr.mxu0 0.0
    %215 = vmatpush1.msra.mxu0 %v204
    %216 = vmatprep.subr.mxu0 0.0
    %217 = vmatpush1.msra.mxu0 %v205
    %218 = vmatprep.subr.mxu0 0.0
    %219 = vmatpush1.msra.mxu0 %v206
    %220 = vmatprep.subr.mxu0 0.0
    %221 = vmatpush1.msra.mxu0 %v207
    %222 = vmatprep.subr.mxu0 0.0
    %223 = vmatpush1.msra.mxu0 0.0
    %224 = vmatprep.subr.mxu0 0.0
    %225 = vmatpush1.msra.mxu0 0.0
    %226 = vmatprep.subr.mxu0 0.0
    %227 = vmatpush1.msra.mxu0 0.0
    %228 = vmatprep.subr.mxu0 0.0
    %229 = vmatpush1.msra.mxu0 0.0
    %230 = vmatprep.subr.mxu0 0.0
    %231 = vmatpush1.msra.mxu0 0.0
    %232 = vmatprep.subr.mxu0 0.0
    %233 = vmatpush1.msra.mxu0 0.0
    %234 = vmatprep.subr.mxu0 0.0
    %235 = vmatpush1.msra.mxu0 0.0
    %236 = vmatprep.subr.mxu0 0.0
    %237 = vmatpush1.msra.mxu0 0.0
    %238 = vmatprep.subr.mxu0 0.0
    %239 = vmatpush1.msra.mxu0 0.0
    %240 = vmatprep.subr.mxu0 0.0
    %241 = vmatpush1.msra.mxu0 0.0
    %242 = vmatprep.subr.mxu0 0.0
    %243 = vmatpush1.msra.mxu0 0.0
    %244 = vmatprep.subr.mxu0 0.0
    %245 = vmatpush1.msra.mxu0 0.0
    %246 = vmatprep.subr.mxu0 0.0
    %247 = vmatpush1.msra.mxu0 0.0
    %248 = vmatprep.subr.mxu0 0.0
    %249 = vmatpush1.msra.mxu0 0.0
    %250 = vmatprep.subr.mxu0 0.0
    %251 = vmatpush1.msra.mxu0 0.0
    %252 = vmatprep.subr.mxu0 0.0
    %253 = vmatpush1.msra.mxu0 0.0
    %254 = vmatprep.subr.mxu0 0.0
    %255 = vmatpush1.msra.mxu0 0.0
    %256 = vmatprep.subr.mxu0 0.0
    %257 = vmatpush1.msra.mxu0 0.0
    %258 = vmatprep.subr.mxu0 0.0
    %259 = vmatpush1.msra.mxu0 0.0
    %260 = vmatprep.subr.mxu0 0.0
    %261 = vmatpush1.msra.mxu0 0.0
    %262 = vmatprep.subr.mxu0 0.0
    %263 = vmatpush1.msra.mxu0 0.0
    %264 = vmatprep.subr.mxu0 0.0
    %265 = vmatpush1.msra.mxu0 0.0
    %266 = vmatprep.subr.mxu0 0.0
    %267 = vmatpush1.msra.mxu0 0.0
    %268 = vmatprep.subr.mxu0 0.0
    %269 = vmatpush1.msra.mxu0 0.0
    %270 = vmatprep.subr.mxu0 0.0
    %271 = vmatpush1.msra.mxu0 0.0
    %272 = vmatprep.subr.mxu0 0.0
    %273 = vmatpush1.msra.mxu0 0.0
    %274 = vmatprep.subr.mxu0 0.0
    %275 = vmatpush1.msra.mxu0 0.0
    %276 = vmatprep.subr.mxu0 0.0
    %277 = vmatpush1.msra.mxu0 0.0
    %278 = vmatprep.mubr.f32.mxu0 0.0
    %279 = vmatmul.mubr.f32.gmra.mrb[0].mxu0 %v209
    %v280 = vpop.f32.mrb[0].mxu0
    %v281 = vadd.f32 %v201, %v280
    %v282 = vpop.f32.mrb[0].mxu0
    %283 = vmatprep.mubr.f32.mxu0 0.0
    %284 = vmatmul.mubr.f32.gmra.mrb[0].mxu0 %v212
    %v285 = vpop.f32.mrb[0].mxu0
    %v286 = vadd.f32 %v201, %v285
    %v287 = vpop.f32.mrb[0].mxu0
    %288 = vdwg.mxu0
    %v289 = vld [vmem:[#allocation7] sm:$0x1]
    %v291 = vlaneseq
    %v292 = vshrl.u32 %v291, 7
    %v293 = vsub.s32 0, %v292
    %v294 = vrot.slane %v289, %v293
    %v296 = vadd.f32 %v281, %v294
    %v297 = vadd.f32 %v286, %v294
    %v298 = vld [vmem:[#allocation8] sm:$0xff]
    %v299 = vld [vmem:[#allocation8 + $0x8] sm:$0xff]
    %v300 = vld [vmem:[#allocation8 + $0x10] sm:$0xff]
    %v301 = vld [vmem:[#allocation8 + $0x18] sm:$0xff]
    %v302 = vld [vmem:[#allocation8 + $0x20] sm:$0xff]
    %v303 = vld [vmem:[#allocation8 + $0x28] sm:$0xff]
    %v304 = vld [vmem:[#allocation8 + $0x30] sm:$0xff]
    %v305 = vld [vmem:[#allocation8 + $0x38] sm:$0xff]
    %v306 = vld [vmem:[#allocation8 + $0x40] sm:$0xff]
    %v307 = vld [vmem:[#allocation8 + $0x48] sm:$0xff]
    %v308 = vld [vmem:[#allocation8 + $0x50] sm:$0xff]
    %v309 = vld [vmem:[#allocation8 + $0x58] sm:$0xff]
    %v310 = vld [vmem:[#allocation8 + $0x60] sm:$0xff]
    %v311 = vld [vmem:[#allocation8 + $0x68] sm:$0xff]
    %v312 = vld [vmem:[#allocation8 + $0x70] sm:$0xff]
    %v313 = vld [vmem:[#allocation8 + $0x78] sm:$0xff]
    %v314 = vld [vmem:[#allocation10] sm:$0x3]
    %v316 = vlaneseq
    %v317 = vshrl.u32 %v316, 7
    %v318 = vsub.s32 0, %v317
    %v319 = vrot.slane %v314, %v318
    %v320 = vlaneseq
    %v321 = vshrl.u32 %v320, 7
    %v322 = vsub.s32 1, %v321
    %v323 = vrot.slane %v314, %v322
    %vm326 = vcmask 523264
    %v328 = vsel %vm326, %v296, 0
    %v331 = vsel %vm326, %v297, 0
    %333 = vmatprep.subr.mxu0 %v299
    %334 = vmatpush1.msra.mxu0 %v298
    %335 = vmatprep.subr.mxu0 %v301
    %336 = vmatpush1.msra.mxu0 %v300
    %337 = vmatprep.subr.mxu0 %v303
    %338 = vmatpush1.msra.mxu0 %v302
    %339 = vmatprep.subr.mxu0 %v305
    %340 = vmatpush1.msra.mxu0 %v304
    %341 = vmatprep.subr.mxu0 %v307
    %342 = vmatpush1.msra.mxu0 %v306
    %343 = vmatprep.subr.mxu0 %v309
    %344 = vmatpush1.msra.mxu0 %v308
    %345 = vmatprep.subr.mxu0 %v311
    %346 = vmatpush1.msra.mxu0 %v310
    %347 = vmatprep.subr.mxu0 %v313
    %348 = vmatpush1.msra.mxu0 %v312
    %349 = vmatprep.subr.mxu0 0.0
    %350 = vmatpush1.msra.mxu0 0.0
    %351 = vmatprep.subr.mxu0 0.0
    %352 = vmatpush1.msra.mxu0 0.0
    %353 = vmatprep.subr.mxu0 0.0
    %354 = vmatpush1.msra.mxu0 0.0
    %355 = vmatprep.subr.mxu0 0.0
    %356 = vmatpush1.msra.mxu0 0.0
    %357 = vmatprep.subr.mxu0 0.0
    %358 = vmatpush1.msra.mxu0 0.0
    %359 = vmatprep.subr.mxu0 0.0
    %360 = vmatpush1.msra.mxu0 0.0
    %361 = vmatprep.subr.mxu0 0.0
    %362 = vmatpush1.msra.mxu0 0.0
    %363 = vmatprep.subr.mxu0 0.0
    %364 = vmatpush1.msra.mxu0 0.0
    %365 = vmatprep.subr.mxu0 0.0
    %366 = vmatpush1.msra.mxu0 0.0
    %367 = vmatprep.subr.mxu0 0.0
    %368 = vmatpush1.msra.mxu0 0.0
    %369 = vmatprep.subr.mxu0 0.0
    %370 = vmatpush1.msra.mxu0 0.0
    %371 = vmatprep.subr.mxu0 0.0
    %372 = vmatpush1.msra.mxu0 0.0
    %373 = vmatprep.subr.mxu0 0.0
    %374 = vmatpush1.msra.mxu0 0.0
    %375 = vmatprep.subr.mxu0 0.0
    %376 = vmatpush1.msra.mxu0 0.0
    %377 = vmatprep.subr.mxu0 0.0
    %378 = vmatpush1.msra.mxu0 0.0
    %379 = vmatprep.subr.mxu0 0.0
    %380 = vmatpush1.msra.mxu0 0.0
    %381 = vmatprep.subr.mxu0 0.0
    %382 = vmatpush1.msra.mxu0 0.0
    %383 = vmatprep.subr.mxu0 0.0
    %384 = vmatpush1.msra.mxu0 0.0
    %385 = vmatprep.subr.mxu0 0.0
    %386 = vmatpush1.msra.mxu0 0.0
    %387 = vmatprep.subr.mxu0 0.0
    %388 = vmatpush1.msra.mxu0 0.0
    %389 = vmatprep.subr.mxu0 0.0
    %390 = vmatpush1.msra.mxu0 0.0
    %391 = vmatprep.subr.mxu0 0.0
    %392 = vmatpush1.msra.mxu0 0.0
    %393 = vmatprep.subr.mxu0 0.0
    %394 = vmatpush1.msra.mxu0 0.0
    %395 = vmatprep.subr.mxu0 0.0
    %396 = vmatpush1.msra.mxu0 0.0
    %397 = vmatprep.mubr.f32.mxu0 0.0
    %398 = vmatmul.mubr.f32.gmra.mrb[0].mxu0 %v328
    %v399 = vpop.f32.mrb[0].mxu0
    %v400 = vadd.f32 %v319, %v399
    %v401 = vpop.f32.mrb[0].mxu0
    %v402 = vadd.f32 %v323, %v401
    %403 = vmatprep.mubr.f32.mxu0 0.0
    %404 = vmatmul.mubr.f32.gmra.mrb[0].mxu0 %v331
    %v405 = vpop.f32.mrb[0].mxu0
    %v406 = vadd.f32 %v319, %v405
    %v407 = vpop.f32.mrb[0].mxu0
    %v408 = vadd.f32 %v323, %v407
    %409 = vdwg.mxu0
    %411 = vrot.lane.b32.xlu0 %v400, 64
    %v412 = vpop.permute.xlu0 %411
    %vm413 = vcmask 130048
    %v414 = vsel %vm413, %v400, 0
    %v416 = vsel %vm413, %v412, 0
    %418 = vmatprep.subr.mxu0 0.0
    %419 = vmatpush1.xpose.msra.mxu0 %v416
    %420 = vmatprep.subr.mxu0 0.0
    %421 = vmatpush1.xpose.msra.mxu0 0.0
    %422 = vmatprep.subr.mxu0 0.0
    %423 = vmatpush1.xpose.msra.mxu0 0.0
    %424 = vmatprep.subr.mxu0 0.0
    %425 = vmatpush1.xpose.msra.mxu0 0.0
    %426 = vmatprep.subr.mxu0 0.0
    %427 = vmatpush1.xpose.msra.mxu0 0.0
    %428 = vmatprep.subr.mxu0 0.0
    %429 = vmatpush1.xpose.msra.mxu0 0.0
    %430 = vmatprep.subr.mxu0 0.0
    %431 = vmatpush1.xpose.msra.mxu0 0.0
    %432 = vmatprep.subr.mxu0 0.0
    %433 = vmatpush1.xpose.msra.mxu0 0.0
    %434 = vmatprep.subr.mxu0 0.0
    %435 = vmatpush1.xpose.msra.mxu0 0.0
    %436 = vmatprep.subr.mxu0 0.0
    %437 = vmatpush1.xpose.msra.mxu0 0.0
    %438 = vmatprep.subr.mxu0 0.0
    %439 = vmatpush1.xpose.msra.mxu0 0.0
    %440 = vmatprep.subr.mxu0 0.0
    %441 = vmatpush1.xpose.msra.mxu0 0.0
    %442 = vmatprep.subr.mxu0 0.0
    %443 = vmatpush1.xpose.msra.mxu0 0.0
    %444 = vmatprep.subr.mxu0 0.0
    %445 = vmatpush1.xpose.msra.mxu0 0.0
    %446 = vmatprep.subr.mxu0 0.0
    %447 = vmatpush1.xpose.msra.mxu0 0.0
    %448 = vmatprep.subr.mxu0 0.0
    %449 = vmatpush1.xpose.msra.mxu0 0.0
    %450 = vmatprep.subr.mxu0 0.0
    %451 = vmatpush1.xpose.msra.mxu0 0.0
    %452 = vmatprep.subr.mxu0 0.0
    %453 = vmatpush1.xpose.msra.mxu0 0.0
    %454 = vmatprep.subr.mxu0 0.0
    %455 = vmatpush1.xpose.msra.mxu0 0.0
    %456 = vmatprep.subr.mxu0 0.0
    %457 = vmatpush1.xpose.msra.mxu0 0.0
    %458 = vmatprep.subr.mxu0 0.0
    %459 = vmatpush1.xpose.msra.mxu0 0.0
    %460 = vmatprep.subr.mxu0 0.0
    %461 = vmatpush1.xpose.msra.mxu0 0.0
    %462 = vmatprep.subr.mxu0 0.0
    %463 = vmatpush1.xpose.msra.mxu0 0.0
    %464 = vmatprep.subr.mxu0 0.0
    %465 = vmatpush1.xpose.msra.mxu0 0.0
    %466 = vmatprep.subr.mxu0 0.0
    %467 = vmatpush1.xpose.msra.mxu0 0.0
    %468 = vmatprep.subr.mxu0 0.0
    %469 = vmatpush1.xpose.msra.mxu0 0.0
    %470 = vmatprep.subr.mxu0 0.0
    %471 = vmatpush1.xpose.msra.mxu0 0.0
    %472 = vmatprep.subr.mxu0 0.0
    %473 = vmatpush1.xpose.msra.mxu0 0.0
    %474 = vmatprep.subr.mxu0 0.0
    %475 = vmatpush1.xpose.msra.mxu0 0.0
    %476 = vmatprep.subr.mxu0 0.0
    %477 = vmatpush1.xpose.msra.mxu0 0.0
    %478 = vmatprep.subr.mxu0 0.0
    %479 = vmatpush1.xpose.msra.mxu0 0.0
    %480 = vmatprep.subr.mxu0 0.0
    %481 = vmatpush1.xpose.msra.mxu0 0.0
    %482 = vmatprep.mubr.f32.mxu0 0.0
    %483 = vmatmul.mubr.f32.gmra.mrb[0].mxu0 %v414
    %v484 = vpop.f32.mrb[0].mxu0
    %v485 = vadd.f32 0.0, %v484
    %v486 = vpop.f32.mrb[0].mxu0
    %487 = vdwg.mxu0
    %489 = vrot.lane.b32.xlu0 %v406, 64
    %v490 = vpop.permute.xlu0 %489
    %v491 = vsel %vm413, %v406, 0
    %v493 = vsel %vm413, %v490, 0
    %495 = vmatprep.subr.mxu0 0.0
    %496 = vmatpush1.xpose.msra.mxu0 %v493
    %497 = vmatprep.subr.mxu0 0.0
    %498 = vmatpush1.xpose.msra.mxu0 0.0
    %499 = vmatprep.subr.mxu0 0.0
    %500 = vmatpush1.xpose.msra.mxu0 0.0
    %501 = vmatprep.subr.mxu0 0.0
    %502 = vmatpush1.xpose.msra.mxu0 0.0
    %503 = vmatprep.subr.mxu0 0.0
    %504 = vmatpush1.xpose.msra.mxu0 0.0
    %505 = vmatprep.subr.mxu0 0.0
    %506 = vmatpush1.xpose.msra.mxu0 0.0
    %507 = vmatprep.subr.mxu0 0.0
    %508 = vmatpush1.xpose.msra.mxu0 0.0
    %509 = vmatprep.subr.mxu0 0.0
    %510 = vmatpush1.xpose.msra.mxu0 0.0
    %511 = vmatprep.subr.mxu0 0.0
    %512 = vmatpush1.xpose.msra.mxu0 0.0
    %513 = vmatprep.subr.mxu0 0.0
    %514 = vmatpush1.xpose.msra.mxu0 0.0
    %515 = vmatprep.subr.mxu0 0.0
    %516 = vmatpush1.xpose.msra.mxu0 0.0
    %517 = vmatprep.subr.mxu0 0.0
    %518 = vmatpush1.xpose.msra.mxu0 0.0
    %519 = vmatprep.subr.mxu0 0.0
    %520 = vmatpush1.xpose.msra.mxu0 0.0
    %521 = vmatprep.subr.mxu0 0.0
    %522 = vmatpush1.xpose.msra.mxu0 0.0
    %523 = vmatprep.subr.mxu0 0.0
    %524 = vmatpush1.xpose.msra.mxu0 0.0
    %525 = vmatprep.subr.mxu0 0.0
    %526 = vmatpush1.xpose.msra.mxu0 0.0
    %527 = vmatprep.subr.mxu0 0.0
    %528 = vmatpush1.xpose.msra.mxu0 0.0
    %529 = vmatprep.subr.mxu0 0.0
    %530 = vmatpush1.xpose.msra.mxu0 0.0
    %531 = vmatprep.subr.mxu0 0.0
    %532 = vmatpush1.xpose.msra.mxu0 0.0
    %533 = vmatprep.subr.mxu0 0.0
    %534 = vmatpush1.xpose.msra.mxu0 0.0
    %535 = vmatprep.subr.mxu0 0.0
    %536 = vmatpush1.xpose.msra.mxu0 0.0
    %537 = vmatprep.subr.mxu0 0.0
    %538 = vmatpush1.xpose.msra.mxu0 0.0
    %539 = vmatprep.subr.mxu0 0.0
    %540 = vmatpush1.xpose.msra.mxu0 0.0
    %541 = vmatprep.subr.mxu0 0.0
    %542 = vmatpush1.xpose.msra.mxu0 0.0
    %543 = vmatprep.subr.mxu0 0.0
    %544 = vmatpush1.xpose.msra.mxu0 0.0
    %545 = vmatprep.subr.mxu0 0.0
    %546 = vmatpush1.xpose.msra.mxu0 0.0
    %547 = vmatprep.subr.mxu0 0.0
    %548 = vmatpush1.xpose.msra.mxu0 0.0
    %549 = vmatprep.subr.mxu0 0.0
    %550 = vmatpush1.xpose.msra.mxu0 0.0
    %551 = vmatprep.subr.mxu0 0.0
    %552 = vmatpush1.xpose.msra.mxu0 0.0
    %553 = vmatprep.subr.mxu0 0.0
    %554 = vmatpush1.xpose.msra.mxu0 0.0
    %555 = vmatprep.subr.mxu0 0.0
    %556 = vmatpush1.xpose.msra.mxu0 0.0
    %557 = vmatprep.subr.mxu0 0.0
    %558 = vmatpush1.xpose.msra.mxu0 0.0
    %559 = vmatprep.mubr.f32.mxu0 0.0
    %560 = vmatmul.mubr.f32.gmra.mrb[0].mxu0 %v491
    %v561 = vpop.f32.mrb[0].mxu0
    %v562 = vadd.f32 0.0, %v561
    %v563 = vpop.f32.mrb[0].mxu0
    %564 = vdwg.mxu0
    %vm565 = vcmask 64512
    %v566 = vsel %vm565, %v485, -inf
    %567 = vmax.xlane.f32.xlu0 %v566
    %v568 = vpop.xlane.xlu0 %567
    %v569 = vsel %vm565, %v562, -inf
    %570 = vmax.xlane.f32.xlu0 %v569
    %v571 = vpop.xlane.xlu0 %570
    %v572 = vsub.f32 %v485, %v568
    %v573 = vsub.f32 %v562, %v571
    %v574 = vmul.f32 %v572, 1.442695
    %v575 = vpow.pop %v574
    %v576 = vmul.f32 %v573, 1.442695
    %v577 = vpow.pop %v576
    %v578 = vsel %vm565, %v575, 0.0
    %579 = vadd.xlane.f32.xlu0 %v578
    %v580 = vpop.xlane.xlu0 %579
    %v581 = vsel %vm565, %v577, 0.0
    %582 = vadd.xlane.f32.xlu0 %v581
    %v583 = vpop.xlane.xlu0 %582
    %v584 = vrcp.pop %v580
    %v585 = vrcp.pop %v583
    %v586 = vmul.f32 %v575, %v584
    %v587 = vmul.f32 %v577, %v585
    %v589 = vsel %vm565, %v586, 0
    %591 = vmatprep.subr.mxu0 0.0
    %592 = vmatpush1.msra.mxu0 %v402
    %593 = vmatprep.subr.mxu0 0.0
    %594 = vmatpush1.msra.mxu0 0.0
    %595 = vmatprep.subr.mxu0 0.0
    %596 = vmatpush1.msra.mxu0 0.0
    %597 = vmatprep.subr.mxu0 0.0
    %598 = vmatpush1.msra.mxu0 0.0
    %599 = vmatprep.subr.mxu0 0.0
    %600 = vmatpush1.msra.mxu0 0.0
    %601 = vmatprep.subr.mxu0 0.0
    %602 = vmatpush1.msra.mxu0 0.0
    %603 = vmatprep.subr.mxu0 0.0
    %604 = vmatpush1.msra.mxu0 0.0
    %605 = vmatprep.subr.mxu0 0.0
    %606 = vmatpush1.msra.mxu0 0.0
    %607 = vmatprep.subr.mxu0 0.0
    %608 = vmatpush1.msra.mxu0 0.0
    %609 = vmatprep.subr.mxu0 0.0
    %610 = vmatpush1.msra.mxu0 0.0
    %611 = vmatprep.subr.mxu0 0.0
    %612 = vmatpush1.msra.mxu0 0.0
    %613 = vmatprep.subr.mxu0 0.0
    %614 = vmatpush1.msra.mxu0 0.0
    %615 = vmatprep.subr.mxu0 0.0
    %616 = vmatpush1.msra.mxu0 0.0
    %617 = vmatprep.subr.mxu0 0.0
    %618 = vmatpush1.msra.mxu0 0.0
    %619 = vmatprep.subr.mxu0 0.0
    %620 = vmatpush1.msra.mxu0 0.0
    %621 = vmatprep.subr.mxu0 0.0
    %622 = vmatpush1.msra.mxu0 0.0
    %623 = vmatprep.subr.mxu0 0.0
    %624 = vmatpush1.msra.mxu0 0.0
    %625 = vmatprep.subr.mxu0 0.0
    %626 = vmatpush1.msra.mxu0 0.0
    %627 = vmatprep.subr.mxu0 0.0
    %628 = vmatpush1.msra.mxu0 0.0
    %629 = vmatprep.subr.mxu0 0.0
    %630 = vmatpush1.msra.mxu0 0.0
    %631 = vmatprep.subr.mxu0 0.0
    %632 = vmatpush1.msra.mxu0 0.0
    %633 = vmatprep.subr.mxu0 0.0
    %634 = vmatpush1.msra.mxu0 0.0
    %635 = vmatprep.subr.mxu0 0.0
    %636 = vmatpush1.msra.mxu0 0.0
    %637 = vmatprep.subr.mxu0 0.0
    %638 = vmatpush1.msra.mxu0 0.0
    %639 = vmatprep.subr.mxu0 0.0
    %640 = vmatpush1.msra.mxu0 0.0
    %641 = vmatprep.subr.mxu0 0.0
    %642 = vmatpush1.msra.mxu0 0.0
    %643 = vmatprep.subr.mxu0 0.0
    %644 = vmatpush1.msra.mxu0 0.0
    %645 = vmatprep.subr.mxu0 0.0
    %646 = vmatpush1.msra.mxu0 0.0
    %647 = vmatprep.subr.mxu0 0.0
    %648 = vmatpush1.msra.mxu0 0.0
    %649 = vmatprep.subr.mxu0 0.0
    %650 = vmatpush1.msra.mxu0 0.0
    %651 = vmatprep.subr.mxu0 0.0
    %652 = vmatpush1.msra.mxu0 0.0
    %653 = vmatprep.subr.mxu0 0.0
    %654 = vmatpush1.msra.mxu0 0.0
    %655 = vmatprep.mubr.f32.mxu0 0.0
    %656 = vmatmul.mubr.f32.gmra.mrb[0].mxu0 %v589
    %v657 = vpop.f32.mrb[0].mxu0
    %v658 = vadd.f32 0.0, %v657
    %v659 = vpop.f32.mrb[0].mxu0
    %660 = vdwg.mxu0
    %v662 = vsel %vm565, %v587, 0
    %664 = vmatprep.subr.mxu0 0.0
    %665 = vmatpush1.msra.mxu0 %v408
    %666 = vmatprep.subr.mxu0 0.0
    %667 = vmatpush1.msra.mxu0 0.0
    %668 = vmatprep.subr.mxu0 0.0
    %669 = vmatpush1.msra.mxu0 0.0
    %670 = vmatprep.subr.mxu0 0.0
    %671 = vmatpush1.msra.mxu0 0.0
    %672 = vmatprep.subr.mxu0 0.0
    %673 = vmatpush1.msra.mxu0 0.0
    %674 = vmatprep.subr.mxu0 0.0
    %675 = vmatpush1.msra.mxu0 0.0
    %676 = vmatprep.subr.mxu0 0.0
    %677 = vmatpush1.msra.mxu0 0.0
    %678 = vmatprep.subr.mxu0 0.0
    %679 = vmatpush1.msra.mxu0 0.0
    %680 = vmatprep.subr.mxu0 0.0
    %681 = vmatpush1.msra.mxu0 0.0
    %682 = vmatprep.subr.mxu0 0.0
    %683 = vmatpush1.msra.mxu0 0.0
    %684 = vmatprep.subr.mxu0 0.0
    %685 = vmatpush1.msra.mxu0 0.0
    %686 = vmatprep.subr.mxu0 0.0
    %687 = vmatpush1.msra.mxu0 0.0
    %688 = vmatprep.subr.mxu0 0.0
    %689 = vmatpush1.msra.mxu0 0.0
    %690 = vmatprep.subr.mxu0 0.0
    %691 = vmatpush1.msra.mxu0 0.0
    %692 = vmatprep.subr.mxu0 0.0
    %693 = vmatpush1.msra.mxu0 0.0
    %694 = vmatprep.subr.mxu0 0.0
    %695 = vmatpush1.msra.mxu0 0.0
    %696 = vmatprep.subr.mxu0 0.0
    %697 = vmatpush1.msra.mxu0 0.0
    %698 = vmatprep.subr.mxu0 0.0
    %699 = vmatpush1.msra.mxu0 0.0
    %700 = vmatprep.subr.mxu0 0.0
    %701 = vmatpush1.msra.mxu0 0.0
    %702 = vmatprep.subr.mxu0 0.0
    %703 = vmatpush1.msra.mxu0 0.0
    %704 = vmatprep.subr.mxu0 0.0
    %705 = vmatpush1.msra.mxu0 0.0
    %706 = vmatprep.subr.mxu0 0.0
    %707 = vmatpush1.msra.mxu0 0.0
    %708 = vmatprep.subr.mxu0 0.0
    %709 = vmatpush1.msra.mxu0 0.0
    %710 = vmatprep.subr.mxu0 0.0
    %711 = vmatpush1.msra.mxu0 0.0
    %712 = vmatprep.subr.mxu0 0.0
    %713 = vmatpush1.msra.mxu0 0.0
    %714 = vmatprep.subr.mxu0 0.0
    %715 = vmatpush1.msra.mxu0 0.0
    %716 = vmatprep.subr.mxu0 0.0
    %717 = vmatpush1.msra.mxu0 0.0
    %718 = vmatprep.subr.mxu0 0.0
    %719 = vmatpush1.msra.mxu0 0.0
    %720 = vmatprep.subr.mxu0 0.0
    %721 = vmatpush1.msra.mxu0 0.0
    %722 = vmatprep.subr.mxu0 0.0
    %723 = vmatpush1.msra.mxu0 0.0
    %724 = vmatprep.subr.mxu0 0.0
    %725 = vmatpush1.msra.mxu0 0.0
    %726 = vmatprep.subr.mxu0 0.0
    %727 = vmatpush1.msra.mxu0 0.0
    %728 = vmatprep.mubr.f32.mxu0 0.0
    %729 = vmatmul.mubr.f32.gmra.mrb[0].mxu0 %v662
    %v730 = vpop.f32.mrb[0].mxu0
    %v731 = vadd.f32 0.0, %v730
    %v732 = vpop.f32.mrb[0].mxu0
    %733 = vdwg.mxu0
    %734 = vrot.lane.b32.xlu0 %v400, 112
    %v735 = vpop.permute.xlu0 %734
    %736 = vrot.lane.b32.xlu0 %v400, 48
    %v737 = vpop.permute.xlu0 %736
    %v738 = vsel %vm413, %v735, 0
    %v740 = vsel %vm413, %v737, 0
    %742 = vmatprep.subr.mxu0 0.0
    %743 = vmatpush1.xpose.msra.mxu0 %v740
    %744 = vmatprep.subr.mxu0 0.0
    %745 = vmatpush1.xpose.msra.mxu0 0.0
    %746 = vmatprep.subr.mxu0 0.0
    %747 = vmatpush1.xpose.msra.mxu0 0.0
    %748 = vmatprep.subr.mxu0 0.0
    %749 = vmatpush1.xpose.msra.mxu0 0.0
    %750 = vmatprep.subr.mxu0 0.0
    %751 = vmatpush1.xpose.msra.mxu0 0.0
    %752 = vmatprep.subr.mxu0 0.0
    %753 = vmatpush1.xpose.msra.mxu0 0.0
    %754 = vmatprep.subr.mxu0 0.0
    %755 = vmatpush1.xpose.msra.mxu0 0.0
    %756 = vmatprep.subr.mxu0 0.0
    %757 = vmatpush1.xpose.msra.mxu0 0.0
    %758 = vmatprep.subr.mxu0 0.0
    %759 = vmatpush1.xpose.msra.mxu0 0.0
    %760 = vmatprep.subr.mxu0 0.0
    %761 = vmatpush1.xpose.msra.mxu0 0.0
    %762 = vmatprep.subr.mxu0 0.0
    %763 = vmatpush1.xpose.msra.mxu0 0.0
    %764 = vmatprep.subr.mxu0 0.0
    %765 = vmatpush1.xpose.msra.mxu0 0.0
    %766 = vmatprep.subr.mxu0 0.0
    %767 = vmatpush1.xpose.msra.mxu0 0.0
    %768 = vmatprep.subr.mxu0 0.0
    %769 = vmatpush1.xpose.msra.mxu0 0.0
    %770 = vmatprep.subr.mxu0 0.0
    %771 = vmatpush1.xpose.msra.mxu0 0.0
    %772 = vmatprep.subr.mxu0 0.0
    %773 = vmatpush1.xpose.msra.mxu0 0.0
    %774 = vmatprep.subr.mxu0 0.0
    %775 = vmatpush1.xpose.msra.mxu0 0.0
    %776 = vmatprep.subr.mxu0 0.0
    %777 = vmatpush1.xpose.msra.mxu0 0.0
    %778 = vmatprep.subr.mxu0 0.0
    %779 = vmatpush1.xpose.msra.mxu0 0.0
    %780 = vmatprep.subr.mxu0 0.0
    %781 = vmatpush1.xpose.msra.mxu0 0.0
    %782 = vmatprep.subr.mxu0 0.0
    %783 = vmatpush1.xpose.msra.mxu0 0.0
    %784 = vmatprep.subr.mxu0 0.0
    %785 = vmatpush1.xpose.msra.mxu0 0.0
    %786 = vmatprep.subr.mxu0 0.0
    %787 = vmatpush1.xpose.msra.mxu0 0.0
    %788 = vmatprep.subr.mxu0 0.0
    %789 = vmatpush1.xpose.msra.mxu0 0.0
    %790 = vmatprep.subr.mxu0 0.0
    %791 = vmatpush1.xpose.msra.mxu0 0.0
    %792 = vmatprep.subr.mxu0 0.0
    %793 = vmatpush1.xpose.msra.mxu0 0.0
    %794 = vmatprep.subr.mxu0 0.0
    %795 = vmatpush1.xpose.msra.mxu0 0.0
    %796 = vmatprep.subr.mxu0 0.0
    %797 = vmatpush1.xpose.msra.mxu0 0.0
    %798 = vmatprep.subr.mxu0 0.0
    %799 = vmatpush1.xpose.msra.mxu0 0.0
    %800 = vmatprep.subr.mxu0 0.0
    %801 = vmatpush1.xpose.msra.mxu0 0.0
    %802 = vmatprep.subr.mxu0 0.0
    %803 = vmatpush1.xpose.msra.mxu0 0.0
    %804 = vmatprep.subr.mxu0 0.0
    %805 = vmatpush1.xpose.msra.mxu0 0.0
    %806 = vmatprep.mubr.f32.mxu0 0.0
    %807 = vmatmul.mubr.f32.gmra.mrb[0].mxu0 %v738
    %v808 = vpop.f32.mrb[0].mxu0
    %v809 = vadd.f32 0.0, %v808
    %v810 = vpop.f32.mrb[0].mxu0
    %811 = vdwg.mxu0
    %812 = vrot.lane.b32.xlu0 %v406, 112
    %v813 = vpop.permute.xlu0 %812
    %814 = vrot.lane.b32.xlu0 %v406, 48
    %v815 = vpop.permute.xlu0 %814
    %v816 = vsel %vm413, %v813, 0
    %v818 = vsel %vm413, %v815, 0
    %820 = vmatprep.subr.mxu0 0.0
    %821 = vmatpush1.xpose.msra.mxu0 %v818
    %822 = vmatprep.subr.mxu0 0.0
    %823 = vmatpush1.xpose.msra.mxu0 0.0
    %824 = vmatprep.subr.mxu0 0.0
    %825 = vmatpush1.xpose.msra.mxu0 0.0
    %826 = vmatprep.subr.mxu0 0.0
    %827 = vmatpush1.xpose.msra.mxu0 0.0
    %828 = vmatprep.subr.mxu0 0.0
    %829 = vmatpush1.xpose.msra.mxu0 0.0
    %830 = vmatprep.subr.mxu0 0.0
    %831 = vmatpush1.xpose.msra.mxu0 0.0
    %832 = vmatprep.subr.mxu0 0.0
    %833 = vmatpush1.xpose.msra.mxu0 0.0
    %834 = vmatprep.subr.mxu0 0.0
    %835 = vmatpush1.xpose.msra.mxu0 0.0
    %836 = vmatprep.subr.mxu0 0.0
    %837 = vmatpush1.xpose.msra.mxu0 0.0
    %838 = vmatprep.subr.mxu0 0.0
    %839 = vmatpush1.xpose.msra.mxu0 0.0
    %840 = vmatprep.subr.mxu0 0.0
    %841 = vmatpush1.xpose.msra.mxu0 0.0
    %842 = vmatprep.subr.mxu0 0.0
    %843 = vmatpush1.xpose.msra.mxu0 0.0
    %844 = vmatprep.subr.mxu0 0.0
    %845 = vmatpush1.xpose.msra.mxu0 0.0
    %846 = vmatprep.subr.mxu0 0.0
    %847 = vmatpush1.xpose.msra.mxu0 0.0
    %848 = vmatprep.subr.mxu0 0.0
    %849 = vmatpush1.xpose.msra.mxu0 0.0
    %850 = vmatprep.subr.mxu0 0.0
    %851 = vmatpush1.xpose.msra.mxu0 0.0
    %852 = vmatprep.subr.mxu0 0.0
    %853 = vmatpush1.xpose.msra.mxu0 0.0
    %854 = vmatprep.subr.mxu0 0.0
    %855 = vmatpush1.xpose.msra.mxu0 0.0
    %856 = vmatprep.subr.mxu0 0.0
    %857 = vmatpush1.xpose.msra.mxu0 0.0
    %858 = vmatprep.subr.mxu0 0.0
    %859 = vmatpush1.xpose.msra.mxu0 0.0
    %860 = vmatprep.subr.mxu0 0.0
    %861 = vmatpush1.xpose.msra.mxu0 0.0
    %862 = vmatprep.subr.mxu0 0.0
    %863 = vmatpush1.xpose.msra.mxu0 0.0
    %864 = vmatprep.subr.mxu0 0.0
    %865 = vmatpush1.xpose.msra.mxu0 0.0
    %866 = vmatprep.subr.mxu0 0.0
    %867 = vmatpush1.xpose.msra.mxu0 0.0
    %868 = vmatprep.subr.mxu0 0.0
    %869 = vmatpush1.xpose.msra.mxu0 0.0
    %870 = vmatprep.subr.mxu0 0.0
    %871 = vmatpush1.xpose.msra.mxu0 0.0
    %872 = vmatprep.subr.mxu0 0.0
    %873 = vmatpush1.xpose.msra.mxu0 0.0
    %874 = vmatprep.subr.mxu0 0.0
    %875 = vmatpush1.xpose.msra.mxu0 0.0
    %876 = vmatprep.subr.mxu0 0.0
    %877 = vmatpush1.xpose.msra.mxu0 0.0
    %878 = vmatprep.subr.mxu0 0.0
    %879 = vmatpush1.xpose.msra.mxu0 0.0
    %880 = vmatprep.subr.mxu0 0.0
    %881 = vmatpush1.xpose.msra.mxu0 0.0
    %882 = vmatprep.subr.mxu0 0.0
    %883 = vmatpush1.xpose.msra.mxu0 0.0
    %884 = vmatprep.mubr.f32.mxu0 0.0
    %885 = vmatmul.mubr.f32.gmra.mrb[0].mxu0 %v816
    %v886 = vpop.f32.mrb[0].mxu0
    %v887 = vadd.f32 0.0, %v886
    %v888 = vpop.f32.mrb[0].mxu0
    %889 = vdwg.mxu0
    %v890 = vsel %vm565, %v809, -inf
    %891 = vmax.xlane.f32.xlu0 %v890
    %v892 = vpop.xlane.xlu0 %891
    %v893 = vsel %vm565, %v887, -inf
    %894 = vmax.xlane.f32.xlu0 %v893
    %v895 = vpop.xlane.xlu0 %894
    %v896 = vsub.f32 %v809, %v892
    %v897 = vsub.f32 %v887, %v895
    %v898 = vmul.f32 %v896, 1.442695
    %v899 = vpow.pop %v898
    %v900 = vmul.f32 %v897, 1.442695
    %v901 = vpow.pop %v900
    %v902 = vsel %vm565, %v899, 0.0
    %903 = vadd.xlane.f32.xlu0 %v902
    %v904 = vpop.xlane.xlu0 %903
    %v905 = vsel %vm565, %v901, 0.0
    %906 = vadd.xlane.f32.xlu0 %v905
    %v907 = vpop.xlane.xlu0 %906
    %v908 = vrcp.pop %v904
    %v909 = vrcp.pop %v907
    %v910 = vmul.f32 %v899, %v908
    %v911 = vmul.f32 %v901, %v909
    %913 = vrot.lane.b32.xlu0 %v402, 112
    %v914 = vpop.permute.xlu0 %913
    %v917 = vsel %vm565, %v910, 0
    %919 = vmatprep.subr.mxu0 0.0
    %920 = vmatpush1.msra.mxu0 %v914
    %921 = vmatprep.subr.mxu0 0.0
    %922 = vmatpush1.msra.mxu0 0.0
    %923 = vmatprep.subr.mxu0 0.0
    %924 = vmatpush1.msra.mxu0 0.0
    %925 = vmatprep.subr.mxu0 0.0
    %926 = vmatpush1.msra.mxu0 0.0
    %927 = vmatprep.subr.mxu0 0.0
    %928 = vmatpush1.msra.mxu0 0.0
    %929 = vmatprep.subr.mxu0 0.0
    %930 = vmatpush1.msra.mxu0 0.0
    %931 = vmatprep.subr.mxu0 0.0
    %932 = vmatpush1.msra.mxu0 0.0
    %933 = vmatprep.subr.mxu0 0.0
    %934 = vmatpush1.msra.mxu0 0.0
    %935 = vmatprep.subr.mxu0 0.0
    %936 = vmatpush1.msra.mxu0 0.0
    %937 = vmatprep.subr.mxu0 0.0
    %938 = vmatpush1.msra.mxu0 0.0
    %939 = vmatprep.subr.mxu0 0.0
    %940 = vmatpush1.msra.mxu0 0.0
    %941 = vmatprep.subr.mxu0 0.0
    %942 = vmatpush1.msra.mxu0 0.0
    %943 = vmatprep.subr.mxu0 0.0
    %944 = vmatpush1.msra.mxu0 0.0
    %945 = vmatprep.subr.mxu0 0.0
    %946 = vmatpush1.msra.mxu0 0.0
    %947 = vmatprep.subr.mxu0 0.0
    %948 = vmatpush1.msra.mxu0 0.0
    %949 = vmatprep.subr.mxu0 0.0
    %950 = vmatpush1.msra.mxu0 0.0
    %951 = vmatprep.subr.mxu0 0.0
    %952 = vmatpush1.msra.mxu0 0.0
    %953 = vmatprep.subr.mxu0 0.0
    %954 = vmatpush1.msra.mxu0 0.0
    %955 = vmatprep.subr.mxu0 0.0
    %956 = vmatpush1.msra.mxu0 0.0
    %957 = vmatprep.subr.mxu0 0.0
    %958 = vmatpush1.msra.mxu0 0.0
    %959 = vmatprep.subr.mxu0 0.0
    %960 = vmatpush1.msra.mxu0 0.0
    %961 = vmatprep.subr.mxu0 0.0
    %962 = vmatpush1.msra.mxu0 0.0
    %963 = vmatprep.subr.mxu0 0.0
    %964 = vmatpush1.msra.mxu0 0.0
    %965 = vmatprep.subr.mxu0 0.0
    %966 = vmatpush1.msra.mxu0 0.0
    %967 = vmatprep.subr.mxu0 0.0
    %968 = vmatpush1.msra.mxu0 0.0
    %969 = vmatprep.subr.mxu0 0.0
    %970 = vmatpush1.msra.mxu0 0.0
    %971 = vmatprep.subr.mxu0 0.0
    %972 = vmatpush1.msra.mxu0 0.0
    %973 = vmatprep.subr.mxu0 0.0
    %974 = vmatpush1.msra.mxu0 0.0
    %975 = vmatprep.subr.mxu0 0.0
    %976 = vmatpush1.msra.mxu0 0.0
    %977 = vmatprep.subr.mxu0 0.0
    %978 = vmatpush1.msra.mxu0 0.0
    %979 = vmatprep.subr.mxu0 0.0
    %980 = vmatpush1.msra.mxu0 0.0
    %981 = vmatprep.subr.mxu0 0.0
    %982 = vmatpush1.msra.mxu0 0.0
    %983 = vmatprep.mubr.f32.mxu0 0.0
    %984 = vmatmul.mubr.f32.gmra.mrb[0].mxu0 %v917
    %v985 = vpop.f32.mrb[0].mxu0
    %v986 = vadd.f32 0.0, %v985
    %v987 = vpop.f32.mrb[0].mxu0
    %988 = vdwg.mxu0
    %990 = vrot.lane.b32.xlu0 %v408, 112
    %v991 = vpop.permute.xlu0 %990
    %v994 = vsel %vm565, %v911, 0
    %996 = vmatprep.subr.mxu0 0.0
    %997 = vmatpush1.msra.mxu0 %v991
    %998 = vmatprep.subr.mxu0 0.0
    %999 = vmatpush1.msra.mxu0 0.0
    %1000 = vmatprep.subr.mxu0 0.0
    %1001 = vmatpush1.msra.mxu0 0.0
    %1002 = vmatprep.subr.mxu0 0.0
    %1003 = vmatpush1.msra.mxu0 0.0
    %1004 = vmatprep.subr.mxu0 0.0
    %1005 = vmatpush1.msra.mxu0 0.0
    %1006 = vmatprep.subr.mxu0 0.0
    %1007 = vmatpush1.msra.mxu0 0.0
    %1008 = vmatprep.subr.mxu0 0.0
    %1009 = vmatpush1.msra.mxu0 0.0
    %1010 = vmatprep.subr.mxu0 0.0
    %1011 = vmatpush1.msra.mxu0 0.0
    %1012 = vmatprep.subr.mxu0 0.0
    %1013 = vmatpush1.msra.mxu0 0.0
    %1014 = vmatprep.subr.mxu0 0.0
    %1015 = vmatpush1.msra.mxu0 0.0
    %1016 = vmatprep.subr.mxu0 0.0
    %1017 = vmatpush1.msra.mxu0 0.0
    %1018 = vmatprep.subr.mxu0 0.0
    %1019 = vmatpush1.msra.mxu0 0.0
    %1020 = vmatprep.subr.mxu0 0.0
    %1021 = vmatpush1.msra.mxu0 0.0
    %1022 = vmatprep.subr.mxu0 0.0
    %1023 = vmatpush1.msra.mxu0 0.0
    %1024 = vmatprep.subr.mxu0 0.0
    %1025 = vmatpush1.msra.mxu0 0.0
    %1026 = vmatprep.subr.mxu0 0.0
    %1027 = vmatpush1.msra.mxu0 0.0
    %1028 = vmatprep.subr.mxu0 0.0
    %1029 = vmatpush1.msra.mxu0 0.0
    %1030 = vmatprep.subr.mxu0 0.0
    %1031 = vmatpush1.msra.mxu0 0.0
    %1032 = vmatprep.subr.mxu0 0.0
    %1033 = vmatpush1.msra.mxu0 0.0
    %1034 = vmatprep.subr.mxu0 0.0
    %1035 = vmatpush1.msra.mxu0 0.0
    %1036 = vmatprep.subr.mxu0 0.0
    %1037 = vmatpush1.msra.mxu0 0.0
    %1038 = vmatprep.subr.mxu0 0.0
    %1039 = vmatpush1.msra.mxu0 0.0
    %1040 = vmatprep.subr.mxu0 0.0
    %1041 = vmatpush1.msra.mxu0 0.0
    %1042 = vmatprep.subr.mxu0 0.0
    %1043 = vmatpush1.msra.mxu0 0.0
    %1044 = vmatprep.subr.mxu0 0.0
    %1045 = vmatpush1.msra.mxu0 0.0
    %1046 = vmatprep.subr.mxu0 0.0
    %1047 = vmatpush1.msra.mxu0 0.0
    %1048 = vmatprep.subr.mxu0 0.0
    %1049 = vmatpush1.msra.mxu0 0.0
    %1050 = vmatprep.subr.mxu0 0.0
    %1051 = vmatpush1.msra.mxu0 0.0
    %1052 = vmatprep.subr.mxu0 0.0
    %1053 = vmatpush1.msra.mxu0 0.0
    %1054 = vmatprep.subr.mxu0 0.0
    %1055 = vmatpush1.msra.mxu0 0.0
    %1056 = vmatprep.subr.mxu0 0.0
    %1057 = vmatpush1.msra.mxu0 0.0
    %1058 = vmatprep.subr.mxu0 0.0
    %1059 = vmatpush1.msra.mxu0 0.0
    %1060 = vmatprep.mubr.f32.mxu0 0.0
    %1061 = vmatmul.mubr.f32.gmra.mrb[0].mxu0 %v994
    %v1062 = vpop.f32.mrb[0].mxu0
    %v1063 = vadd.f32 0.0, %v1062
    %v1064 = vpop.f32.mrb[0].mxu0
    %1065 = vdwg.mxu0
    %1066 = vrot.lane.b32.xlu0 %v400, 96
    %v1067 = vpop.permute.xlu0 %1066
    %1068 = vrot.lane.b32.xlu0 %v400, 32
    %v1069 = vpop.permute.xlu0 %1068
    %v1070 = vsel %vm413, %v1067, 0
    %v1072 = vsel %vm413, %v1069, 0
    %1074 = vmatprep.subr.mxu0 0.0
    %1075 = vmatpush1.xpose.msra.mxu0 %v1072
    %1076 = vmatprep.subr.mxu0 0.0
    %1077 = vmatpush1.xpose.msra.mxu0 0.0
    %1078 = vmatprep.subr.mxu0 0.0
    %1079 = vmatpush1.xpose.msra.mxu0 0.0
    %1080 = vmatprep.subr.mxu0 0.0
    %1081 = vmatpush1.xpose.msra.mxu0 0.0
    %1082 = vmatprep.subr.mxu0 0.0
    %1083 = vmatpush1.xpose.msra.mxu0 0.0
    %1084 = vmatprep.subr.mxu0 0.0
    %1085 = vmatpush1.xpose.msra.mxu0 0.0
    %1086 = vmatprep.subr.mxu0 0.0
    %1087 = vmatpush1.xpose.msra.mxu0 0.0
    %1088 = vmatprep.subr.mxu0 0.0
    %1089 = vmatpush1.xpose.msra.mxu0 0.0
    %1090 = vmatprep.subr.mxu0 0.0
    %1091 = vmatpush1.xpose.msra.mxu0 0.0
    %1092 = vmatprep.subr.mxu0 0.0
    %1093 = vmatpush1.xpose.msra.mxu0 0.0
    %1094 = vmatprep.subr.mxu0 0.0
    %1095 = vmatpush1.xpose.msra.mxu0 0.0
    %1096 = vmatprep.subr.mxu0 0.0
    %1097 = vmatpush1.xpose.msra.mxu0 0.0
    %1098 = vmatprep.subr.mxu0 0.0
    %1099 = vmatpush1.xpose.msra.mxu0 0.0
    %1100 = vmatprep.subr.mxu0 0.0
    %1101 = vmatpush1.xpose.msra.mxu0 0.0
    %1102 = vmatprep.subr.mxu0 0.0
    %1103 = vmatpush1.xpose.msra.mxu0 0.0
    %1104 = vmatprep.subr.mxu0 0.0
    %1105 = vmatpush1.xpose.msra.mxu0 0.0
    %1106 = vmatprep.subr.mxu0 0.0
    %1107 = vmatpush1.xpose.msra.mxu0 0.0
    %1108 = vmatprep.subr.mxu0 0.0
    %1109 = vmatpush1.xpose.msra.mxu0 0.0
    %1110 = vmatprep.subr.mxu0 0.0
    %1111 = vmatpush1.xpose.msra.mxu0 0.0
    %1112 = vmatprep.subr.mxu0 0.0
    %1113 = vmatpush1.xpose.msra.mxu0 0.0
    %1114 = vmatprep.subr.mxu0 0.0
    %1115 = vmatpush1.xpose.msra.mxu0 0.0
    %1116 = vmatprep.subr.mxu0 0.0
    %1117 = vmatpush1.xpose.msra.mxu0 0.0
    %1118 = vmatprep.subr.mxu0 0.0
    %1119 = vmatpush1.xpose.msra.mxu0 0.0
    %1120 = vmatprep.subr.mxu0 0.0
    %1121 = vmatpush1.xpose.msra.mxu0 0.0
    %1122 = vmatprep.subr.mxu0 0.0
    %1123 = vmatpush1.xpose.msra.mxu0 0.0
    %1124 = vmatprep.subr.mxu0 0.0
    %1125 = vmatpush1.xpose.msra.mxu0 0.0
    %1126 = vmatprep.subr.mxu0 0.0
    %1127 = vmatpush1.xpose.msra.mxu0 0.0
    %1128 = vmatprep.subr.mxu0 0.0
    %1129 = vmatpush1.xpose.msra.mxu0 0.0
    %1130 = vmatprep.subr.mxu0 0.0
    %1131 = vmatpush1.xpose.msra.mxu0 0.0
    %1132 = vmatprep.subr.mxu0 0.0
    %1133 = vmatpush1.xpose.msra.mxu0 0.0
    %1134 = vmatprep.subr.mxu0 0.0
    %1135 = vmatpush1.xpose.msra.mxu0 0.0
    %1136 = vmatprep.subr.mxu0 0.0
    %1137 = vmatpush1.xpose.msra.mxu0 0.0
    %1138 = vmatprep.mubr.f32.mxu0 0.0
    %1139 = vmatmul.mubr.f32.gmra.mrb[0].mxu0 %v1070
    %v1140 = vpop.f32.mrb[0].mxu0
    %v1141 = vadd.f32 0.0, %v1140
    %v1142 = vpop.f32.mrb[0].mxu0
    %1143 = vdwg.mxu0
    %1144 = vrot.lane.b32.xlu0 %v406, 96
    %v1145 = vpop.permute.xlu0 %1144
    %1146 = vrot.lane.b32.xlu0 %v406, 32
    %v1147 = vpop.permute.xlu0 %1146
    %v1148 = vsel %vm413, %v1145, 0
    %v1150 = vsel %vm413, %v1147, 0
    %1152 = vmatprep.subr.mxu0 0.0
    %1153 = vmatpush1.xpose.msra.mxu0 %v1150
    %1154 = vmatprep.subr.mxu0 0.0
    %1155 = vmatpush1.xpose.msra.mxu0 0.0
    %1156 = vmatprep.subr.mxu0 0.0
    %1157 = vmatpush1.xpose.msra.mxu0 0.0
    %1158 = vmatprep.subr.mxu0 0.0
    %1159 = vmatpush1.xpose.msra.mxu0 0.0
    %1160 = vmatprep.subr.mxu0 0.0
    %1161 = vmatpush1.xpose.msra.mxu0 0.0
    %1162 = vmatprep.subr.mxu0 0.0
    %1163 = vmatpush1.xpose.msra.mxu0 0.0
    %1164 = vmatprep.subr.mxu0 0.0
    %1165 = vmatpush1.xpose.msra.mxu0 0.0
    %1166 = vmatprep.subr.mxu0 0.0
    %1167 = vmatpush1.xpose.msra.mxu0 0.0
    %1168 = vmatprep.subr.mxu0 0.0
    %1169 = vmatpush1.xpose.msra.mxu0 0.0
    %1170 = vmatprep.subr.mxu0 0.0
    %1171 = vmatpush1.xpose.msra.mxu0 0.0
    %1172 = vmatprep.subr.mxu0 0.0
    %1173 = vmatpush1.xpose.msra.mxu0 0.0
    %1174 = vmatprep.subr.mxu0 0.0
    %1175 = vmatpush1.xpose.msra.mxu0 0.0
    %1176 = vmatprep.subr.mxu0 0.0
    %1177 = vmatpush1.xpose.msra.mxu0 0.0
    %1178 = vmatprep.subr.mxu0 0.0
    %1179 = vmatpush1.xpose.msra.mxu0 0.0
    %1180 = vmatprep.subr.mxu0 0.0
    %1181 = vmatpush1.xpose.msra.mxu0 0.0
    %1182 = vmatprep.subr.mxu0 0.0
    %1183 = vmatpush1.xpose.msra.mxu0 0.0
    %1184 = vmatprep.subr.mxu0 0.0
    %1185 = vmatpush1.xpose.msra.mxu0 0.0
    %1186 = vmatprep.subr.mxu0 0.0
    %1187 = vmatpush1.xpose.msra.mxu0 0.0
    %1188 = vmatprep.subr.mxu0 0.0
    %1189 = vmatpush1.xpose.msra.mxu0 0.0
    %1190 = vmatprep.subr.mxu0 0.0
    %1191 = vmatpush1.xpose.msra.mxu0 0.0
    %1192 = vmatprep.subr.mxu0 0.0
    %1193 = vmatpush1.xpose.msra.mxu0 0.0
    %1194 = vmatprep.subr.mxu0 0.0
    %1195 = vmatpush1.xpose.msra.mxu0 0.0
    %1196 = vmatprep.subr.mxu0 0.0
    %1197 = vmatpush1.xpose.msra.mxu0 0.0
    %1198 = vmatprep.subr.mxu0 0.0
    %1199 = vmatpush1.xpose.msra.mxu0 0.0
    %1200 = vmatprep.subr.mxu0 0.0
    %1201 = vmatpush1.xpose.msra.mxu0 0.0
    %1202 = vmatprep.subr.mxu0 0.0
    %1203 = vmatpush1.xpose.msra.mxu0 0.0
    %1204 = vmatprep.subr.mxu0 0.0
    %1205 = vmatpush1.xpose.msra.mxu0 0.0
    %1206 = vmatprep.subr.mxu0 0.0
    %1207 = vmatpush1.xpose.msra.mxu0 0.0
    %1208 = vmatprep.subr.mxu0 0.0
    %1209 = vmatpush1.xpose.msra.mxu0 0.0
    %1210 = vmatprep.subr.mxu0 0.0
    %1211 = vmatpush1.xpose.msra.mxu0 0.0
    %1212 = vmatprep.subr.mxu0 0.0
    %1213 = vmatpush1.xpose.msra.mxu0 0.0
    %1214 = vmatprep.subr.mxu0 0.0
    %1215 = vmatpush1.xpose.msra.mxu0 0.0
    %1216 = vmatprep.mubr.f32.mxu0 0.0
    %1217 = vmatmul.mubr.f32.gmra.mrb[0].mxu0 %v1148
    %v1218 = vpop.f32.mrb[0].mxu0
    %v1219 = vadd.f32 0.0, %v1218
    %v1220 = vpop.f32.mrb[0].mxu0
    %1221 = vdwg.mxu0
    %v1222 = vsel %vm565, %v1141, -inf
    %1223 = vmax.xlane.f32.xlu0 %v1222
    %v1224 = vpop.xlane.xlu0 %1223
    %v1225 = vsel %vm565, %v1219, -inf
    %1226 = vmax.xlane.f32.xlu0 %v1225
    %v1227 = vpop.xlane.xlu0 %1226
    %v1228 = vsub.f32 %v1141, %v1224
    %v1229 = vsub.f32 %v1219, %v1227
    %v1230 = vmul.f32 %v1228, 1.442695
    %v1231 = vpow.pop %v1230
    %v1232 = vmul.f32 %v1229, 1.442695
    %v1233 = vpow.pop %v1232
    %v1234 = vsel %vm565, %v1231, 0.0
    %1235 = vadd.xlane.f32.xlu0 %v1234
    %v1236 = vpop.xlane.xlu0 %1235
    %v1237 = vsel %vm565, %v1233, 0.0
    %1238 = vadd.xlane.f32.xlu0 %v1237
    %v1239 = vpop.xlane.xlu0 %1238
    %v1240 = vrcp.pop %v1236
    %v1241 = vrcp.pop %v1239
    %v1242 = vmul.f32 %v1231, %v1240
    %v1243 = vmul.f32 %v1233, %v1241
    %1244 = vrot.lane.b32.xlu0 %v402, 96
    %v1245 = vpop.permute.xlu0 %1244
    %v1248 = vsel %vm565, %v1242, 0
    %1250 = vmatprep.subr.mxu0 0.0
    %1251 = vmatpush1.msra.mxu0 %v1245
    %1252 = vmatprep.subr.mxu0 0.0
    %1253 = vmatpush1.msra.mxu0 0.0
    %1254 = vmatprep.subr.mxu0 0.0
    %1255 = vmatpush1.msra.mxu0 0.0
    %1256 = vmatprep.subr.mxu0 0.0
    %1257 = vmatpush1.msra.mxu0 0.0
    %1258 = vmatprep.subr.mxu0 0.0
    %1259 = vmatpush1.msra.mxu0 0.0
    %1260 = vmatprep.subr.mxu0 0.0
    %1261 = vmatpush1.msra.mxu0 0.0
    %1262 = vmatprep.subr.mxu0 0.0
    %1263 = vmatpush1.msra.mxu0 0.0
    %1264 = vmatprep.subr.mxu0 0.0
    %1265 = vmatpush1.msra.mxu0 0.0
    %1266 = vmatprep.subr.mxu0 0.0
    %1267 = vmatpush1.msra.mxu0 0.0
    %1268 = vmatprep.subr.mxu0 0.0
    %1269 = vmatpush1.msra.mxu0 0.0
    %1270 = vmatprep.subr.mxu0 0.0
    %1271 = vmatpush1.msra.mxu0 0.0
    %1272 = vmatprep.subr.mxu0 0.0
    %1273 = vmatpush1.msra.mxu0 0.0
    %1274 = vmatprep.subr.mxu0 0.0
    %1275 = vmatpush1.msra.mxu0 0.0
    %1276 = vmatprep.subr.mxu0 0.0
    %1277 = vmatpush1.msra.mxu0 0.0
    %1278 = vmatprep.subr.mxu0 0.0
    %1279 = vmatpush1.msra.mxu0 0.0
    %1280 = vmatprep.subr.mxu0 0.0
    %1281 = vmatpush1.msra.mxu0 0.0
    %1282 = vmatprep.subr.mxu0 0.0
    %1283 = vmatpush1.msra.mxu0 0.0
    %1284 = vmatprep.subr.mxu0 0.0
    %1285 = vmatpush1.msra.mxu0 0.0
    %1286 = vmatprep.subr.mxu0 0.0
    %1287 = vmatpush1.msra.mxu0 0.0
    %1288 = vmatprep.subr.mxu0 0.0
    %1289 = vmatpush1.msra.mxu0 0.0
    %1290 = vmatprep.subr.mxu0 0.0
    %1291 = vmatpush1.msra.mxu0 0.0
    %1292 = vmatprep.subr.mxu0 0.0
    %1293 = vmatpush1.msra.mxu0 0.0
    %1294 = vmatprep.subr.mxu0 0.0
    %1295 = vmatpush1.msra.mxu0 0.0
    %1296 = vmatprep.subr.mxu0 0.0
    %1297 = vmatpush1.msra.mxu0 0.0
    %1298 = vmatprep.subr.mxu0 0.0
    %1299 = vmatpush1.msra.mxu0 0.0
    %1300 = vmatprep.subr.mxu0 0.0
    %1301 = vmatpush1.msra.mxu0 0.0
    %1302 = vmatprep.subr.mxu0 0.0
    %1303 = vmatpush1.msra.mxu0 0.0
    %1304 = vmatprep.subr.mxu0 0.0
    %1305 = vmatpush1.msra.mxu0 0.0
    %1306 = vmatprep.subr.mxu0 0.0
    %1307 = vmatpush1.msra.mxu0 0.0
    %1308 = vmatprep.subr.mxu0 0.0
    %1309 = vmatpush1.msra.mxu0 0.0
    %1310 = vmatprep.subr.mxu0 0.0
    %1311 = vmatpush1.msra.mxu0 0.0
    %1312 = vmatprep.subr.mxu0 0.0
    %1313 = vmatpush1.msra.mxu0 0.0
    %1314 = vmatprep.mubr.f32.mxu0 0.0
    %1315 = vmatmul.mubr.f32.gmra.mrb[0].mxu0 %v1248
    %v1316 = vpop.f32.mrb[0].mxu0
    %v1317 = vadd.f32 0.0, %v1316
    %v1318 = vpop.f32.mrb[0].mxu0
    %1319 = vdwg.mxu0
    %1320 = vrot.lane.b32.xlu0 %v408, 96
    %v1321 = vpop.permute.xlu0 %1320
    %v1324 = vsel %vm565, %v1243, 0
    %1326 = vmatprep.subr.mxu0 0.0
    %1327 = vmatpush1.msra.mxu0 %v1321
    %1328 = vmatprep.subr.mxu0 0.0
    %1329 = vmatpush1.msra.mxu0 0.0
    %1330 = vmatprep.subr.mxu0 0.0
    %1331 = vmatpush1.msra.mxu0 0.0
    %1332 = vmatprep.subr.mxu0 0.0
    %1333 = vmatpush1.msra.mxu0 0.0
    %1334 = vmatprep.subr.mxu0 0.0
    %1335 = vmatpush1.msra.mxu0 0.0
    %1336 = vmatprep.subr.mxu0 0.0
    %1337 = vmatpush1.msra.mxu0 0.0
    %1338 = vmatprep.subr.mxu0 0.0
    %1339 = vmatpush1.msra.mxu0 0.0
    %1340 = vmatprep.subr.mxu0 0.0
    %1341 = vmatpush1.msra.mxu0 0.0
    %1342 = vmatprep.subr.mxu0 0.0
    %1343 = vmatpush1.msra.mxu0 0.0
    %1344 = vmatprep.subr.mxu0 0.0
    %1345 = vmatpush1.msra.mxu0 0.0
    %1346 = vmatprep.subr.mxu0 0.0
    %1347 = vmatpush1.msra.mxu0 0.0
    %1348 = vmatprep.subr.mxu0 0.0
    %1349 = vmatpush1.msra.mxu0 0.0
    %1350 = vmatprep.subr.mxu0 0.0
    %1351 = vmatpush1.msra.mxu0 0.0
    %1352 = vmatprep.subr.mxu0 0.0
    %1353 = vmatpush1.msra.mxu0 0.0
    %1354 = vmatprep.subr.mxu0 0.0
    %1355 = vmatpush1.msra.mxu0 0.0
    %1356 = vmatprep.subr.mxu0 0.0
    %1357 = vmatpush1.msra.mxu0 0.0
    %1358 = vmatprep.subr.mxu0 0.0
    %1359 = vmatpush1.msra.mxu0 0.0
    %1360 = vmatprep.subr.mxu0 0.0
    %1361 = vmatpush1.msra.mxu0 0.0
    %1362 = vmatprep.subr.mxu0 0.0
    %1363 = vmatpush1.msra.mxu0 0.0
    %1364 = vmatprep.subr.mxu0 0.0
    %1365 = vmatpush1.msra.mxu0 0.0
    %1366 = vmatprep.subr.mxu0 0.0
    %1367 = vmatpush1.msra.mxu0 0.0
    %1368 = vmatprep.subr.mxu0 0.0
    %1369 = vmatpush1.msra.mxu0 0.0
    %1370 = vmatprep.subr.mxu0 0.0
    %1371 = vmatpush1.msra.mxu0 0.0
    %1372 = vmatprep.subr.mxu0 0.0
    %1373 = vmatpush1.msra.mxu0 0.0
    %1374 = vmatprep.subr.mxu0 0.0
    %1375 = vmatpush1.msra.mxu0 0.0
    %1376 = vmatprep.subr.mxu0 0.0
    %1377 = vmatpush1.msra.mxu0 0.0
    %1378 = vmatprep.subr.mxu0 0.0
    %1379 = vmatpush1.msra.mxu0 0.0
    %1380 = vmatprep.subr.mxu0 0.0
    %1381 = vmatpush1.msra.mxu0 0.0
    %1382 = vmatprep.subr.mxu0 0.0
    %1383 = vmatpush1.msra.mxu0 0.0
    %1384 = vmatprep.subr.mxu0 0.0
    %1385 = vmatpush1.msra.mxu0 0.0
    %1386 = vmatprep.subr.mxu0 0.0
    %1387 = vmatpush1.msra.mxu0 0.0
    %1388 = vmatprep.subr.mxu0 0.0
    %1389 = vmatpush1.msra.mxu0 0.0
    %1390 = vmatprep.mubr.f32.mxu0 0.0
    %1391 = vmatmul.mubr.f32.gmra.mrb[0].mxu0 %v1324
    %v1392 = vpop.f32.mrb[0].mxu0
    %v1393 = vadd.f32 0.0, %v1392
    %v1394 = vpop.f32.mrb[0].mxu0
    %1395 = vdwg.mxu0
    %1396 = vrot.lane.b32.xlu0 %v400, 80
    %v1397 = vpop.permute.xlu0 %1396
    %1398 = vrot.lane.b32.xlu0 %v400, 16
    %v1399 = vpop.permute.xlu0 %1398
    %v1400 = vsel %vm413, %v1397, 0
    %v1402 = vsel %vm413, %v1399, 0
    %1404 = vmatprep.subr.mxu0 0.0
    %1405 = vmatpush1.xpose.msra.mxu0 %v1402
    %1406 = vmatprep.subr.mxu0 0.0
    %1407 = vmatpush1.xpose.msra.mxu0 0.0
    %1408 = vmatprep.subr.mxu0 0.0
    %1409 = vmatpush1.xpose.msra.mxu0 0.0
    %1410 = vmatprep.subr.mxu0 0.0
    %1411 = vmatpush1.xpose.msra.mxu0 0.0
    %1412 = vmatprep.subr.mxu0 0.0
    %1413 = vmatpush1.xpose.msra.mxu0 0.0
    %1414 = vmatprep.subr.mxu0 0.0
    %1415 = vmatpush1.xpose.msra.mxu0 0.0
    %1416 = vmatprep.subr.mxu0 0.0
    %1417 = vmatpush1.xpose.msra.mxu0 0.0
    %1418 = vmatprep.subr.mxu0 0.0
    %1419 = vmatpush1.xpose.msra.mxu0 0.0
    %1420 = vmatprep.subr.mxu0 0.0
    %1421 = vmatpush1.xpose.msra.mxu0 0.0
    %1422 = vmatprep.subr.mxu0 0.0
    %1423 = vmatpush1.xpose.msra.mxu0 0.0
    %1424 = vmatprep.subr.mxu0 0.0
    %1425 = vmatpush1.xpose.msra.mxu0 0.0
    %1426 = vmatprep.subr.mxu0 0.0
    %1427 = vmatpush1.xpose.msra.mxu0 0.0
    %1428 = vmatprep.subr.mxu0 0.0
    %1429 = vmatpush1.xpose.msra.mxu0 0.0
    %1430 = vmatprep.subr.mxu0 0.0
    %1431 = vmatpush1.xpose.msra.mxu0 0.0
    %1432 = vmatprep.subr.mxu0 0.0
    %1433 = vmatpush1.xpose.msra.mxu0 0.0
    %1434 = vmatprep.subr.mxu0 0.0
    %1435 = vmatpush1.xpose.msra.mxu0 0.0
    %1436 = vmatprep.subr.mxu0 0.0
    %1437 = vmatpush1.xpose.msra.mxu0 0.0
    %1438 = vmatprep.subr.mxu0 0.0
    %1439 = vmatpush1.xpose.msra.mxu0 0.0
    %1440 = vmatprep.subr.mxu0 0.0
    %1441 = vmatpush1.xpose.msra.mxu0 0.0
    %1442 = vmatprep.subr.mxu0 0.0
    %1443 = vmatpush1.xpose.msra.mxu0 0.0
    %1444 = vmatprep.subr.mxu0 0.0
    %1445 = vmatpush1.xpose.msra.mxu0 0.0
    %1446 = vmatprep.subr.mxu0 0.0
    %1447 = vmatpush1.xpose.msra.mxu0 0.0
    %1448 = vmatprep.subr.mxu0 0.0
    %1449 = vmatpush1.xpose.msra.mxu0 0.0
    %1450 = vmatprep.subr.mxu0 0.0
    %1451 = vmatpush1.xpose.msra.mxu0 0.0
    %1452 = vmatprep.subr.mxu0 0.0
    %1453 = vmatpush1.xpose.msra.mxu0 0.0
    %1454 = vmatprep.subr.mxu0 0.0
    %1455 = vmatpush1.xpose.msra.mxu0 0.0
    %1456 = vmatprep.subr.mxu0 0.0
    %1457 = vmatpush1.xpose.msra.mxu0 0.0
    %1458 = vmatprep.subr.mxu0 0.0
    %1459 = vmatpush1.xpose.msra.mxu0 0.0
    %1460 = vmatprep.subr.mxu0 0.0
    %1461 = vmatpush1.xpose.msra.mxu0 0.0
    %1462 = vmatprep.subr.mxu0 0.0
    %1463 = vmatpush1.xpose.msra.mxu0 0.0
    %1464 = vmatprep.subr.mxu0 0.0
    %1465 = vmatpush1.xpose.msra.mxu0 0.0
    %1466 = vmatprep.subr.mxu0 0.0
    %1467 = vmatpush1.xpose.msra.mxu0 0.0
    %1468 = vmatprep.mubr.f32.mxu0 0.0
    %1469 = vmatmul.mubr.f32.gmra.mrb[0].mxu0 %v1400
    %v1470 = vpop.f32.mrb[0].mxu0
    %v1471 = vadd.f32 0.0, %v1470
    %v1472 = vpop.f32.mrb[0].mxu0
    %1473 = vdwg.mxu0
    %1474 = vrot.lane.b32.xlu0 %v406, 80
    %v1475 = vpop.permute.xlu0 %1474
    %1476 = vrot.lane.b32.xlu0 %v406, 16
    %v1477 = vpop.permute.xlu0 %1476
    %v1478 = vsel %vm413, %v1475, 0
    %v1480 = vsel %vm413, %v1477, 0
    %1482 = vmatprep.subr.mxu0 0.0
    %1483 = vmatpush1.xpose.msra.mxu0 %v1480
    %1484 = vmatprep.subr.mxu0 0.0
    %1485 = vmatpush1.xpose.msra.mxu0 0.0
    %1486 = vmatprep.subr.mxu0 0.0
    %1487 = vmatpush1.xpose.msra.mxu0 0.0
    %1488 = vmatprep.subr.mxu0 0.0
    %1489 = vmatpush1.xpose.msra.mxu0 0.0
    %1490 = vmatprep.subr.mxu0 0.0
    %1491 = vmatpush1.xpose.msra.mxu0 0.0
    %1492 = vmatprep.subr.mxu0 0.0
    %1493 = vmatpush1.xpose.msra.mxu0 0.0
    %1494 = vmatprep.subr.mxu0 0.0
    %1495 = vmatpush1.xpose.msra.mxu0 0.0
    %1496 = vmatprep.subr.mxu0 0.0
    %1497 = vmatpush1.xpose.msra.mxu0 0.0
    %1498 = vmatprep.subr.mxu0 0.0
    %1499 = vmatpush1.xpose.msra.mxu0 0.0
    %1500 = vmatprep.subr.mxu0 0.0
    %1501 = vmatpush1.xpose.msra.mxu0 0.0
    %1502 = vmatprep.subr.mxu0 0.0
    %1503 = vmatpush1.xpose.msra.mxu0 0.0
    %1504 = vmatprep.subr.mxu0 0.0
    %1505 = vmatpush1.xpose.msra.mxu0 0.0
    %1506 = vmatprep.subr.mxu0 0.0
    %1507 = vmatpush1.xpose.msra.mxu0 0.0
    %1508 = vmatprep.subr.mxu0 0.0
    %1509 = vmatpush1.xpose.msra.mxu0 0.0
    %1510 = vmatprep.subr.mxu0 0.0
    %1511 = vmatpush1.xpose.msra.mxu0 0.0
    %1512 = vmatprep.subr.mxu0 0.0
    %1513 = vmatpush1.xpose.msra.mxu0 0.0
    %1514 = vmatprep.subr.mxu0 0.0
    %1515 = vmatpush1.xpose.msra.mxu0 0.0
    %1516 = vmatprep.subr.mxu0 0.0
    %1517 = vmatpush1.xpose.msra.mxu0 0.0
    %1518 = vmatprep.subr.mxu0 0.0
    %1519 = vmatpush1.xpose.msra.mxu0 0.0
    %1520 = vmatprep.subr.mxu0 0.0
    %1521 = vmatpush1.xpose.msra.mxu0 0.0
    %1522 = vmatprep.subr.mxu0 0.0
    %1523 = vmatpush1.xpose.msra.mxu0 0.0
    %1524 = vmatprep.subr.mxu0 0.0
    %1525 = vmatpush1.xpose.msra.mxu0 0.0
    %1526 = vmatprep.subr.mxu0 0.0
    %1527 = vmatpush1.xpose.msra.mxu0 0.0
    %1528 = vmatprep.subr.mxu0 0.0
    %1529 = vmatpush1.xpose.msra.mxu0 0.0
    %1530 = vmatprep.subr.mxu0 0.0
    %1531 = vmatpush1.xpose.msra.mxu0 0.0
    %1532 = vmatprep.subr.mxu0 0.0
    %1533 = vmatpush1.xpose.msra.mxu0 0.0
    %1534 = vmatprep.subr.mxu0 0.0
    %1535 = vmatpush1.xpose.msra.mxu0 0.0
    %1536 = vmatprep.subr.mxu0 0.0
    %1537 = vmatpush1.xpose.msra.mxu0 0.0
    %1538 = vmatprep.subr.mxu0 0.0
    %1539 = vmatpush1.xpose.msra.mxu0 0.0
    %1540 = vmatprep.subr.mxu0 0.0
    %1541 = vmatpush1.xpose.msra.mxu0 0.0
    %1542 = vmatprep.subr.mxu0 0.0
    %1543 = vmatpush1.xpose.msra.mxu0 0.0
    %1544 = vmatprep.subr.mxu0 0.0
    %1545 = vmatpush1.xpose.msra.mxu0 0.0
    %1546 = vmatprep.mubr.f32.mxu0 0.0
    %1547 = vmatmul.mubr.f32.gmra.mrb[0].mxu0 %v1478
    %v1548 = vpop.f32.mrb[0].mxu0
    %v1549 = vadd.f32 0.0, %v1548
    %v1550 = vpop.f32.mrb[0].mxu0
    %1551 = vdwg.mxu0
    %v1552 = vsel %vm565, %v1471, -inf
    %1553 = vmax.xlane.f32.xlu0 %v1552
    %v1554 = vpop.xlane.xlu0 %1553
    %v1555 = vsel %vm565, %v1549, -inf
    %1556 = vmax.xlane.f32.xlu0 %v1555
    %v1557 = vpop.xlane.xlu0 %1556
    %v1558 = vsub.f32 %v1471, %v1554
    %v1559 = vsub.f32 %v1549, %v1557
    %v1560 = vmul.f32 %v1558, 1.442695
    %v1561 = vpow.pop %v1560
    %v1562 = vmul.f32 %v1559, 1.442695
    %v1563 = vpow.pop %v1562
    %v1564 = vsel %vm565, %v1561, 0.0
    %1565 = vadd.xlane.f32.xlu0 %v1564
    %v1566 = vpop.xlane.xlu0 %1565
    %v1567 = vsel %vm565, %v1563, 0.0
    %1568 = vadd.xlane.f32.xlu0 %v1567
    %v1569 = vpop.xlane.xlu0 %1568
    %v1570 = vrcp.pop %v1566
    %v1571 = vrcp.pop %v1569
    %v1572 = vmul.f32 %v1561, %v1570
    %v1573 = vmul.f32 %v1563, %v1571
    %1574 = vrot.lane.b32.xlu0 %v402, 80
    %v1575 = vpop.permute.xlu0 %1574
    %v1578 = vsel %vm565, %v1572, 0
    %1580 = vmatprep.subr.mxu0 0.0
    %1581 = vmatpush1.msra.mxu0 %v1575
    %1582 = vmatprep.subr.mxu0 0.0
    %1583 = vmatpush1.msra.mxu0 0.0
    %1584 = vmatprep.subr.mxu0 0.0
    %1585 = vmatpush1.msra.mxu0 0.0
    %1586 = vmatprep.subr.mxu0 0.0
    %1587 = vmatpush1.msra.mxu0 0.0
    %1588 = vmatprep.subr.mxu0 0.0
    %1589 = vmatpush1.msra.mxu0 0.0
    %1590 = vmatprep.subr.mxu0 0.0
    %1591 = vmatpush1.msra.mxu0 0.0
    %1592 = vmatprep.subr.mxu0 0.0
    %1593 = vmatpush1.msra.mxu0 0.0
    %1594 = vmatprep.subr.mxu0 0.0
    %1595 = vmatpush1.msra.mxu0 0.0
    %1596 = vmatprep.subr.mxu0 0.0
    %1597 = vmatpush1.msra.mxu0 0.0
    %1598 = vmatprep.subr.mxu0 0.0
    %1599 = vmatpush1.msra.mxu0 0.0
    %1600 = vmatprep.subr.mxu0 0.0
    %1601 = vmatpush1.msra.mxu0 0.0
    %1602 = vmatprep.subr.mxu0 0.0
    %1603 = vmatpush1.msra.mxu0 0.0
    %1604 = vmatprep.subr.mxu0 0.0
    %1605 = vmatpush1.msra.mxu0 0.0
    %1606 = vmatprep.subr.mxu0 0.0
    %1607 = vmatpush1.msra.mxu0 0.0
    %1608 = vmatprep.subr.mxu0 0.0
    %1609 = vmatpush1.msra.mxu0 0.0
    %1610 = vmatprep.subr.mxu0 0.0
    %1611 = vmatpush1.msra.mxu0 0.0
    %1612 = vmatprep.subr.mxu0 0.0
    %1613 = vmatpush1.msra.mxu0 0.0
    %1614 = vmatprep.subr.mxu0 0.0
    %1615 = vmatpush1.msra.mxu0 0.0
    %1616 = vmatprep.subr.mxu0 0.0
    %1617 = vmatpush1.msra.mxu0 0.0
    %1618 = vmatprep.subr.mxu0 0.0
    %1619 = vmatpush1.msra.mxu0 0.0
    %1620 = vmatprep.subr.mxu0 0.0
    %1621 = vmatpush1.msra.mxu0 0.0
    %1622 = vmatprep.subr.mxu0 0.0
    %1623 = vmatpush1.msra.mxu0 0.0
    %1624 = vmatprep.subr.mxu0 0.0
    %1625 = vmatpush1.msra.mxu0 0.0
    %1626 = vmatprep.subr.mxu0 0.0
    %1627 = vmatpush1.msra.mxu0 0.0
    %1628 = vmatprep.subr.mxu0 0.0
    %1629 = vmatpush1.msra.mxu0 0.0
    %1630 = vmatprep.subr.mxu0 0.0
    %1631 = vmatpush1.msra.mxu0 0.0
    %1632 = vmatprep.subr.mxu0 0.0
    %1633 = vmatpush1.msra.mxu0 0.0
    %1634 = vmatprep.subr.mxu0 0.0
    %1635 = vmatpush1.msra.mxu0 0.0
    %1636 = vmatprep.subr.mxu0 0.0
    %1637 = vmatpush1.msra.mxu0 0.0
    %1638 = vmatprep.subr.mxu0 0.0
    %1639 = vmatpush1.msra.mxu0 0.0
    %1640 = vmatprep.subr.mxu0 0.0
    %1641 = vmatpush1.msra.mxu0 0.0
    %1642 = vmatprep.subr.mxu0 0.0
    %1643 = vmatpush1.msra.mxu0 0.0
    %1644 = vmatprep.mubr.f32.mxu0 0.0
    %1645 = vmatmul.mubr.f32.gmra.mrb[0].mxu0 %v1578
    %v1646 = vpop.f32.mrb[0].mxu0
    %v1647 = vadd.f32 0.0, %v1646
    %v1648 = vpop.f32.mrb[0].mxu0
    %1649 = vdwg.mxu0
    %1650 = vrot.lane.b32.xlu0 %v408, 80
    %v1651 = vpop.permute.xlu0 %1650
    %v1654 = vsel %vm565, %v1573, 0
    %1656 = vmatprep.subr.mxu0 0.0
    %1657 = vmatpush1.msra.mxu0 %v1651
    %1658 = vmatprep.subr.mxu0 0.0
    %1659 = vmatpush1.msra.mxu0 0.0
    %1660 = vmatprep.subr.mxu0 0.0
    %1661 = vmatpush1.msra.mxu0 0.0
    %1662 = vmatprep.subr.mxu0 0.0
    %1663 = vmatpush1.msra.mxu0 0.0
    %1664 = vmatprep.subr.mxu0 0.0
    %1665 = vmatpush1.msra.mxu0 0.0
    %1666 = vmatprep.subr.mxu0 0.0
    %1667 = vmatpush1.msra.mxu0 0.0
    %1668 = vmatprep.subr.mxu0 0.0
    %1669 = vmatpush1.msra.mxu0 0.0
    %1670 = vmatprep.subr.mxu0 0.0
    %1671 = vmatpush1.msra.mxu0 0.0
    %1672 = vmatprep.subr.mxu0 0.0
    %1673 = vmatpush1.msra.mxu0 0.0
    %1674 = vmatprep.subr.mxu0 0.0
    %1675 = vmatpush1.msra.mxu0 0.0
    %1676 = vmatprep.subr.mxu0 0.0
    %1677 = vmatpush1.msra.mxu0 0.0
    %1678 = vmatprep.subr.mxu0 0.0
    %1679 = vmatpush1.msra.mxu0 0.0
    %1680 = vmatprep.subr.mxu0 0.0
    %1681 = vmatpush1.msra.mxu0 0.0
    %1682 = vmatprep.subr.mxu0 0.0
    %1683 = vmatpush1.msra.mxu0 0.0
    %1684 = vmatprep.subr.mxu0 0.0
    %1685 = vmatpush1.msra.mxu0 0.0
    %1686 = vmatprep.subr.mxu0 0.0
    %1687 = vmatpush1.msra.mxu0 0.0
    %1688 = vmatprep.subr.mxu0 0.0
    %1689 = vmatpush1.msra.mxu0 0.0
    %1690 = vmatprep.subr.mxu0 0.0
    %1691 = vmatpush1.msra.mxu0 0.0
    %1692 = vmatprep.subr.mxu0 0.0
    %1693 = vmatpush1.msra.mxu0 0.0
    %1694 = vmatprep.subr.mxu0 0.0
    %1695 = vmatpush1.msra.mxu0 0.0
    %1696 = vmatprep.subr.mxu0 0.0
    %1697 = vmatpush1.msra.mxu0 0.0
    %1698 = vmatprep.subr.mxu0 0.0
    %1699 = vmatpush1.msra.mxu0 0.0
    %1700 = vmatprep.subr.mxu0 0.0
    %1701 = vmatpush1.msra.mxu0 0.0
    %1702 = vmatprep.subr.mxu0 0.0
    %1703 = vmatpush1.msra.mxu0 0.0
    %1704 = vmatprep.subr.mxu0 0.0
    %1705 = vmatpush1.msra.mxu0 0.0
    %1706 = vmatprep.subr.mxu0 0.0
    %1707 = vmatpush1.msra.mxu0 0.0
    %1708 = vmatprep.subr.mxu0 0.0
    %1709 = vmatpush1.msra.mxu0 0.0
    %1710 = vmatprep.subr.mxu0 0.0
    %1711 = vmatpush1.msra.mxu0 0.0
    %1712 = vmatprep.subr.mxu0 0.0
    %1713 = vmatpush1.msra.mxu0 0.0
    %1714 = vmatprep.subr.mxu0 0.0
    %1715 = vmatpush1.msra.mxu0 0.0
    %1716 = vmatprep.subr.mxu0 0.0
    %1717 = vmatpush1.msra.mxu0 0.0
    %1718 = vmatprep.subr.mxu0 0.0
    %1719 = vmatpush1.msra.mxu0 0.0
    %1720 = vmatprep.mubr.f32.mxu0 0.0
    %1721 = vmatmul.mubr.f32.gmra.mrb[0].mxu0 %v1654
    %v1722 = vpop.f32.mrb[0].mxu0
    %v1723 = vadd.f32 0.0, %v1722
    %v1724 = vpop.f32.mrb[0].mxu0
    %1725 = vdwg.mxu0
    %1728 = vrot.lane.b32.xlu0 %v986, 16
    %v1729 = vpop.permute.xlu0 %1728
    %1730 = vrot.lane.b32.xlu0 %v1063, 16
    %v1731 = vpop.permute.xlu0 %1730
    %1736 = vrot.lane.b32.xlu0 %v1317, 32
    %v1737 = vpop.permute.xlu0 %1736
    %1738 = vrot.lane.b32.xlu0 %v1393, 32
    %v1739 = vpop.permute.xlu0 %1738
    %1744 = vrot.lane.b32.xlu0 %v1647, 48
    %v1745 = vpop.permute.xlu0 %1744
    %1746 = vrot.lane.b32.xlu0 %v1723, 48
    %v1747 = vpop.permute.xlu0 %1746
    %v1750 = vsel %vm413, %v658, %v1729
    %v1751 = vsel %vm413, %v731, %v1731
    %v1752 = vsel %vm130, %v1750, %v1737
    %v1753 = vsel %vm130, %v1751, %v1739
    %vm1754 = vcmask 392192
    %v1755 = vsel %vm1754, %v1752, %v1745
    %v1756 = vsel %vm1754, %v1753, %v1747
    %v1757 = vld [vmem:[%s7] sm:$0xff]
    %v1758 = vld [vmem:[%s7 + $0x8] sm:$0xff]
    %v1759 = vld [vmem:[%s7 + $0x10] sm:$0xff]
    %v1760 = vld [vmem:[%s7 + $0x18] sm:$0xff]
    %v1761 = vld [vmem:[%s7 + $0x20] sm:$0xff]
    %v1762 = vld [vmem:[%s7 + $0x28] sm:$0xff]
    %v1763 = vld [vmem:[%s7 + $0x30] sm:$0xff]
    %v1764 = vld [vmem:[%s7 + $0x38] sm:$0xff]
    %v1765 = vld [vmem:[%s8] sm:$0x1]
    %v1767 = vlaneseq
    %v1768 = vshrl.u32 %v1767, 7
    %v1769 = vsub.s32 0, %v1768
    %v1770 = vrot.slane %v1765, %v1769
    %v1773 = vsel %vm326, %v1755, 0
    %v1776 = vsel %vm326, %v1756, 0
    %1778 = vmatprep.subr.mxu0 0.0
    %1779 = vmatpush1.msra.mxu0 %v1757
    %1780 = vmatprep.subr.mxu0 0.0
    %1781 = vmatpush1.msra.mxu0 %v1758
    %1782 = vmatprep.subr.mxu0 0.0
    %1783 = vmatpush1.msra.mxu0 %v1759
    %1784 = vmatprep.subr.mxu0 0.0
    %1785 = vmatpush1.msra.mxu0 %v1760
    %1786 = vmatprep.subr.mxu0 0.0
    %1787 = vmatpush1.msra.mxu0 %v1761
    %1788 = vmatprep.subr.mxu0 0.0
    %1789 = vmatpush1.msra.mxu0 %v1762
    %1790 = vmatprep.subr.mxu0 0.0
    %1791 = vmatpush1.msra.mxu0 %v1763
    %1792 = vmatprep.subr.mxu0 0.0
    %1793 = vmatpush1.msra.mxu0 %v1764
    %1794 = vmatprep.subr.mxu0 0.0
    %1795 = vmatpush1.msra.mxu0 0.0
    %1796 = vmatprep.subr.mxu0 0.0
    %1797 = vmatpush1.msra.mxu0 0.0
    %1798 = vmatprep.subr.mxu0 0.0
    %1799 = vmatpush1.msra.mxu0 0.0
    %1800 = vmatprep.subr.mxu0 0.0
    %1801 = vmatpush1.msra.mxu0 0.0
    %1802 = vmatprep.subr.mxu0 0.0
    %1803 = vmatpush1.msra.mxu0 0.0
    %1804 = vmatprep.subr.mxu0 0.0
    %1805 = vmatpush1.msra.mxu0 0.0
    %1806 = vmatprep.subr.mxu0 0.0
    %1807 = vmatpush1.msra.mxu0 0.0
    %1808 = vmatprep.subr.mxu0 0.0
    %1809 = vmatpush1.msra.mxu0 0.0
    %1810 = vmatprep.subr.mxu0 0.0
    %1811 = vmatpush1.msra.mxu0 0.0
    %1812 = vmatprep.subr.mxu0 0.0
    %1813 = vmatpush1.msra.mxu0 0.0
    %1814 = vmatprep.subr.mxu0 0.0
    %1815 = vmatpush1.msra.mxu0 0.0
    %1816 = vmatprep.subr.mxu0 0.0
    %1817 = vmatpush1.msra.mxu0 0.0
    %1818 = vmatprep.subr.mxu0 0.0
    %1819 = vmatpush1.msra.mxu0 0.0
    %1820 = vmatprep.subr.mxu0 0.0
    %1821 = vmatpush1.msra.mxu0 0.0
    %1822 = vmatprep.subr.mxu0 0.0
    %1823 = vmatpush1.msra.mxu0 0.0
    %1824 = vmatprep.subr.mxu0 0.0
    %1825 = vmatpush1.msra.mxu0 0.0
    %1826 = vmatprep.subr.mxu0 0.0
    %1827 = vmatpush1.msra.mxu0 0.0
    %1828 = vmatprep.subr.mxu0 0.0
    %1829 = vmatpush1.msra.mxu0 0.0
    %1830 = vmatprep.subr.mxu0 0.0
    %1831 = vmatpush1.msra.mxu0 0.0
    %1832 = vmatprep.subr.mxu0 0.0
    %1833 = vmatpush1.msra.mxu0 0.0
    %1834 = vmatprep.subr.mxu0 0.0
    %1835 = vmatpush1.msra.mxu0 0.0
    %1836 = vmatprep.subr.mxu0 0.0
    %1837 = vmatpush1.msra.mxu0 0.0
    %1838 = vmatprep.subr.mxu0 0.0
    %1839 = vmatpush1.msra.mxu0 0.0
    %1840 = vmatprep.subr.mxu0 0.0
    %1841 = vmatpush1.msra.mxu0 0.0
    %1842 = vmatprep.mubr.f32.mxu0 0.0
    %1843 = vmatmul.mubr.f32.gmra.mrb[0].mxu0 %v1773
    %v1844 = vpop.f32.mrb[0].mxu0
    %v1845 = vadd.f32 %v1770, %v1844
    %v1846 = vpop.f32.mrb[0].mxu0
    %1847 = vmatprep.mubr.f32.mxu0 0.0
    %1848 = vmatmul.mubr.f32.gmra.mrb[0].mxu0 %v1776
    %v1849 = vpop.f32.mrb[0].mxu0
    %v1850 = vadd.f32 %v1770, %v1849
    %v1851 = vpop.f32.mrb[0].mxu0
    %1852 = vdwg.mxu0
    %v1853 = vadd.f32 %v296, %v1845
    %v1854 = vadd.f32 %v297, %v1850
    %v1855 = vld [vmem:[%s9] sm:$0x1]
    %v1856 = vld [vmem:[%s10] sm:$0x1]
    %v1857 = vsel %vm326, %v1853, 0.0
    %1858 = vadd.xlane.f32.xlu0 %v1857
    %v1859 = vpop.xlane.xlu0 %1858
    %v1860 = vsel %vm326, %v1854, 0.0
    %1861 = vadd.xlane.f32.xlu0 %v1860
    %v1862 = vpop.xlane.xlu0 %1861
    %v1863 = vrcp.pop 64.0
    %v1864 = vmul.f32 %v1859, %v1863
    %v1865 = vmul.f32 %v1862, %v1863
    %v1866 = vsub.f32 %v1853, %v1864
    %v1867 = vsub.f32 %v1854, %v1865
    %v1868 = vmul.f32 %v1866, %v1866
    %v1869 = vmul.f32 %v1867, %v1867
    %v1870 = vsel %vm326, %v1868, 0.0
    %1871 = vadd.xlane.f32.xlu0 %v1870
    %v1872 = vpop.xlane.xlu0 %1871
    %v1873 = vsel %vm326, %v1869, 0.0
    %1874 = vadd.xlane.f32.xlu0 %v1873
    %v1875 = vpop.xlane.xlu0 %1874
    %v1876 = vmul.f32 %v1872, %v1863
    %v1877 = vmul.f32 %v1875, %v1863
    %v1878 = vadd.f32 %v1876, 1e-05
    %v1879 = vadd.f32 %v1877, 1e-05
    %v1880 = vrsqrt.pop %v1878
    %v1881 = vrsqrt.pop %v1879
    %v1882 = vmul.f32 %v1866, %v1880
    %v1883 = vmul.f32 %v1867, %v1881
    %v1885 = vlaneseq
    %v1886 = vshrl.u32 %v1885, 7
    %v1887 = vsub.s32 0, %v1886
    %v1888 = vrot.slane %v1855, %v1887
    %v1890 = vmul.f32 %v1882, %v1888
    %v1891 = vmul.f32 %v1883, %v1888
    %v1893 = vlaneseq
    %v1894 = vshrl.u32 %v1893, 7
    %v1895 = vsub.s32 0, %v1894
    %v1896 = vrot.slane %v1856, %v1895
    %v1898 = vadd.f32 %v1890, %v1896
    %v1899 = vadd.f32 %v1891, %v1896
    %v1900 = vld [vmem:[%s11] sm:$0xff]
    %v1901 = vld [vmem:[%s11 + $0x8] sm:$0xff]
    %v1902 = vld [vmem:[%s11 + $0x10] sm:$0xff]
    %v1903 = vld [vmem:[%s11 + $0x18] sm:$0xff]
    %v1904 = vld [vmem:[%s11 + $0x20] sm:$0xff]
    %v1905 = vld [vmem:[%s11 + $0x28] sm:$0xff]
    %v1906 = vld [vmem:[%s11 + $0x30] sm:$0xff]
    %v1907 = vld [vmem:[%s11 + $0x38] sm:$0xff]
    %v1908 = vld [vmem:[%s12] sm:$0x1]
    %v1910 = vlaneseq
    %v1911 = vshrl.u32 %v1910, 7
    %v1912 = vsub.s32 0, %v1911
    %v1913 = vrot.slane %v1908, %v1912
    %v1916 = vsel %vm326, %v1898, 0
    %v1919 = vsel %vm326, %v1899, 0
    %1921 = vmatprep.subr.mxu0 0.0
    %1922 = vmatpush1.msra.mxu0 %v1900
    %1923 = vmatprep.subr.mxu0 0.0
    %1924 = vmatpush1.msra.mxu0 %v1901
    %1925 = vmatprep.subr.mxu0 0.0
    %1926 = vmatpush1.msra.mxu0 %v1902
    %1927 = vmatprep.subr.mxu0 0.0
    %1928 = vmatpush1.msra.mxu0 %v1903
    %1929 = vmatprep.subr.mxu0 0.0
    %1930 = vmatpush1.msra.mxu0 %v1904
    %1931 = vmatprep.subr.mxu0 0.0
    %1932 = vmatpush1.msra.mxu0 %v1905
    %1933 = vmatprep.subr.mxu0 0.0
    %1934 = vmatpush1.msra.mxu0 %v1906
    %1935 = vmatprep.subr.mxu0 0.0
    %1936 = vmatpush1.msra.mxu0 %v1907
    %1937 = vmatprep.subr.mxu0 0.0
    %1938 = vmatpush1.msra.mxu0 0.0
    %1939 = vmatprep.subr.mxu0 0.0
    %1940 = vmatpush1.msra.mxu0 0.0
    %1941 = vmatprep.subr.mxu0 0.0
    %1942 = vmatpush1.msra.mxu0 0.0
    %1943 = vmatprep.subr.mxu0 0.0
    %1944 = vmatpush1.msra.mxu0 0.0
    %1945 = vmatprep.subr.mxu0 0.0
    %1946 = vmatpush1.msra.mxu0 0.0
    %1947 = vmatprep.subr.mxu0 0.0
    %1948 = vmatpush1.msra.mxu0 0.0
    %1949 = vmatprep.subr.mxu0 0.0
    %1950 = vmatpush1.msra.mxu0 0.0
    %1951 = vmatprep.subr.mxu0 0.0
    %1952 = vmatpush1.msra.mxu0 0.0
    %1953 = vmatprep.subr.mxu0 0.0
    %1954 = vmatpush1.msra.mxu0 0.0
    %1955 = vmatprep.subr.mxu0 0.0
    %1956 = vmatpush1.msra.mxu0 0.0
    %1957 = vmatprep.subr.mxu0 0.0
    %1958 = vmatpush1.msra.mxu0 0.0
    %1959 = vmatprep.subr.mxu0 0.0
    %1960 = vmatpush1.msra.mxu0 0.0
    %1961 = vmatprep.subr.mxu0 0.0
    %1962 = vmatpush1.msra.mxu0 0.0
    %1963 = vmatprep.subr.mxu0 0.0
    %1964 = vmatpush1.msra.mxu0 0.0
    %1965 = vmatprep.subr.mxu0 0.0
    %1966 = vmatpush1.msra.mxu0 0.0
    %1967 = vmatprep.subr.mxu0 0.0
    %1968 = vmatpush1.msra.mxu0 0.0
    %1969 = vmatprep.subr.mxu0 0.0
    %1970 = vmatpush1.msra.mxu0 0.0
    %1971 = vmatprep.subr.mxu0 0.0
    %1972 = vmatpush1.msra.mxu0 0.0
    %1973 = vmatprep.subr.mxu0 0.0
    %1974 = vmatpush1.msra.mxu0 0.0
    %1975 = vmatprep.subr.mxu0 0.0
    %1976 = vmatpush1.msra.mxu0 0.0
    %1977 = vmatprep.subr.mxu0 0.0
    %1978 = vmatpush1.msra.mxu0 0.0
    %1979 = vmatprep.subr.mxu0 0.0
    %1980 = vmatpush1.msra.mxu0 0.0
    %1981 = vmatprep.subr.mxu0 0.0
    %1982 = vmatpush1.msra.mxu0 0.0
    %1983 = vmatprep.subr.mxu0 0.0
    %1984 = vmatpush1.msra.mxu0 0.0
    %1985 = vmatprep.mubr.f32.mxu0 0.0
    %1986 = vmatmul.mubr.f32.gmra.mrb[0].mxu0 %v1916
    %v1987 = vpop.f32.mrb[0].mxu0
    %v1988 = vadd.f32 %v1913, %v1987
    %v1989 = vpop.f32.mrb[0].mxu0
    %1990 = vmatprep.mubr.f32.mxu0 0.0
    %1991 = vmatmul.mubr.f32.gmra.mrb[0].mxu0 %v1919
    %v1992 = vpop.f32.mrb[0].mxu0
    %v1993 = vadd.f32 %v1913, %v1992
    %v1994 = vpop.f32.mrb[0].mxu0
    %1995 = vdwg.mxu0
    %v1996 = vmax.f32 %v1988, 0.0
    %v1997 = vmax.f32 %v1993, 0.0
    %v1998 = vld [vmem:[%s13] sm:$0xff]
    %v1999 = vld [vmem:[%s13 + $0x8] sm:$0xff]
    %v2000 = vld [vmem:[%s13 + $0x10] sm:$0xff]
    %v2001 = vld [vmem:[%s13 + $0x18] sm:$0xff]
    %v2002 = vld [vmem:[%s14] sm:$0x1]
    %v2004 = vlaneseq
    %v2005 = vshrl.u32 %v2004, 7
    %v2006 = vsub.s32 0, %v2005
    %v2007 = vrot.slane %v2002, %v2006
    %v2010 = vsel %vm130, %v1996, 0
    %v2013 = vsel %vm130, %v1997, 0
    %2015 = vmatprep.subr.mxu0 0.0
    %2016 = vmatpush1.msra.mxu0 %v1998
    %2017 = vmatprep.subr.mxu0 0.0
    %2018 = vmatpush1.msra.mxu0 %v1999
    %2019 = vmatprep.subr.mxu0 0.0
    %2020 = vmatpush1.msra.mxu0 %v2000
    %2021 = vmatprep.subr.mxu0 0.0
    %2022 = vmatpush1.msra.mxu0 %v2001
    %2023 = vmatprep.subr.mxu0 0.0
    %2024 = vmatpush1.msra.mxu0 0.0
    %2025 = vmatprep.subr.mxu0 0.0
    %2026 = vmatpush1.msra.mxu0 0.0
    %2027 = vmatprep.subr.mxu0 0.0
    %2028 = vmatpush1.msra.mxu0 0.0
    %2029 = vmatprep.subr.mxu0 0.0
    %2030 = vmatpush1.msra.mxu0 0.0
    %2031 = vmatprep.subr.mxu0 0.0
    %2032 = vmatpush1.msra.mxu0 0.0
    %2033 = vmatprep.subr.mxu0 0.0
    %2034 = vmatpush1.msra.mxu0 0.0
    %2035 = vmatprep.subr.mxu0 0.0
    %2036 = vmatpush1.msra.mxu0 0.0
    %2037 = vmatprep.subr.mxu0 0.0
    %2038 = vmatpush1.msra.mxu0 0.0
    %2039 = vmatprep.subr.mxu0 0.0
    %2040 = vmatpush1.msra.mxu0 0.0
    %2041 = vmatprep.subr.mxu0 0.0
    %2042 = vmatpush1.msra.mxu0 0.0
    %2043 = vmatprep.subr.mxu0 0.0
    %2044 = vmatpush1.msra.mxu0 0.0
    %2045 = vmatprep.subr.mxu0 0.0
    %2046 = vmatpush1.msra.mxu0 0.0
    %2047 = vmatprep.subr.mxu0 0.0
    %2048 = vmatpush1.msra.mxu0 0.0
    %2049 = vmatprep.subr.mxu0 0.0
    %2050 = vmatpush1.msra.mxu0 0.0
    %2051 = vmatprep.subr.mxu0 0.0
    %2052 = vmatpush1.msra.mxu0 0.0
    %2053 = vmatprep.subr.mxu0 0.0
    %2054 = vmatpush1.msra.mxu0 0.0
    %2055 = vmatprep.subr.mxu0 0.0
    %2056 = vmatpush1.msra.mxu0 0.0
    %2057 = vmatprep.subr.mxu0 0.0
    %2058 = vmatpush1.msra.mxu0 0.0
    %2059 = vmatprep.subr.mxu0 0.0
    %2060 = vmatpush1.msra.mxu0 0.0
    %2061 = vmatprep.subr.mxu0 0.0
    %2062 = vmatpush1.msra.mxu0 0.0
    %2063 = vmatprep.subr.mxu0 0.0
    %2064 = vmatpush1.msra.mxu0 0.0
    %2065 = vmatprep.subr.mxu0 0.0
    %2066 = vmatpush1.msra.mxu0 0.0
    %2067 = vmatprep.subr.mxu0 0.0
    %2068 = vmatpush1.msra.mxu0 0.0
    %2069 = vmatprep.subr.mxu0 0.0
    %2070 = vmatpush1.msra.mxu0 0.0
    %2071 = vmatprep.subr.mxu0 0.0
    %2072 = vmatpush1.msra.mxu0 0.0
    %2073 = vmatprep.subr.mxu0 0.0
    %2074 = vmatpush1.msra.mxu0 0.0
    %2075 = vmatprep.subr.mxu0 0.0
    %2076 = vmatpush1.msra.mxu0 0.0
    %2077 = vmatprep.subr.mxu0 0.0
    %2078 = vmatpush1.msra.mxu0 0.0
    %2079 = vmatprep.mubr.f32.mxu0 0.0
    %2080 = vmatmul.mubr.f32.gmra.mrb[0].mxu0 %v2010
    %v2081 = vpop.f32.mrb[0].mxu0
    %v2082 = vadd.f32 %v2007, %v2081
    %v2083 = vpop.f32.mrb[0].mxu0
    %2084 = vmatprep.mubr.f32.mxu0 0.0
    %2085 = vmatmul.mubr.f32.gmra.mrb[0].mxu0 %v2013
    %v2086 = vpop.f32.mrb[0].mxu0
    %v2087 = vadd.f32 %v2007, %v2086
    %v2088 = vpop.f32.mrb[0].mxu0
    %2089 = vdwg.mxu0
    %v2090 = vadd.f32 %v1898, %v2082
    %v2091 = vadd.f32 %v1899, %v2087
    %v2092 = vld [vmem:[%s15] sm:$0x1]
    %v2093 = vld [vmem:[%s16] sm:$0x1]
    %v2094 = vsel %vm326, %v2090, 0.0
    %2095 = vadd.xlane.f32.xlu0 %v2094
    %v2096 = vpop.xlane.xlu0 %2095
    %v2097 = vsel %vm326, %v2091, 0.0
    %2098 = vadd.xlane.f32.xlu0 %v2097
    %v2099 = vpop.xlane.xlu0 %2098
    %v2100 = vmul.f32 %v2096, %v1863
    %v2101 = vmul.f32 %v2099, %v1863
    %v2102 = vsub.f32 %v2090, %v2100
    %v2103 = vsub.f32 %v2091, %v2101
    %v2104 = vmul.f32 %v2102, %v2102
    %v2105 = vmul.f32 %v2103, %v2103
    %v2106 = vsel %vm326, %v2104, 0.0
    %2107 = vadd.xlane.f32.xlu0 %v2106
    %v2108 = vpop.xlane.xlu0 %2107
    %v2109 = vsel %vm326, %v2105, 0.0
    %2110 = vadd.xlane.f32.xlu0 %v2109
    %v2111 = vpop.xlane.xlu0 %2110
    %v2112 = vmul.f32 %v2108, %v1863
    %v2113 = vmul.f32 %v2111, %v1863
    %v2114 = vadd.f32 %v2112, 1e-05
    %v2115 = vadd.f32 %v2113, 1e-05
    %v2116 = vrsqrt.pop %v2114
    %v2117 = vrsqrt.pop %v2115
    %v2118 = vmul.f32 %v2102, %v2116
    %v2119 = vmul.f32 %v2103, %v2117
    %v2121 = vlaneseq
    %v2122 = vshrl.u32 %v2121, 7
    %v2123 = vsub.s32 0, %v2122
    %v2124 = vrot.slane %v2092, %v2123
    %v2126 = vmul.f32 %v2118, %v2124
    %v2127 = vmul.f32 %v2119, %v2124
    %v2129 = vlaneseq
    %v2130 = vshrl.u32 %v2129, 7
    %v2131 = vsub.s32 0, %v2130
    %v2132 = vrot.slane %v2093, %v2131
    %v2134 = vadd.f32 %v2126, %v2132
    %v2135 = vadd.f32 %v2127, %v2132
    %s2136 = scalar_lea.vmem [#allocation8], 128
    %v2137 = vld [vmem:[%s2136] sm:$0xff]
    %v2138 = vld [vmem:[%s2136 + $0x8] sm:$0xff]
    %v2139 = vld [vmem:[%s2136 + $0x10] sm:$0xff]
    %v2140 = vld [vmem:[%s2136 + $0x18] sm:$0xff]
    %v2141 = vld [vmem:[%s2136 + $0x20] sm:$0xff]
    %v2142 = vld [vmem:[%s2136 + $0x28] sm:$0xff]
    %v2143 = vld [vmem:[%s2136 + $0x30] sm:$0xff]
    %v2144 = vld [vmem:[%s2136 + $0x38] sm:$0xff]
    %v2145 = vld [vmem:[%s2136 + $0x40] sm:$0xff]
    %v2146 = vld [vmem:[%s2136 + $0x48] sm:$0xff]
    %v2147 = vld [vmem:[%s2136 + $0x50] sm:$0xff]
    %v2148 = vld [vmem:[%s2136 + $0x58] sm:$0xff]
    %v2149 = vld [vmem:[%s2136 + $0x60] sm:$0xff]
    %v2150 = vld [vmem:[%s2136 + $0x68] sm:$0xff]
    %v2151 = vld [vmem:[%s2136 + $0x70] sm:$0xff]
    %v2152 = vld [vmem:[%s2136 + $0x78] sm:$0xff]
    %s2153 = scalar_lea.vmem [#allocation10], 2
    %v2154 = vld [vmem:[%s2153] sm:$0x3]
    %v2156 = vlaneseq
    %v2157 = vshrl.u32 %v2156, 7
    %v2158 = vsub.s32 0, %v2157
    %v2159 = vrot.slane %v2154, %v2158
    %v2160 = vlaneseq
    %v2161 = vshrl.u32 %v2160, 7
    %v2162 = vsub.s32 1, %v2161
    %v2163 = vrot.slane %v2154, %v2162
    %v2167 = vsel %vm326, %v2134, 0
    %v2170 = vsel %vm326, %v2135, 0
    %2172 = vmatprep.subr.mxu0 %v2138
    %2173 = vmatpush1.msra.mxu0 %v2137
    %2174 = vmatprep.subr.mxu0 %v2140
    %2175 = vmatpush1.msra.mxu0 %v2139
    %2176 = vmatprep.subr.mxu0 %v2142
    %2177 = vmatpush1.msra.mxu0 %v2141
    %2178 = vmatprep.subr.mxu0 %v2144
    %2179 = vmatpush1.msra.mxu0 %v2143
    %2180 = vmatprep.subr.mxu0 %v2146
    %2181 = vmatpush1.msra.mxu0 %v2145
    %2182 = vmatprep.subr.mxu0 %v2148
    %2183 = vmatpush1.msra.mxu0 %v2147
    %2184 = vmatprep.subr.mxu0 %v2150
    %2185 = vmatpush1.msra.mxu0 %v2149
    %2186 = vmatprep.subr.mxu0 %v2152
    %2187 = vmatpush1.msra.mxu0 %v2151
    %2188 = vmatprep.subr.mxu0 0.0
    %2189 = vmatpush1.msra.mxu0 0.0
    %2190 = vmatprep.subr.mxu0 0.0
    %2191 = vmatpush1.msra.mxu0 0.0
    %2192 = vmatprep.subr.mxu0 0.0
    %2193 = vmatpush1.msra.mxu0 0.0
    %2194 = vmatprep.subr.mxu0 0.0
    %2195 = vmatpush1.msra.mxu0 0.0
    %2196 = vmatprep.subr.mxu0 0.0
    %2197 = vmatpush1.msra.mxu0 0.0
    %2198 = vmatprep.subr.mxu0 0.0
    %2199 = vmatpush1.msra.mxu0 0.0
    %2200 = vmatprep.subr.mxu0 0.0
    %2201 = vmatpush1.msra.mxu0 0.0
    %2202 = vmatprep.subr.mxu0 0.0
    %2203 = vmatpush1.msra.mxu0 0.0
    %2204 = vmatprep.subr.mxu0 0.0
    %2205 = vmatpush1.msra.mxu0 0.0
    %2206 = vmatprep.subr.mxu0 0.0
    %2207 = vmatpush1.msra.mxu0 0.0
    %2208 = vmatprep.subr.mxu0 0.0
    %2209 = vmatpush1.msra.mxu0 0.0
    %2210 = vmatprep.subr.mxu0 0.0
    %2211 = vmatpush1.msra.mxu0 0.0
    %2212 = vmatprep.subr.mxu0 0.0
    %2213 = vmatpush1.msra.mxu0 0.0
    %2214 = vmatprep.subr.mxu0 0.0
    %2215 = vmatpush1.msra.mxu0 0.0
    %2216 = vmatprep.subr.mxu0 0.0
    %2217 = vmatpush1.msra.mxu0 0.0
    %2218 = vmatprep.subr.mxu0 0.0
    %2219 = vmatpush1.msra.mxu0 0.0
    %2220 = vmatprep.subr.mxu0 0.0
    %2221 = vmatpush1.msra.mxu0 0.0
    %2222 = vmatprep.subr.mxu0 0.0
    %2223 = vmatpush1.msra.mxu0 0.0
    %2224 = vmatprep.subr.mxu0 0.0
    %2225 = vmatpush1.msra.mxu0 0.0
    %2226 = vmatprep.subr.mxu0 0.0
    %2227 = vmatpush1.msra.mxu0 0.0
    %2228 = vmatprep.subr.mxu0 0.0
    %2229 = vmatpush1.msra.mxu0 0.0
    %2230 = vmatprep.subr.mxu0 0.0
    %2231 = vmatpush1.msra.mxu0 0.0
    %2232 = vmatprep.subr.mxu0 0.0
    %2233 = vmatpush1.msra.mxu0 0.0
    %2234 = vmatprep.subr.mxu0 0.0
    %2235 = vmatpush1.msra.mxu0 0.0
    %2236 = vmatprep.mubr.f32.mxu0 0.0
    %2237 = vmatmul.mubr.f32.gmra.mrb[0].mxu0 %v2167
    %v2238 = vpop.f32.mrb[0].mxu0
    %v2239 = vadd.f32 %v2159, %v2238
    %v2240 = vpop.f32.mrb[0].mxu0
    %v2241 = vadd.f32 %v2163, %v2240
    %2242 = vmatprep.mubr.f32.mxu0 0.0
    %2243 = vmatmul.mubr.f32.gmra.mrb[0].mxu0 %v2170
    %v2244 = vpop.f32.mrb[0].mxu0
    %v2245 = vadd.f32 %v2159, %v2244
    %v2246 = vpop.f32.mrb[0].mxu0
    %v2247 = vadd.f32 %v2163, %v2246
    %2248 = vdwg.mxu0
    %2250 = vrot.lane.b32.xlu0 %v2239, 64
    %v2251 = vpop.permute.xlu0 %2250
    %v2252 = vsel %vm413, %v2239, 0
    %v2254 = vsel %vm413, %v2251, 0
    %2256 = vmatprep.subr.mxu0 0.0
    %2257 = vmatpush1.xpose.msra.mxu0 %v2254
    %2258 = vmatprep.subr.mxu0 0.0
    %2259 = vmatpush1.xpose.msra.mxu0 0.0
    %2260 = vmatprep.subr.mxu0 0.0
    %2261 = vmatpush1.xpose.msra.mxu0 0.0
    %2262 = vmatprep.subr.mxu0 0.0
    %2263 = vmatpush1.xpose.msra.mxu0 0.0
    %2264 = vmatprep.subr.mxu0 0.0
    %2265 = vmatpush1.xpose.msra.mxu0 0.0
    %2266 = vmatprep.subr.mxu0 0.0
    %2267 = vmatpush1.xpose.msra.mxu0 0.0
    %2268 = vmatprep.subr.mxu0 0.0
    %2269 = vmatpush1.xpose.msra.mxu0 0.0
    %2270 = vmatprep.subr.mxu0 0.0
    %2271 = vmatpush1.xpose.msra.mxu0 0.0
    %2272 = vmatprep.subr.mxu0 0.0
    %2273 = vmatpush1.xpose.msra.mxu0 0.0
    %2274 = vmatprep.subr.mxu0 0.0
    %2275 = vmatpush1.xpose.msra.mxu0 0.0
    %2276 = vmatprep.subr.mxu0 0.0
    %2277 = vmatpush1.xpose.msra.mxu0 0.0
    %2278 = vmatprep.subr.mxu0 0.0
    %2279 = vmatpush1.xpose.msra.mxu0 0.0
    %2280 = vmatprep.subr.mxu0 0.0
    %2281 = vmatpush1.xpose.msra.mxu0 0.0
    %2282 = vmatprep.subr.mxu0 0.0
    %2283 = vmatpush1.xpose.msra.mxu0 0.0
    %2284 = vmatprep.subr.mxu0 0.0
    %2285 = vmatpush1.xpose.msra.mxu0 0.0
    %2286 = vmatprep.subr.mxu0 0.0
    %2287 = vmatpush1.xpose.msra.mxu0 0.0
    %2288 = vmatprep.subr.mxu0 0.0
    %2289 = vmatpush1.xpose.msra.mxu0 0.0
    %2290 = vmatprep.subr.mxu0 0.0
    %2291 = vmatpush1.xpose.msra.mxu0 0.0
    %2292 = vmatprep.subr.mxu0 0.0
    %2293 = vmatpush1.xpose.msra.mxu0 0.0
    %2294 = vmatprep.subr.mxu0 0.0
    %2295 = vmatpush1.xpose.msra.mxu0 0.0
    %2296 = vmatprep.subr.mxu0 0.0
    %2297 = vmatpush1.xpose.msra.mxu0 0.0
    %2298 = vmatprep.subr.mxu0 0.0
    %2299 = vmatpush1.xpose.msra.mxu0 0.0
    %2300 = vmatprep.subr.mxu0 0.0
    %2301 = vmatpush1.xpose.msra.mxu0 0.0
    %2302 = vmatprep.subr.mxu0 0.0
    %2303 = vmatpush1.xpose.msra.mxu0 0.0
    %2304 = vmatprep.subr.mxu0 0.0
    %2305 = vmatpush1.xpose.msra.mxu0 0.0
    %2306 = vmatprep.subr.mxu0 0.0
    %2307 = vmatpush1.xpose.msra.mxu0 0.0
    %2308 = vmatprep.subr.mxu0 0.0
    %2309 = vmatpush1.xpose.msra.mxu0 0.0
    %2310 = vmatprep.subr.mxu0 0.0
    %2311 = vmatpush1.xpose.msra.mxu0 0.0
    %2312 = vmatprep.subr.mxu0 0.0
    %2313 = vmatpush1.xpose.msra.mxu0 0.0
    %2314 = vmatprep.subr.mxu0 0.0
    %2315 = vmatpush1.xpose.msra.mxu0 0.0
    %2316 = vmatprep.subr.mxu0 0.0
    %2317 = vmatpush1.xpose.msra.mxu0 0.0
    %2318 = vmatprep.subr.mxu0 0.0
    %2319 = vmatpush1.xpose.msra.mxu0 0.0
    %2320 = vmatprep.mubr.f32.mxu0 0.0
    %2321 = vmatmul.mubr.f32.gmra.mrb[0].mxu0 %v2252
    %v2322 = vpop.f32.mrb[0].mxu0
    %v2323 = vadd.f32 0.0, %v2322
    %v2324 = vpop.f32.mrb[0].mxu0
    %2325 = vdwg.mxu0
    %2327 = vrot.lane.b32.xlu0 %v2245, 64
    %v2328 = vpop.permute.xlu0 %2327
    %v2329 = vsel %vm413, %v2245, 0
    %v2331 = vsel %vm413, %v2328, 0
    %2333 = vmatprep.subr.mxu0 0.0
    %2334 = vmatpush1.xpose.msra.mxu0 %v2331
    %2335 = vmatprep.subr.mxu0 0.0
    %2336 = vmatpush1.xpose.msra.mxu0 0.0
    %2337 = vmatprep.subr.mxu0 0.0
    %2338 = vmatpush1.xpose.msra.mxu0 0.0
    %2339 = vmatprep.subr.mxu0 0.0
    %2340 = vmatpush1.xpose.msra.mxu0 0.0
    %2341 = vmatprep.subr.mxu0 0.0
    %2342 = vmatpush1.xpose.msra.mxu0 0.0
    %2343 = vmatprep.subr.mxu0 0.0
    %2344 = vmatpush1.xpose.msra.mxu0 0.0
    %2345 = vmatprep.subr.mxu0 0.0
    %2346 = vmatpush1.xpose.msra.mxu0 0.0
    %2347 = vmatprep.subr.mxu0 0.0
    %2348 = vmatpush1.xpose.msra.mxu0 0.0
    %2349 = vmatprep.subr.mxu0 0.0
    %2350 = vmatpush1.xpose.msra.mxu0 0.0
    %2351 = vmatprep.subr.mxu0 0.0
    %2352 = vmatpush1.xpose.msra.mxu0 0.0
    %2353 = vmatprep.subr.mxu0 0.0
    %2354 = vmatpush1.xpose.msra.mxu0 0.0
    %2355 = vmatprep.subr.mxu0 0.0
    %2356 = vmatpush1.xpose.msra.mxu0 0.0
    %2357 = vmatprep.subr.mxu0 0.0
    %2358 = vmatpush1.xpose.msra.mxu0 0.0
    %2359 = vmatprep.subr.mxu0 0.0
    %2360 = vmatpush1.xpose.msra.mxu0 0.0
    %2361 = vmatprep.subr.mxu0 0.0
    %2362 = vmatpush1.xpose.msra.mxu0 0.0
    %2363 = vmatprep.subr.mxu0 0.0
    %2364 = vmatpush1.xpose.msra.mxu0 0.0
    %2365 = vmatprep.subr.mxu0 0.0
    %2366 = vmatpush1.xpose.msra.mxu0 0.0
    %2367 = vmatprep.subr.mxu0 0.0
    %2368 = vmatpush1.xpose.msra.mxu0 0.0
    %2369 = vmatprep.subr.mxu0 0.0
    %2370 = vmatpush1.xpose.msra.mxu0 0.0
    %2371 = vmatprep.subr.mxu0 0.0
    %2372 = vmatpush1.xpose.msra.mxu0 0.0
    %2373 = vmatprep.subr.mxu0 0.0
    %2374 = vmatpush1.xpose.msra.mxu0 0.0
    %2375 = vmatprep.subr.mxu0 0.0
    %2376 = vmatpush1.xpose.msra.mxu0 0.0
    %2377 = vmatprep.subr.mxu0 0.0
    %2378 = vmatpush1.xpose.msra.mxu0 0.0
    %2379 = vmatprep.subr.mxu0 0.0
    %2380 = vmatpush1.xpose.msra.mxu0 0.0
    %2381 = vmatprep.subr.mxu0 0.0
    %2382 = vmatpush1.xpose.msra.mxu0 0.0
    %2383 = vmatprep.subr.mxu0 0.0
    %2384 = vmatpush1.xpose.msra.mxu0 0.0
    %2385 = vmatprep.subr.mxu0 0.0
    %2386 = vmatpush1.xpose.msra.mxu0 0.0
    %2387 = vmatprep.subr.mxu0 0.0
    %2388 = vmatpush1.xpose.msra.mxu0 0.0
    %2389 = vmatprep.subr.mxu0 0.0
    %2390 = vmatpush1.xpose.msra.mxu0 0.0
    %2391 = vmatprep.subr.mxu0 0.0
    %2392 = vmatpush1.xpose.msra.mxu0 0.0
    %2393 = vmatprep.subr.mxu0 0.0
    %2394 = vmatpush1.xpose.msra.mxu0 0.0
    %2395 = vmatprep.subr.mxu0 0.0
    %2396 = vmatpush1.xpose.msra.mxu0 0.0
    %2397 = vmatprep.mubr.f32.mxu0 0.0
    %2398 = vmatmul.mubr.f32.gmra.mrb[0].mxu0 %v2329
    %v2399 = vpop.f32.mrb[0].mxu0
    %v2400 = vadd.f32 0.0, %v2399
    %v2401 = vpop.f32.mrb[0].mxu0
    %2402 = vdwg.mxu0
    %v2403 = vsel %vm565, %v2323, -inf
    %2404 = vmax.xlane.f32.xlu0 %v2403
    %v2405 = vpop.xlane.xlu0 %2404
    %v2406 = vsel %vm565, %v2400, -inf
    %2407 = vmax.xlane.f32.xlu0 %v2406
    %v2408 = vpop.xlane.xlu0 %2407
    %v2409 = vsub.f32 %v2323, %v2405
    %v2410 = vsub.f32 %v2400, %v2408
    %v2411 = vmul.f32 %v2409, 1.442695
    %v2412 = vpow.pop %v2411
    %v2413 = vmul.f32 %v2410, 1.442695
    %v2414 = vpow.pop %v2413
    %v2415 = vsel %vm565, %v2412, 0.0
    %2416 = vadd.xlane.f32.xlu0 %v2415
    %v2417 = vpop.xlane.xlu0 %2416
    %v2418 = vsel %vm565, %v2414, 0.0
    %2419 = vadd.xlane.f32.xlu0 %v2418
    %v2420 = vpop.xlane.xlu0 %2419
    %v2421 = vrcp.pop %v2417
    %v2422 = vrcp.pop %v2420
    %v2423 = vmul.f32 %v2412, %v2421
    %v2424 = vmul.f32 %v2414, %v2422
    %v2426 = vsel %vm565, %v2423, 0
    %2428 = vmatprep.subr.mxu0 0.0
    %2429 = vmatpush1.msra.mxu0 %v2241
    %2430 = vmatprep.subr.mxu0 0.0
    %2431 = vmatpush1.msra.mxu0 0.0
    %2432 = vmatprep.subr.mxu0 0.0
    %2433 = vmatpush1.msra.mxu0 0.0
    %2434 = vmatprep.subr.mxu0 0.0
    %2435 = vmatpush1.msra.mxu0 0.0
    %2436 = vmatprep.subr.mxu0 0.0
    %2437 = vmatpush1.msra.mxu0 0.0
    %2438 = vmatprep.subr.mxu0 0.0
    %2439 = vmatpush1.msra.mxu0 0.0
    %2440 = vmatprep.subr.mxu0 0.0
    %2441 = vmatpush1.msra.mxu0 0.0
    %2442 = vmatprep.subr.mxu0 0.0
    %2443 = vmatpush1.msra.mxu0 0.0
    %2444 = vmatprep.subr.mxu0 0.0
    %2445 = vmatpush1.msra.mxu0 0.0
    %2446 = vmatprep.subr.mxu0 0.0
    %2447 = vmatpush1.msra.mxu0 0.0
    %2448 = vmatprep.subr.mxu0 0.0
    %2449 = vmatpush1.msra.mxu0 0.0
    %2450 = vmatprep.subr.mxu0 0.0
    %2451 = vmatpush1.msra.mxu0 0.0
    %2452 = vmatprep.subr.mxu0 0.0
    %2453 = vmatpush1.msra.mxu0 0.0
    %2454 = vmatprep.subr.mxu0 0.0
    %2455 = vmatpush1.msra.mxu0 0.0
    %2456 = vmatprep.subr.mxu0 0.0
    %2457 = vmatpush1.msra.mxu0 0.0
    %2458 = vmatprep.subr.mxu0 0.0
    %2459 = vmatpush1.msra.mxu0 0.0
    %2460 = vmatprep.subr.mxu0 0.0
    %2461 = vmatpush1.msra.mxu0 0.0
    %2462 = vmatprep.subr.mxu0 0.0
    %2463 = vmatpush1.msra.mxu0 0.0
    %2464 = vmatprep.subr.mxu0 0.0
    %2465 = vmatpush1.msra.mxu0 0.0
    %2466 = vmatprep.subr.mxu0 0.0
    %2467 = vmatpush1.msra.mxu0 0.0
    %2468 = vmatprep.subr.mxu0 0.0
    %2469 = vmatpush1.msra.mxu0 0.0
    %2470 = vmatprep.subr.mxu0 0.0
    %2471 = vmatpush1.msra.mxu0 0.0
    %2472 = vmatprep.subr.mxu0 0.0
    %2473 = vmatpush1.msra.mxu0 0.0
    %2474 = vmatprep.subr.mxu0 0.0
    %2475 = vmatpush1.msra.mxu0 0.0
    %2476 = vmatprep.subr.mxu0 0.0
    %2477 = vmatpush1.msra.mxu0 0.0
    %2478 = vmatprep.subr.mxu0 0.0
    %2479 = vmatpush1.msra.mxu0 0.0
    %2480 = vmatprep.subr.mxu0 0.0
    %2481 = vmatpush1.msra.mxu0 0.0
    %2482 = vmatprep.subr.mxu0 0.0
    %2483 = vmatpush1.msra.mxu0 0.0
    %2484 = vmatprep.subr.mxu0 0.0
    %2485 = vmatpush1.msra.mxu0 0.0
    %2486 = vmatprep.subr.mxu0 0.0
    %2487 = vmatpush1.msra.mxu0 0.0
    %2488 = vmatprep.subr.mxu0 0.0
    %2489 = vmatpush1.msra.mxu0 0.0
    %2490 = vmatprep.subr.mxu0 0.0
    %2491 = vmatpush1.msra.mxu0 0.0
    %2492 = vmatprep.mubr.f32.mxu0 0.0
    %2493 = vmatmul.mubr.f32.gmra.mrb[0].mxu0 %v2426
    %v2494 = vpop.f32.mrb[0].mxu0
    %v2495 = vadd.f32 0.0, %v2494
    %v2496 = vpop.f32.mrb[0].mxu0
    %2497 = vdwg.mxu0
    %v2499 = vsel %vm565, %v2424, 0
    %2501 = vmatprep.subr.mxu0 0.0
    %2502 = vmatpush1.msra.mxu0 %v2247
    %2503 = vmatprep.subr.mxu0 0.0
    %2504 = vmatpush1.msra.mxu0 0.0
    %2505 = vmatprep.subr.mxu0 0.0
    %2506 = vmatpush1.msra.mxu0 0.0
    %2507 = vmatprep.subr.mxu0 0.0
    %2508 = vmatpush1.msra.mxu0 0.0
    %2509 = vmatprep.subr.mxu0 0.0
    %2510 = vmatpush1.msra.mxu0 0.0
    %2511 = vmatprep.subr.mxu0 0.0
    %2512 = vmatpush1.msra.mxu0 0.0
    %2513 = vmatprep.subr.mxu0 0.0
    %2514 = vmatpush1.msra.mxu0 0.0
    %2515 = vmatprep.subr.mxu0 0.0
    %2516 = vmatpush1.msra.mxu0 0.0
    %2517 = vmatprep.subr.mxu0 0.0
    %2518 = vmatpush1.msra.mxu0 0.0
    %2519 = vmatprep.subr.mxu0 0.0
    %2520 = vmatpush1.msra.mxu0 0.0
    %2521 = vmatprep.subr.mxu0 0.0
    %2522 = vmatpush1.msra.mxu0 0.0
    %2523 = vmatprep.subr.mxu0 0.0
    %2524 = vmatpush1.msra.mxu0 0.0
    %2525 = vmatprep.subr.mxu0 0.0
    %2526 = vmatpush1.msra.mxu0 0.0
    %2527 = vmatprep.subr.mxu0 0.0
    %2528 = vmatpush1.msra.mxu0 0.0
    %2529 = vmatprep.subr.mxu0 0.0
    %2530 = vmatpush1.msra.mxu0 0.0
    %2531 = vmatprep.subr.mxu0 0.0
    %2532 = vmatpush1.msra.mxu0 0.0
    %2533 = vmatprep.subr.mxu0 0.0
    %2534 = vmatpush1.msra.mxu0 0.0
    %2535 = vmatprep.subr.mxu0 0.0
    %2536 = vmatpush1.msra.mxu0 0.0
    %2537 = vmatprep.subr.mxu0 0.0
    %2538 = vmatpush1.msra.mxu0 0.0
    %2539 = vmatprep.subr.mxu0 0.0
    %2540 = vmatpush1.msra.mxu0 0.0
    %2541 = vmatprep.subr.mxu0 0.0
    %2542 = vmatpush1.msra.mxu0 0.0
    %2543 = vmatprep.subr.mxu0 0.0
    %2544 = vmatpush1.msra.mxu0 0.0
    %2545 = vmatprep.subr.mxu0 0.0
    %2546 = vmatpush1.msra.mxu0 0.0
    %2547 = vmatprep.subr.mxu0 0.0
    %2548 = vmatpush1.msra.mxu0 0.0
    %2549 = vmatprep.subr.mxu0 0.0
    %2550 = vmatpush1.msra.mxu0 0.0
    %2551 = vmatprep.subr.mxu0 0.0
    %2552 = vmatpush1.msra.mxu0 0.0
    %2553 = vmatprep.subr.mxu0 0.0
    %2554 = vmatpush1.msra.mxu0 0.0
    %2555 = vmatprep.subr.mxu0 0.0
    %2556 = vmatpush1.msra.mxu0 0.0
    %2557 = vmatprep.subr.mxu0 0.0
    %2558 = vmatpush1.msra.mxu0 0.0
    %2559 = vmatprep.subr.mxu0 0.0
    %2560 = vmatpush1.msra.mxu0 0.0
    %2561 = vmatprep.subr.mxu0 0.0
    %2562 = vmatpush1.msra.mxu0 0.0
    %2563 = vmatprep.subr.mxu0 0.0
    %2564 = vmatpush1.msra.mxu0 0.0
    %2565 = vmatprep.mubr.f32.mxu0 0.0
    %2566 = vmatmul.mubr.f32.gmra.mrb[0].mxu0 %v2499
    %v2567 = vpop.f32.mrb[0].mxu0
    %v2568 = vadd.f32 0.0, %v2567
    %v2569 = vpop.f32.mrb[0].mxu0
    %2570 = vdwg.mxu0
    %2571 = vrot.lane.b32.xlu0 %v2239, 112
    %v2572 = vpop.permute.xlu0 %2571
    %2573 = vrot.lane.b32.xlu0 %v2239, 48
    %v2574 = vpop.permute.xlu0 %2573
    %v2575 = vsel %vm413, %v2572, 0
    %v2577 = vsel %vm413, %v2574, 0
    %2579 = vmatprep.subr.mxu0 0.0
    %2580 = vmatpush1.xpose.msra.mxu0 %v2577
    %2581 = vmatprep.subr.mxu0 0.0
    %2582 = vmatpush1.xpose.msra.mxu0 0.0
    %2583 = vmatprep.subr.mxu0 0.0
    %2584 = vmatpush1.xpose.msra.mxu0 0.0
    %2585 = vmatprep.subr.mxu0 0.0
    %2586 = vmatpush1.xpose.msra.mxu0 0.0
    %2587 = vmatprep.subr.mxu0 0.0
    %2588 = vmatpush1.xpose.msra.mxu0 0.0
    %2589 = vmatprep.subr.mxu0 0.0
    %2590 = vmatpush1.xpose.msra.mxu0 0.0
    %2591 = vmatprep.subr.mxu0 0.0
    %2592 = vmatpush1.xpose.msra.mxu0 0.0
    %2593 = vmatprep.subr.mxu0 0.0
    %2594 = vmatpush1.xpose.msra.mxu0 0.0
    %2595 = vmatprep.subr.mxu0 0.0
    %2596 = vmatpush1.xpose.msra.mxu0 0.0
    %2597 = vmatprep.subr.mxu0 0.0
    %2598 = vmatpush1.xpose.msra.mxu0 0.0
    %2599 = vmatprep.subr.mxu0 0.0
    %2600 = vmatpush1.xpose.msra.mxu0 0.0
    %2601 = vmatprep.subr.mxu0 0.0
    %2602 = vmatpush1.xpose.msra.mxu0 0.0
    %2603 = vmatprep.subr.mxu0 0.0
    %2604 = vmatpush1.xpose.msra.mxu0 0.0
    %2605 = vmatprep.subr.mxu0 0.0
    %2606 = vmatpush1.xpose.msra.mxu0 0.0
    %2607 = vmatprep.subr.mxu0 0.0
    %2608 = vmatpush1.xpose.msra.mxu0 0.0
    %2609 = vmatprep.subr.mxu0 0.0
    %2610 = vmatpush1.xpose.msra.mxu0 0.0
    %2611 = vmatprep.subr.mxu0 0.0
    %2612 = vmatpush1.xpose.msra.mxu0 0.0
    %2613 = vmatprep.subr.mxu0 0.0
    %2614 = vmatpush1.xpose.msra.mxu0 0.0
    %2615 = vmatprep.subr.mxu0 0.0
    %2616 = vmatpush1.xpose.msra.mxu0 0.0
    %2617 = vmatprep.subr.mxu0 0.0
    %2618 = vmatpush1.xpose.msra.mxu0 0.0
    %2619 = vmatprep.subr.mxu0 0.0
    %2620 = vmatpush1.xpose.msra.mxu0 0.0
    %2621 = vmatprep.subr.mxu0 0.0
    %2622 = vmatpush1.xpose.msra.mxu0 0.0
    %2623 = vmatprep.subr.mxu0 0.0
    %2624 = vmatpush1.xpose.msra.mxu0 0.0
    %2625 = vmatprep.subr.mxu0 0.0
    %2626 = vmatpush1.xpose.msra.mxu0 0.0
    %2627 = vmatprep.subr.mxu0 0.0
    %2628 = vmatpush1.xpose.msra.mxu0 0.0
    %2629 = vmatprep.subr.mxu0 0.0
    %2630 = vmatpush1.xpose.msra.mxu0 0.0
    %2631 = vmatprep.subr.mxu0 0.0
    %2632 = vmatpush1.xpose.msra.mxu0 0.0
    %2633 = vmatprep.subr.mxu0 0.0
    %2634 = vmatpush1.xpose.msra.mxu0 0.0
    %2635 = vmatprep.subr.mxu0 0.0
    %2636 = vmatpush1.xpose.msra.mxu0 0.0
    %2637 = vmatprep.subr.mxu0 0.0
    %2638 = vmatpush1.xpose.msra.mxu0 0.0
    %2639 = vmatprep.subr.mxu0 0.0
    %2640 = vmatpush1.xpose.msra.mxu0 0.0
    %2641 = vmatprep.subr.mxu0 0.0
    %2642 = vmatpush1.xpose.msra.mxu0 0.0
    %2643 = vmatprep.mubr.f32.mxu0 0.0
    %2644 = vmatmul.mubr.f32.gmra.mrb[0].mxu0 %v2575
    %v2645 = vpop.f32.mrb[0].mxu0
    %v2646 = vadd.f32 0.0, %v2645
    %v2647 = vpop.f32.mrb[0].mxu0
    %2648 = vdwg.mxu0
    %2649 = vrot.lane.b32.xlu0 %v2245, 112
    %v2650 = vpop.permute.xlu0 %2649
    %2651 = vrot.lane.b32.xlu0 %v2245, 48
    %v2652 = vpop.permute.xlu0 %2651
    %v2653 = vsel %vm413, %v2650, 0
    %v2655 = vsel %vm413, %v2652, 0
    %2657 = vmatprep.subr.mxu0 0.0
    %2658 = vmatpush1.xpose.msra.mxu0 %v2655
    %2659 = vmatprep.subr.mxu0 0.0
    %2660 = vmatpush1.xpose.msra.mxu0 0.0
    %2661 = vmatprep.subr.mxu0 0.0
    %2662 = vmatpush1.xpose.msra.mxu0 0.0
    %2663 = vmatprep.subr.mxu0 0.0
    %2664 = vmatpush1.xpose.msra.mxu0 0.0
    %2665 = vmatprep.subr.mxu0 0.0
    %2666 = vmatpush1.xpose.msra.mxu0 0.0
    %2667 = vmatprep.subr.mxu0 0.0
    %2668 = vmatpush1.xpose.msra.mxu0 0.0
    %2669 = vmatprep.subr.mxu0 0.0
    %2670 = vmatpush1.xpose.msra.mxu0 0.0
    %2671 = vmatprep.subr.mxu0 0.0
    %2672 = vmatpush1.xpose.msra.mxu0 0.0
    %2673 = vmatprep.subr.mxu0 0.0
    %2674 = vmatpush1.xpose.msra.mxu0 0.0
    %2675 = vmatprep.subr.mxu0 0.0
    %2676 = vmatpush1.xpose.msra.mxu0 0.0
    %2677 = vmatprep.subr.mxu0 0.0
    %2678 = vmatpush1.xpose.msra.mxu0 0.0
    %2679 = vmatprep.subr.mxu0 0.0
    %2680 = vmatpush1.xpose.msra.mxu0 0.0
    %2681 = vmatprep.subr.mxu0 0.0
    %2682 = vmatpush1.xpose.msra.mxu0 0.0
    %2683 = vmatprep.subr.mxu0 0.0
    %2684 = vmatpush1.xpose.msra.mxu0 0.0
    %2685 = vmatprep.subr.mxu0 0.0
    %2686 = vmatpush1.xpose.msra.mxu0 0.0
    %2687 = vmatprep.subr.mxu0 0.0
    %2688 = vmatpush1.xpose.msra.mxu0 0.0
    %2689 = vmatprep.subr.mxu0 0.0
    %2690 = vmatpush1.xpose.msra.mxu0 0.0
    %2691 = vmatprep.subr.mxu0 0.0
    %2692 = vmatpush1.xpose.msra.mxu0 0.0
    %2693 = vmatprep.subr.mxu0 0.0
    %2694 = vmatpush1.xpose.msra.mxu0 0.0
    %2695 = vmatprep.subr.mxu0 0.0
    %2696 = vmatpush1.xpose.msra.mxu0 0.0
    %2697 = vmatprep.subr.mxu0 0.0
    %2698 = vmatpush1.xpose.msra.mxu0 0.0
    %2699 = vmatprep.subr.mxu0 0.0
    %2700 = vmatpush1.xpose.msra.mxu0 0.0
    %2701 = vmatprep.subr.mxu0 0.0
    %2702 = vmatpush1.xpose.msra.mxu0 0.0
    %2703 = vmatprep.subr.mxu0 0.0
    %2704 = vmatpush1.xpose.msra.mxu0 0.0
    %2705 = vmatprep.subr.mxu0 0.0
    %2706 = vmatpush1.xpose.msra.mxu0 0.0
    %2707 = vmatprep.subr.mxu0 0.0
    %2708 = vmatpush1.xpose.msra.mxu0 0.0
    %2709 = vmatprep.subr.mxu0 0.0
    %2710 = vmatpush1.xpose.msra.mxu0 0.0
    %2711 = vmatprep.subr.mxu0 0.0
    %2712 = vmatpush1.xpose.msra.mxu0 0.0
    %2713 = vmatprep.subr.mxu0 0.0
    %2714 = vmatpush1.xpose.msra.mxu0 0.0
    %2715 = vmatprep.subr.mxu0 0.0
    %2716 = vmatpush1.xpose.msra.mxu0 0.0
    %2717 = vmatprep.subr.mxu0 0.0
    %2718 = vmatpush1.xpose.msra.mxu0 0.0
    %2719 = vmatprep.subr.mxu0 0.0
    %2720 = vmatpush1.xpose.msra.mxu0 0.0
    %2721 = vmatprep.mubr.f32.mxu0 0.0
    %2722 = vmatmul.mubr.f32.gmra.mrb[0].mxu0 %v2653
    %v2723 = vpop.f32.mrb[0].mxu0
    %v2724 = vadd.f32 0.0, %v2723
    %v2725 = vpop.f32.mrb[0].mxu0
    %2726 = vdwg.mxu0
    %v2727 = vsel %vm565, %v2646, -inf
    %2728 = vmax.xlane.f32.xlu0 %v2727
    %v2729 = vpop.xlane.xlu0 %2728
    %v2730 = vsel %vm565, %v2724, -inf
    %2731 = vmax.xlane.f32.xlu0 %v2730
    %v2732 = vpop.xlane.xlu0 %2731
    %v2733 = vsub.f32 %v2646, %v2729
    %v2734 = vsub.f32 %v2724, %v2732
    %v2735 = vmul.f32 %v2733, 1.442695
    %v2736 = vpow.pop %v2735
    %v2737 = vmul.f32 %v2734, 1.442695
    %v2738 = vpow.pop %v2737
    %v2739 = vsel %vm565, %v2736, 0.0
    %2740 = vadd.xlane.f32.xlu0 %v2739
    %v2741 = vpop.xlane.xlu0 %2740
    %v2742 = vsel %vm565, %v2738, 0.0
    %2743 = vadd.xlane.f32.xlu0 %v2742
    %v2744 = vpop.xlane.xlu0 %2743
    %v2745 = vrcp.pop %v2741
    %v2746 = vrcp.pop %v2744
    %v2747 = vmul.f32 %v2736, %v2745
    %v2748 = vmul.f32 %v2738, %v2746
    %2750 = vrot.lane.b32.xlu0 %v2241, 112
    %v2751 = vpop.permute.xlu0 %2750
    %v2754 = vsel %vm565, %v2747, 0
    %2756 = vmatprep.subr.mxu0 0.0
    %2757 = vmatpush1.msra.mxu0 %v2751
    %2758 = vmatprep.subr.mxu0 0.0
    %2759 = vmatpush1.msra.mxu0 0.0
    %2760 = vmatprep.subr.mxu0 0.0
    %2761 = vmatpush1.msra.mxu0 0.0
    %2762 = vmatprep.subr.mxu0 0.0
    %2763 = vmatpush1.msra.mxu0 0.0
    %2764 = vmatprep.subr.mxu0 0.0
    %2765 = vmatpush1.msra.mxu0 0.0
    %2766 = vmatprep.subr.mxu0 0.0
    %2767 = vmatpush1.msra.mxu0 0.0
    %2768 = vmatprep.subr.mxu0 0.0
    %2769 = vmatpush1.msra.mxu0 0.0
    %2770 = vmatprep.subr.mxu0 0.0
    %2771 = vmatpush1.msra.mxu0 0.0
    %2772 = vmatprep.subr.mxu0 0.0
    %2773 = vmatpush1.msra.mxu0 0.0
    %2774 = vmatprep.subr.mxu0 0.0
    %2775 = vmatpush1.msra.mxu0 0.0
    %2776 = vmatprep.subr.mxu0 0.0
    %2777 = vmatpush1.msra.mxu0 0.0
    %2778 = vmatprep.subr.mxu0 0.0
    %2779 = vmatpush1.msra.mxu0 0.0
    %2780 = vmatprep.subr.mxu0 0.0
    %2781 = vmatpush1.msra.mxu0 0.0
    %2782 = vmatprep.subr.mxu0 0.0
    %2783 = vmatpush1.msra.mxu0 0.0
    %2784 = vmatprep.subr.mxu0 0.0
    %2785 = vmatpush1.msra.mxu0 0.0
    %2786 = vmatprep.subr.mxu0 0.0
    %2787 = vmatpush1.msra.mxu0 0.0
    %2788 = vmatprep.subr.mxu0 0.0
    %2789 = vmatpush1.msra.mxu0 0.0
    %2790 = vmatprep.subr.mxu0 0.0
    %2791 = vmatpush1.msra.mxu0 0.0
    %2792 = vmatprep.subr.mxu0 0.0
    %2793 = vmatpush1.msra.mxu0 0.0
    %2794 = vmatprep.subr.mxu0 0.0
    %2795 = vmatpush1.msra.mxu0 0.0
    %2796 = vmatprep.subr.mxu0 0.0
    %2797 = vmatpush1.msra.mxu0 0.0
    %2798 = vmatprep.subr.mxu0 0.0
    %2799 = vmatpush1.msra.mxu0 0.0
    %2800 = vmatprep.subr.mxu0 0.0
    %2801 = vmatpush1.msra.mxu0 0.0
    %2802 = vmatprep.subr.mxu0 0.0
    %2803 = vmatpush1.msra.mxu0 0.0
    %2804 = vmatprep.subr.mxu0 0.0
    %2805 = vmatpush1.msra.mxu0 0.0
    %2806 = vmatprep.subr.mxu0 0.0
    %2807 = vmatpush1.msra.mxu0 0.0
    %2808 = vmatprep.subr.mxu0 0.0
    %2809 = vmatpush1.msra.mxu0 0.0
    %2810 = vmatprep.subr.mxu0 0.0
    %2811 = vmatpush1.msra.mxu0 0.0
    %2812 = vmatprep.subr.mxu0 0.0
    %2813 = vmatpush1.msra.mxu0 0.0
    %2814 = vmatprep.subr.mxu0 0.0
    %2815 = vmatpush1.msra.mxu0 0.0
    %2816 = vmatprep.subr.mxu0 0.0
    %2817 = vmatpush1.msra.mxu0 0.0
    %2818 = vmatprep.subr.mxu0 0.0
    %2819 = vmatpush1.msra.mxu0 0.0
    %2820 = vmatprep.mubr.f32.mxu0 0.0
    %2821 = vmatmul.mubr.f32.gmra.mrb[0].mxu0 %v2754
    %v2822 = vpop.f32.mrb[0].mxu0
    %v2823 = vadd.f32 0.0, %v2822
    %v2824 = vpop.f32.mrb[0].mxu0
    %2825 = vdwg.mxu0
    %2827 = vrot.lane.b32.xlu0 %v2247, 112
    %v2828 = vpop.permute.xlu0 %2827
    %v2831 = vsel %vm565, %v2748, 0
    %2833 = vmatprep.subr.mxu0 0.0
    %2834 = vmatpush1.msra.mxu0 %v2828
    %2835 = vmatprep.subr.mxu0 0.0
    %2836 = vmatpush1.msra.mxu0 0.0
    %2837 = vmatprep.subr.mxu0 0.0
    %2838 = vmatpush1.msra.mxu0 0.0
    %2839 = vmatprep.subr.mxu0 0.0
    %2840 = vmatpush1.msra.mxu0 0.0
    %2841 = vmatprep.subr.mxu0 0.0
    %2842 = vmatpush1.msra.mxu0 0.0
    %2843 = vmatprep.subr.mxu0 0.0
    %2844 = vmatpush1.msra.mxu0 0.0
    %2845 = vmatprep.subr.mxu0 0.0
    %2846 = vmatpush1.msra.mxu0 0.0
    %2847 = vmatprep.subr.mxu0 0.0
    %2848 = vmatpush1.msra.mxu0 0.0
    %2849 = vmatprep.subr.mxu0 0.0
    %2850 = vmatpush1.msra.mxu0 0.0
    %2851 = vmatprep.subr.mxu0 0.0
    %2852 = vmatpush1.msra.mxu0 0.0
    %2853 = vmatprep.subr.mxu0 0.0
    %2854 = vmatpush1.msra.mxu0 0.0
    %2855 = vmatprep.subr.mxu0 0.0
    %2856 = vmatpush1.msra.mxu0 0.0
    %2857 = vmatprep.subr.mxu0 0.0
    %2858 = vmatpush1.msra.mxu0 0.0
    %2859 = vmatprep.subr.mxu0 0.0
    %2860 = vmatpush1.msra.mxu0 0.0
    %2861 = vmatprep.subr.mxu0 0.0
    %2862 = vmatpush1.msra.mxu0 0.0
    %2863 = vmatprep.subr.mxu0 0.0
    %2864 = vmatpush1.msra.mxu0 0.0
    %2865 = vmatprep.subr.mxu0 0.0
    %2866 = vmatpush1.msra.mxu0 0.0
    %2867 = vmatprep.subr.mxu0 0.0
    %2868 = vmatpush1.msra.mxu0 0.0
    %2869 = vmatprep.subr.mxu0 0.0
    %2870 = vmatpush1.msra.mxu0 0.0
    %2871 = vmatprep.subr.mxu0 0.0
    %2872 = vmatpush1.msra.mxu0 0.0
    %2873 = vmatprep.subr.mxu0 0.0
    %2874 = vmatpush1.msra.mxu0 0.0
    %2875 = vmatprep.subr.mxu0 0.0
    %2876 = vmatpush1.msra.mxu0 0.0
    %2877 = vmatprep.subr.mxu0 0.0
    %2878 = vmatpush1.msra.mxu0 0.0
    %2879 = vmatprep.subr.mxu0 0.0
    %2880 = vmatpush1.msra.mxu0 0.0
    %2881 = vmatprep.subr.mxu0 0.0
    %2882 = vmatpush1.msra.mxu0 0.0
    %2883 = vmatprep.subr.mxu0 0.0
    %2884 = vmatpush1.msra.mxu0 0.0
    %2885 = vmatprep.subr.mxu0 0.0
    %2886 = vmatpush1.msra.mxu0 0.0
    %2887 = vmatprep.subr.mxu0 0.0
    %2888 = vmatpush1.msra.mxu0 0.0
    %2889 = vmatprep.subr.mxu0 0.0
    %2890 = vmatpush1.msra.mxu0 0.0
    %2891 = vmatprep.subr.mxu0 0.0
    %2892 = vmatpush1.msra.mxu0 0.0
    %2893 = vmatprep.subr.mxu0 0.0
    %2894 = vmatpush1.msra.mxu0 0.0
    %2895 = vmatprep.subr.mxu0 0.0
    %2896 = vmatpush1.msra.mxu0 0.0
    %2897 = vmatprep.mubr.f32.mxu0 0.0
    %2898 = vmatmul.mubr.f32.gmra.mrb[0].mxu0 %v2831
    %v2899 = vpop.f32.mrb[0].mxu0
    %v2900 = vadd.f32 0.0, %v2899
    %v2901 = vpop.f32.mrb[0].mxu0
    %2902 = vdwg.mxu0
    %2903 = vrot.lane.b32.xlu0 %v2239, 96
    %v2904 = vpop.permute.xlu0 %2903
    %2905 = vrot.lane.b32.xlu0 %v2239, 32
    %v2906 = vpop.permute.xlu0 %2905
    %v2907 = vsel %vm413, %v2904, 0
    %v2909 = vsel %vm413, %v2906, 0
    %2911 = vmatprep.subr.mxu0 0.0
    %2912 = vmatpush1.xpose.msra.mxu0 %v2909
    %2913 = vmatprep.subr.mxu0 0.0
    %2914 = vmatpush1.xpose.msra.mxu0 0.0
    %2915 = vmatprep.subr.mxu0 0.0
    %2916 = vmatpush1.xpose.msra.mxu0 0.0
    %2917 = vmatprep.subr.mxu0 0.0
    %2918 = vmatpush1.xpose.msra.mxu0 0.0
    %2919 = vmatprep.subr.mxu0 0.0
    %2920 = vmatpush1.xpose.msra.mxu0 0.0
    %2921 = vmatprep.subr.mxu0 0.0
    %2922 = vmatpush1.xpose.msra.mxu0 0.0
    %2923 = vmatprep.subr.mxu0 0.0
    %2924 = vmatpush1.xpose.msra.mxu0 0.0
    %2925 = vmatprep.subr.mxu0 0.0
    %2926 = vmatpush1.xpose.msra.mxu0 0.0
    %2927 = vmatprep.subr.mxu0 0.0
    %2928 = vmatpush1.xpose.msra.mxu0 0.0
    %2929 = vmatprep.subr.mxu0 0.0
    %2930 = vmatpush1.xpose.msra.mxu0 0.0
    %2931 = vmatprep.subr.mxu0 0.0
    %2932 = vmatpush1.xpose.msra.mxu0 0.0
    %2933 = vmatprep.subr.mxu0 0.0
    %2934 = vmatpush1.xpose.msra.mxu0 0.0
    %2935 = vmatprep.subr.mxu0 0.0
    %2936 = vmatpush1.xpose.msra.mxu0 0.0
    %2937 = vmatprep.subr.mxu0 0.0
    %2938 = vmatpush1.xpose.msra.mxu0 0.0
    %2939 = vmatprep.subr.mxu0 0.0
    %2940 = vmatpush1.xpose.msra.mxu0 0.0
    %2941 = vmatprep.subr.mxu0 0.0
    %2942 = vmatpush1.xpose.msra.mxu0 0.0
    %2943 = vmatprep.subr.mxu0 0.0
    %2944 = vmatpush1.xpose.msra.mxu0 0.0
    %2945 = vmatprep.subr.mxu0 0.0
    %2946 = vmatpush1.xpose.msra.mxu0 0.0
    %2947 = vmatprep.subr.mxu0 0.0
    %2948 = vmatpush1.xpose.msra.mxu0 0.0
    %2949 = vmatprep.subr.mxu0 0.0
    %2950 = vmatpush1.xpose.msra.mxu0 0.0
    %2951 = vmatprep.subr.mxu0 0.0
    %2952 = vmatpush1.xpose.msra.mxu0 0.0
    %2953 = vmatprep.subr.mxu0 0.0
    %2954 = vmatpush1.xpose.msra.mxu0 0.0
    %2955 = vmatprep.subr.mxu0 0.0
    %2956 = vmatpush1.xpose.msra.mxu0 0.0
    %2957 = vmatprep.subr.mxu0 0.0
    %2958 = vmatpush1.xpose.msra.mxu0 0.0
    %2959 = vmatprep.subr.mxu0 0.0
    %2960 = vmatpush1.xpose.msra.mxu0 0.0
    %2961 = vmatprep.subr.mxu0 0.0
    %2962 = vmatpush1.xpose.msra.mxu0 0.0
    %2963 = vmatprep.subr.mxu0 0.0
    %2964 = vmatpush1.xpose.msra.mxu0 0.0
    %2965 = vmatprep.subr.mxu0 0.0
    %2966 = vmatpush1.xpose.msra.mxu0 0.0
    %2967 = vmatprep.subr.mxu0 0.0
    %2968 = vmatpush1.xpose.msra.mxu0 0.0
    %2969 = vmatprep.subr.mxu0 0.0
    %2970 = vmatpush1.xpose.msra.mxu0 0.0
    %2971 = vmatprep.subr.mxu0 0.0
    %2972 = vmatpush1.xpose.msra.mxu0 0.0
    %2973 = vmatprep.subr.mxu0 0.0
    %2974 = vmatpush1.xpose.msra.mxu0 0.0
    %2975 = vmatprep.mubr.f32.mxu0 0.0
    %2976 = vmatmul.mubr.f32.gmra.mrb[0].mxu0 %v2907
    %v2977 = vpop.f32.mrb[0].mxu0
    %v2978 = vadd.f32 0.0, %v2977
    %v2979 = vpop.f32.mrb[0].mxu0
    %2980 = vdwg.mxu0
    %2981 = vrot.lane.b32.xlu0 %v2245, 96
    %v2982 = vpop.permute.xlu0 %2981
    %2983 = vrot.lane.b32.xlu0 %v2245, 32
    %v2984 = vpop.permute.xlu0 %2983
    %v2985 = vsel %vm413, %v2982, 0
    %v2987 = vsel %vm413, %v2984, 0
    %2989 = vmatprep.subr.mxu0 0.0
    %2990 = vmatpush1.xpose.msra.mxu0 %v2987
    %2991 = vmatprep.subr.mxu0 0.0
    %2992 = vmatpush1.xpose.msra.mxu0 0.0
    %2993 = vmatprep.subr.mxu0 0.0
    %2994 = vmatpush1.xpose.msra.mxu0 0.0
    %2995 = vmatprep.subr.mxu0 0.0
    %2996 = vmatpush1.xpose.msra.mxu0 0.0
    %2997 = vmatprep.subr.mxu0 0.0
    %2998 = vmatpush1.xpose.msra.mxu0 0.0
    %2999 = vmatprep.subr.mxu0 0.0
    %3000 = vmatpush1.xpose.msra.mxu0 0.0
    %3001 = vmatprep.subr.mxu0 0.0
    %3002 = vmatpush1.xpose.msra.mxu0 0.0
    %3003 = vmatprep.subr.mxu0 0.0
    %3004 = vmatpush1.xpose.msra.mxu0 0.0
    %3005 = vmatprep.subr.mxu0 0.0
    %3006 = vmatpush1.xpose.msra.mxu0 0.0
    %3007 = vmatprep.subr.mxu0 0.0
    %3008 = vmatpush1.xpose.msra.mxu0 0.0
    %3009 = vmatprep.subr.mxu0 0.0
    %3010 = vmatpush1.xpose.msra.mxu0 0.0
    %3011 = vmatprep.subr.mxu0 0.0
    %3012 = vmatpush1.xpose.msra.mxu0 0.0
    %3013 = vmatprep.subr.mxu0 0.0
    %3014 = vmatpush1.xpose.msra.mxu0 0.0
    %3015 = vmatprep.subr.mxu0 0.0
    %3016 = vmatpush1.xpose.msra.mxu0 0.0
    %3017 = vmatprep.subr.mxu0 0.0
    %3018 = vmatpush1.xpose.msra.mxu0 0.0
    %3019 = vmatprep.subr.mxu0 0.0
    %3020 = vmatpush1.xpose.msra.mxu0 0.0
    %3021 = vmatprep.subr.mxu0 0.0
    %3022 = vmatpush1.xpose.msra.mxu0 0.0
    %3023 = vmatprep.subr.mxu0 0.0
    %3024 = vmatpush1.xpose.msra.mxu0 0.0
    %3025 = vmatprep.subr.mxu0 0.0
    %3026 = vmatpush1.xpose.msra.mxu0 0.0
    %3027 = vmatprep.subr.mxu0 0.0
    %3028 = vmatpush1.xpose.msra.mxu0 0.0
    %3029 = vmatprep.subr.mxu0 0.0
    %3030 = vmatpush1.xpose.msra.mxu0 0.0
    %3031 = vmatprep.subr.mxu0 0.0
    %3032 = vmatpush1.xpose.msra.mxu0 0.0
    %3033 = vmatprep.subr.mxu0 0.0
    %3034 = vmatpush1.xpose.msra.mxu0 0.0
    %3035 = vmatprep.subr.mxu0 0.0
    %3036 = vmatpush1.xpose.msra.mxu0 0.0
    %3037 = vmatprep.subr.mxu0 0.0
    %3038 = vmatpush1.xpose.msra.mxu0 0.0
    %3039 = vmatprep.subr.mxu0 0.0
    %3040 = vmatpush1.xpose.msra.mxu0 0.0
    %3041 = vmatprep.subr.mxu0 0.0
    %3042 = vmatpush1.xpose.msra.mxu0 0.0
    %3043 = vmatprep.subr.mxu0 0.0
    %3044 = vmatpush1.xpose.msra.mxu0 0.0
    %3045 = vmatprep.subr.mxu0 0.0
    %3046 = vmatpush1.xpose.msra.mxu0 0.0
    %3047 = vmatprep.subr.mxu0 0.0
    %3048 = vmatpush1.xpose.msra.mxu0 0.0
    %3049 = vmatprep.subr.mxu0 0.0
    %3050 = vmatpush1.xpose.msra.mxu0 0.0
    %3051 = vmatprep.subr.mxu0 0.0
    %3052 = vmatpush1.xpose.msra.mxu0 0.0
    %3053 = vmatprep.mubr.f32.mxu0 0.0
    %3054 = vmatmul.mubr.f32.gmra.mrb[0].mxu0 %v2985
    %v3055 = vpop.f32.mrb[0].mxu0
    %v3056 = vadd.f32 0.0, %v3055
    %v3057 = vpop.f32.mrb[0].mxu0
    %3058 = vdwg.mxu0
    %v3059 = vsel %vm565, %v2978, -inf
    %3060 = vmax.xlane.f32.xlu0 %v3059
    %v3061 = vpop.xlane.xlu0 %3060
    %v3062 = vsel %vm565, %v3056, -inf
    %3063 = vmax.xlane.f32.xlu0 %v3062
    %v3064 = vpop.xlane.xlu0 %3063
    %v3065 = vsub.f32 %v2978, %v3061
    %v3066 = vsub.f32 %v3056, %v3064
    %v3067 = vmul.f32 %v3065, 1.442695
    %v3068 = vpow.pop %v3067
    %v3069 = vmul.f32 %v3066, 1.442695
    %v3070 = vpow.pop %v3069
    %v3071 = vsel %vm565, %v3068, 0.0
    %3072 = vadd.xlane.f32.xlu0 %v3071
    %v3073 = vpop.xlane.xlu0 %3072
    %v3074 = vsel %vm565, %v3070, 0.0
    %3075 = vadd.xlane.f32.xlu0 %v3074
    %v3076 = vpop.xlane.xlu0 %3075
    %v3077 = vrcp.pop %v3073
    %v3078 = vrcp.pop %v3076
    %v3079 = vmul.f32 %v3068, %v3077
    %v3080 = vmul.f32 %v3070, %v3078
    %3081 = vrot.lane.b32.xlu0 %v2241, 96
    %v3082 = vpop.permute.xlu0 %3081
    %v3085 = vsel %vm565, %v3079, 0
    %3087 = vmatprep.subr.mxu0 0.0
    %3088 = vmatpush1.msra.mxu0 %v3082
    %3089 = vmatprep.subr.mxu0 0.0
    %3090 = vmatpush1.msra.mxu0 0.0
    %3091 = vmatprep.subr.mxu0 0.0
    %3092 = vmatpush1.msra.mxu0 0.0
    %3093 = vmatprep.subr.mxu0 0.0
    %3094 = vmatpush1.msra.mxu0 0.0
    %3095 = vmatprep.subr.mxu0 0.0
    %3096 = vmatpush1.msra.mxu0 0.0
    %3097 = vmatprep.subr.mxu0 0.0
    %3098 = vmatpush1.msra.mxu0 0.0
    %3099 = vmatprep.subr.mxu0 0.0
    %3100 = vmatpush1.msra.mxu0 0.0
    %3101 = vmatprep.subr.mxu0 0.0
    %3102 = vmatpush1.msra.mxu0 0.0
    %3103 = vmatprep.subr.mxu0 0.0
    %3104 = vmatpush1.msra.mxu0 0.0
    %3105 = vmatprep.subr.mxu0 0.0
    %3106 = vmatpush1.msra.mxu0 0.0
    %3107 = vmatprep.subr.mxu0 0.0
    %3108 = vmatpush1.msra.mxu0 0.0
    %3109 = vmatprep.subr.mxu0 0.0
    %3110 = vmatpush1.msra.mxu0 0.0
    %3111 = vmatprep.subr.mxu0 0.0
    %3112 = vmatpush1.msra.mxu0 0.0
    %3113 = vmatprep.subr.mxu0 0.0
    %3114 = vmatpush1.msra.mxu0 0.0
    %3115 = vmatprep.subr.mxu0 0.0
    %3116 = vmatpush1.msra.mxu0 0.0
    %3117 = vmatprep.subr.mxu0 0.0
    %3118 = vmatpush1.msra.mxu0 0.0
    %3119 = vmatprep.subr.mxu0 0.0
    %3120 = vmatpush1.msra.mxu0 0.0
    %3121 = vmatprep.subr.mxu0 0.0
    %3122 = vmatpush1.msra.mxu0 0.0
    %3123 = vmatprep.subr.mxu0 0.0
    %3124 = vmatpush1.msra.mxu0 0.0
    %3125 = vmatprep.subr.mxu0 0.0
    %3126 = vmatpush1.msra.mxu0 0.0
    %3127 = vmatprep.subr.mxu0 0.0
    %3128 = vmatpush1.msra.mxu0 0.0
    %3129 = vmatprep.subr.mxu0 0.0
    %3130 = vmatpush1.msra.mxu0 0.0
    %3131 = vmatprep.subr.mxu0 0.0
    %3132 = vmatpush1.msra.mxu0 0.0
    %3133 = vmatprep.subr.mxu0 0.0
    %3134 = vmatpush1.msra.mxu0 0.0
    %3135 = vmatprep.subr.mxu0 0.0
    %3136 = vmatpush1.msra.mxu0 0.0
    %3137 = vmatprep.subr.mxu0 0.0
    %3138 = vmatpush1.msra.mxu0 0.0
    %3139 = vmatprep.subr.mxu0 0.0
    %3140 = vmatpush1.msra.mxu0 0.0
    %3141 = vmatprep.subr.mxu0 0.0
    %3142 = vmatpush1.msra.mxu0 0.0
    %3143 = vmatprep.subr.mxu0 0.0
    %3144 = vmatpush1.msra.mxu0 0.0
    %3145 = vmatprep.subr.mxu0 0.0
    %3146 = vmatpush1.msra.mxu0 0.0
    %3147 = vmatprep.subr.mxu0 0.0
    %3148 = vmatpush1.msra.mxu0 0.0
    %3149 = vmatprep.subr.mxu0 0.0
    %3150 = vmatpush1.msra.mxu0 0.0
    %3151 = vmatprep.mubr.f32.mxu0 0.0
    %3152 = vmatmul.mubr.f32.gmra.mrb[0].mxu0 %v3085
    %v3153 = vpop.f32.mrb[0].mxu0
    %v3154 = vadd.f32 0.0, %v3153
    %v3155 = vpop.f32.mrb[0].mxu0
    %3156 = vdwg.mxu0
    %3157 = vrot.lane.b32.xlu0 %v2247, 96
    %v3158 = vpop.permute.xlu0 %3157
    %v3161 = vsel %vm565, %v3080, 0
    %3163 = vmatprep.subr.mxu0 0.0
    %3164 = vmatpush1.msra.mxu0 %v3158
    %3165 = vmatprep.subr.mxu0 0.0
    %3166 = vmatpush1.msra.mxu0 0.0
    %3167 = vmatprep.subr.mxu0 0.0
    %3168 = vmatpush1.msra.mxu0 0.0
    %3169 = vmatprep.subr.mxu0 0.0
    %3170 = vmatpush1.msra.mxu0 0.0
    %3171 = vmatprep.subr.mxu0 0.0
    %3172 = vmatpush1.msra.mxu0 0.0
    %3173 = vmatprep.subr.mxu0 0.0
    %3174 = vmatpush1.msra.mxu0 0.0
    %3175 = vmatprep.subr.mxu0 0.0
    %3176 = vmatpush1.msra.mxu0 0.0
    %3177 = vmatprep.subr.mxu0 0.0
    %3178 = vmatpush1.msra.mxu0 0.0
    %3179 = vmatprep.subr.mxu0 0.0
    %3180 = vmatpush1.msra.mxu0 0.0
    %3181 = vmatprep.subr.mxu0 0.0
    %3182 = vmatpush1.msra.mxu0 0.0
    %3183 = vmatprep.subr.mxu0 0.0
    %3184 = vmatpush1.msra.mxu0 0.0
    %3185 = vmatprep.subr.mxu0 0.0
    %3186 = vmatpush1.msra.mxu0 0.0
    %3187 = vmatprep.subr.mxu0 0.0
    %3188 = vmatpush1.msra.mxu0 0.0
    %3189 = vmatprep.subr.mxu0 0.0
    %3190 = vmatpush1.msra.mxu0 0.0
    %3191 = vmatprep.subr.mxu0 0.0
    %3192 = vmatpush1.msra.mxu0 0.0
    %3193 = vmatprep.subr.mxu0 0.0
    %3194 = vmatpush1.msra.mxu0 0.0
    %3195 = vmatprep.subr.mxu0 0.0
    %3196 = vmatpush1.msra.mxu0 0.0
    %3197 = vmatprep.subr.mxu0 0.0
    %3198 = vmatpush1.msra.mxu0 0.0
    %3199 = vmatprep.subr.mxu0 0.0
    %3200 = vmatpush1.msra.mxu0 0.0
    %3201 = vmatprep.subr.mxu0 0.0
    %3202 = vmatpush1.msra.mxu0 0.0
    %3203 = vmatprep.subr.mxu0 0.0
    %3204 = vmatpush1.msra.mxu0 0.0
    %3205 = vmatprep.subr.mxu0 0.0
    %3206 = vmatpush1.msra.mxu0 0.0
    %3207 = vmatprep.subr.mxu0 0.0
    %3208 = vmatpush1.msra.mxu0 0.0
    %3209 = vmatprep.subr.mxu0 0.0
    %3210 = vmatpush1.msra.mxu0 0.0
    %3211 = vmatprep.subr.mxu0 0.0
    %3212 = vmatpush1.msra.mxu0 0.0
    %3213 = vmatprep.subr.mxu0 0.0
    %3214 = vmatpush1.msra.mxu0 0.0
    %3215 = vmatprep.subr.mxu0 0.0
    %3216 = vmatpush1.msra.mxu0 0.0
    %3217 = vmatprep.subr.mxu0 0.0
    %3218 = vmatpush1.msra.mxu0 0.0
    %3219 = vmatprep.subr.mxu0 0.0
    %3220 = vmatpush1.msra.mxu0 0.0
    %3221 = vmatprep.subr.mxu0 0.0
    %3222 = vmatpush1.msra.mxu0 0.0
    %3223 = vmatprep.subr.mxu0 0.0
    %3224 = vmatpush1.msra.mxu0 0.0
    %3225 = vmatprep.subr.mxu0 0.0
    %3226 = vmatpush1.msra.mxu0 0.0
    %3227 = vmatprep.mubr.f32.mxu0 0.0
    %3228 = vmatmul.mubr.f32.gmra.mrb[0].mxu0 %v3161
    %v3229 = vpop.f32.mrb[0].mxu0
    %v3230 = vadd.f32 0.0, %v3229
    %v3231 = vpop.f32.mrb[0].mxu0
    %3232 = vdwg.mxu0
    %3233 = vrot.lane.b32.xlu0 %v2239, 80
    %v3234 = vpop.permute.xlu0 %3233
    %3235 = vrot.lane.b32.xlu0 %v2239, 16
    %v3236 = vpop.permute.xlu0 %3235
    %v3237 = vsel %vm413, %v3234, 0
    %v3239 = vsel %vm413, %v3236, 0
    %3241 = vmatprep.subr.mxu0 0.0
    %3242 = vmatpush1.xpose.msra.mxu0 %v3239
    %3243 = vmatprep.subr.mxu0 0.0
    %3244 = vmatpush1.xpose.msra.mxu0 0.0
    %3245 = vmatprep.subr.mxu0 0.0
    %3246 = vmatpush1.xpose.msra.mxu0 0.0
    %3247 = vmatprep.subr.mxu0 0.0
    %3248 = vmatpush1.xpose.msra.mxu0 0.0
    %3249 = vmatprep.subr.mxu0 0.0
    %3250 = vmatpush1.xpose.msra.mxu0 0.0
    %3251 = vmatprep.subr.mxu0 0.0
    %3252 = vmatpush1.xpose.msra.mxu0 0.0
    %3253 = vmatprep.subr.mxu0 0.0
    %3254 = vmatpush1.xpose.msra.mxu0 0.0
    %3255 = vmatprep.subr.mxu0 0.0
    %3256 = vmatpush1.xpose.msra.mxu0 0.0
    %3257 = vmatprep.subr.mxu0 0.0
    %3258 = vmatpush1.xpose.msra.mxu0 0.0
    %3259 = vmatprep.subr.mxu0 0.0
    %3260 = vmatpush1.xpose.msra.mxu0 0.0
    %3261 = vmatprep.subr.mxu0 0.0
    %3262 = vmatpush1.xpose.msra.mxu0 0.0
    %3263 = vmatprep.subr.mxu0 0.0
    %3264 = vmatpush1.xpose.msra.mxu0 0.0
    %3265 = vmatprep.subr.mxu0 0.0
    %3266 = vmatpush1.xpose.msra.mxu0 0.0
    %3267 = vmatprep.subr.mxu0 0.0
    %3268 = vmatpush1.xpose.msra.mxu0 0.0
    %3269 = vmatprep.subr.mxu0 0.0
    %3270 = vmatpush1.xpose.msra.mxu0 0.0
    %3271 = vmatprep.subr.mxu0 0.0
    %3272 = vmatpush1.xpose.msra.mxu0 0.0
    %3273 = vmatprep.subr.mxu0 0.0
    %3274 = vmatpush1.xpose.msra.mxu0 0.0
    %3275 = vmatprep.subr.mxu0 0.0
    %3276 = vmatpush1.xpose.msra.mxu0 0.0
    %3277 = vmatprep.subr.mxu0 0.0
    %3278 = vmatpush1.xpose.msra.mxu0 0.0
    %3279 = vmatprep.subr.mxu0 0.0
    %3280 = vmatpush1.xpose.msra.mxu0 0.0
    %3281 = vmatprep.subr.mxu0 0.0
    %3282 = vmatpush1.xpose.msra.mxu0 0.0
    %3283 = vmatprep.subr.mxu0 0.0
    %3284 = vmatpush1.xpose.msra.mxu0 0.0
    %3285 = vmatprep.subr.mxu0 0.0
    %3286 = vmatpush1.xpose.msra.mxu0 0.0
    %3287 = vmatprep.subr.mxu0 0.0
    %3288 = vmatpush1.xpose.msra.mxu0 0.0
    %3289 = vmatprep.subr.mxu0 0.0
    %3290 = vmatpush1.xpose.msra.mxu0 0.0
    %3291 = vmatprep.subr.mxu0 0.0
    %3292 = vmatpush1.xpose.msra.mxu0 0.0
    %3293 = vmatprep.subr.mxu0 0.0
    %3294 = vmatpush1.xpose.msra.mxu0 0.0
    %3295 = vmatprep.subr.mxu0 0.0
    %3296 = vmatpush1.xpose.msra.mxu0 0.0
    %3297 = vmatprep.subr.mxu0 0.0
    %3298 = vmatpush1.xpose.msra.mxu0 0.0
    %3299 = vmatprep.subr.mxu0 0.0
    %3300 = vmatpush1.xpose.msra.mxu0 0.0
    %3301 = vmatprep.subr.mxu0 0.0
    %3302 = vmatpush1.xpose.msra.mxu0 0.0
    %3303 = vmatprep.subr.mxu0 0.0
    %3304 = vmatpush1.xpose.msra.mxu0 0.0
    %3305 = vmatprep.mubr.f32.mxu0 0.0
    %3306 = vmatmul.mubr.f32.gmra.mrb[0].mxu0 %v3237
    %v3307 = vpop.f32.mrb[0].mxu0
    %v3308 = vadd.f32 0.0, %v3307
    %v3309 = vpop.f32.mrb[0].mxu0
    %3310 = vdwg.mxu0
    %3311 = vrot.lane.b32.xlu0 %v2245, 80
    %v3312 = vpop.permute.xlu0 %3311
    %3313 = vrot.lane.b32.xlu0 %v2245, 16
    %v3314 = vpop.permute.xlu0 %3313
    %v3315 = vsel %vm413, %v3312, 0
    %v3317 = vsel %vm413, %v3314, 0
    %3319 = vmatprep.subr.mxu0 0.0
    %3320 = vmatpush1.xpose.msra.mxu0 %v3317
    %3321 = vmatprep.subr.mxu0 0.0
    %3322 = vmatpush1.xpose.msra.mxu0 0.0
    %3323 = vmatprep.subr.mxu0 0.0
    %3324 = vmatpush1.xpose.msra.mxu0 0.0
    %3325 = vmatprep.subr.mxu0 0.0
    %3326 = vmatpush1.xpose.msra.mxu0 0.0
    %3327 = vmatprep.subr.mxu0 0.0
    %3328 = vmatpush1.xpose.msra.mxu0 0.0
    %3329 = vmatprep.subr.mxu0 0.0
    %3330 = vmatpush1.xpose.msra.mxu0 0.0
    %3331 = vmatprep.subr.mxu0 0.0
    %3332 = vmatpush1.xpose.msra.mxu0 0.0
    %3333 = vmatprep.subr.mxu0 0.0
    %3334 = vmatpush1.xpose.msra.mxu0 0.0
    %3335 = vmatprep.subr.mxu0 0.0
    %3336 = vmatpush1.xpose.msra.mxu0 0.0
    %3337 = vmatprep.subr.mxu0 0.0
    %3338 = vmatpush1.xpose.msra.mxu0 0.0
    %3339 = vmatprep.subr.mxu0 0.0
    %3340 = vmatpush1.xpose.msra.mxu0 0.0
    %3341 = vmatprep.subr.mxu0 0.0
    %3342 = vmatpush1.xpose.msra.mxu0 0.0
    %3343 = vmatprep.subr.mxu0 0.0
    %3344 = vmatpush1.xpose.msra.mxu0 0.0
    %3345 = vmatprep.subr.mxu0 0.0
    %3346 = vmatpush1.xpose.msra.mxu0 0.0
    %3347 = vmatprep.subr.mxu0 0.0
    %3348 = vmatpush1.xpose.msra.mxu0 0.0
    %3349 = vmatprep.subr.mxu0 0.0
    %3350 = vmatpush1.xpose.msra.mxu0 0.0
    %3351 = vmatprep.subr.mxu0 0.0
    %3352 = vmatpush1.xpose.msra.mxu0 0.0
    %3353 = vmatprep.subr.mxu0 0.0
    %3354 = vmatpush1.xpose.msra.mxu0 0.0
    %3355 = vmatprep.subr.mxu0 0.0
    %3356 = vmatpush1.xpose.msra.mxu0 0.0
    %3357 = vmatprep.subr.mxu0 0.0
    %3358 = vmatpush1.xpose.msra.mxu0 0.0
    %3359 = vmatprep.subr.mxu0 0.0
    %3360 = vmatpush1.xpose.msra.mxu0 0.0
    %3361 = vmatprep.subr.mxu0 0.0
    %3362 = vmatpush1.xpose.msra.mxu0 0.0
    %3363 = vmatprep.subr.mxu0 0.0
    %3364 = vmatpush1.xpose.msra.mxu0 0.0
    %3365 = vmatprep.subr.mxu0 0.0
    %3366 = vmatpush1.xpose.msra.mxu0 0.0
    %3367 = vmatprep.subr.mxu0 0.0
    %3368 = vmatpush1.xpose.msra.mxu0 0.0
    %3369 = vmatprep.subr.mxu0 0.0
    %3370 = vmatpush1.xpose.msra.mxu0 0.0
    %3371 = vmatprep.subr.mxu0 0.0
    %3372 = vmatpush1.xpose.msra.mxu0 0.0
    %3373 = vmatprep.subr.mxu0 0.0
    %3374 = vmatpush1.xpose.msra.mxu0 0.0
    %3375 = vmatprep.subr.mxu0 0.0
    %3376 = vmatpush1.xpose.msra.mxu0 0.0
    %3377 = vmatprep.subr.mxu0 0.0
    %3378 = vmatpush1.xpose.msra.mxu0 0.0
    %3379 = vmatprep.subr.mxu0 0.0
    %3380 = vmatpush1.xpose.msra.mxu0 0.0
    %3381 = vmatprep.subr.mxu0 0.0
    %3382 = vmatpush1.xpose.msra.mxu0 0.0
    %3383 = vmatprep.mubr.f32.mxu0 0.0
    %3384 = vmatmul.mubr.f32.gmra.mrb[0].mxu0 %v3315
    %v3385 = vpop.f32.mrb[0].mxu0
    %v3386 = vadd.f32 0.0, %v3385
    %v3387 = vpop.f32.mrb[0].mxu0
    %3388 = vdwg.mxu0
    %v3389 = vsel %vm565, %v3308, -inf
    %3390 = vmax.xlane.f32.xlu0 %v3389
    %v3391 = vpop.xlane.xlu0 %3390
    %v3392 = vsel %vm565, %v3386, -inf
    %3393 = vmax.xlane.f32.xlu0 %v3392
    %v3394 = vpop.xlane.xlu0 %3393
    %v3395 = vsub.f32 %v3308, %v3391
    %v3396 = vsub.f32 %v3386, %v3394
    %v3397 = vmul.f32 %v3395, 1.442695
    %v3398 = vpow.pop %v3397
    %v3399 = vmul.f32 %v3396, 1.442695
    %v3400 = vpow.pop %v3399
    %v3401 = vsel %vm565, %v3398, 0.0
    %3402 = vadd.xlane.f32.xlu0 %v3401
    %v3403 = vpop.xlane.xlu0 %3402
    %v3404 = vsel %vm565, %v3400, 0.0
    %3405 = vadd.xlane.f32.xlu0 %v3404
    %v3406 = vpop.xlane.xlu0 %3405
    %v3407 = vrcp.pop %v3403
    %v3408 = vrcp.pop %v3406
    %v3409 = vmul.f32 %v3398, %v3407
    %v3410 = vmul.f32 %v3400, %v3408
    %3411 = vrot.lane.b32.xlu0 %v2241, 80
    %v3412 = vpop.permute.xlu0 %3411
    %v3415 = vsel %vm565, %v3409, 0
    %3417 = vmatprep.subr.mxu0 0.0
    %3418 = vmatpush1.msra.mxu0 %v3412
    %3419 = vmatprep.subr.mxu0 0.0
    %3420 = vmatpush1.msra.mxu0 0.0
    %3421 = vmatprep.subr.mxu0 0.0
    %3422 = vmatpush1.msra.mxu0 0.0
    %3423 = vmatprep.subr.mxu0 0.0
    %3424 = vmatpush1.msra.mxu0 0.0
    %3425 = vmatprep.subr.mxu0 0.0
    %3426 = vmatpush1.msra.mxu0 0.0
    %3427 = vmatprep.subr.mxu0 0.0
    %3428 = vmatpush1.msra.mxu0 0.0
    %3429 = vmatprep.subr.mxu0 0.0
    %3430 = vmatpush1.msra.mxu0 0.0
    %3431 = vmatprep.subr.mxu0 0.0
    %3432 = vmatpush1.msra.mxu0 0.0
    %3433 = vmatprep.subr.mxu0 0.0
    %3434 = vmatpush1.msra.mxu0 0.0
    %3435 = vmatprep.subr.mxu0 0.0
    %3436 = vmatpush1.msra.mxu0 0.0
    %3437 = vmatprep.subr.mxu0 0.0
    %3438 = vmatpush1.msra.mxu0 0.0
    %3439 = vmatprep.subr.mxu0 0.0
    %3440 = vmatpush1.msra.mxu0 0.0
    %3441 = vmatprep.subr.mxu0 0.0
    %3442 = vmatpush1.msra.mxu0 0.0
    %3443 = vmatprep.subr.mxu0 0.0
    %3444 = vmatpush1.msra.mxu0 0.0
    %3445 = vmatprep.subr.mxu0 0.0
    %3446 = vmatpush1.msra.mxu0 0.0
    %3447 = vmatprep.subr.mxu0 0.0
    %3448 = vmatpush1.msra.mxu0 0.0
    %3449 = vmatprep.subr.mxu0 0.0
    %3450 = vmatpush1.msra.mxu0 0.0
    %3451 = vmatprep.subr.mxu0 0.0
    %3452 = vmatpush1.msra.mxu0 0.0
    %3453 = vmatprep.subr.mxu0 0.0
    %3454 = vmatpush1.msra.mxu0 0.0
    %3455 = vmatprep.subr.mxu0 0.0
    %3456 = vmatpush1.msra.mxu0 0.0
    %3457 = vmatprep.subr.mxu0 0.0
    %3458 = vmatpush1.msra.mxu0 0.0
    %3459 = vmatprep.subr.mxu0 0.0
    %3460 = vmatpush1.msra.mxu0 0.0
    %3461 = vmatprep.subr.mxu0 0.0
    %3462 = vmatpush1.msra.mxu0 0.0
    %3463 = vmatprep.subr.mxu0 0.0
    %3464 = vmatpush1.msra.mxu0 0.0
    %3465 = vmatprep.subr.mxu0 0.0
    %3466 = vmatpush1.msra.mxu0 0.0
    %3467 = vmatprep.subr.mxu0 0.0
    %3468 = vmatpush1.msra.mxu0 0.0
    %3469 = vmatprep.subr.mxu0 0.0
    %3470 = vmatpush1.msra.mxu0 0.0
    %3471 = vmatprep.subr.mxu0 0.0
    %3472 = vmatpush1.msra.mxu0 0.0
    %3473 = vmatprep.subr.mxu0 0.0
    %3474 = vmatpush1.msra.mxu0 0.0
    %3475 = vmatprep.subr.mxu0 0.0
    %3476 = vmatpush1.msra.mxu0 0.0
    %3477 = vmatprep.subr.mxu0 0.0
    %3478 = vmatpush1.msra.mxu0 0.0
    %3479 = vmatprep.subr.mxu0 0.0
    %3480 = vmatpush1.msra.mxu0 0.0
    %3481 = vmatprep.mubr.f32.mxu0 0.0
    %3482 = vmatmul.mubr.f32.gmra.mrb[0].mxu0 %v3415
    %v3483 = vpop.f32.mrb[0].mxu0
    %v3484 = vadd.f32 0.0, %v3483
    %v3485 = vpop.f32.mrb[0].mxu0
    %3486 = vdwg.mxu0
    %3487 = vrot.lane.b32.xlu0 %v2247, 80
    %v3488 = vpop.permute.xlu0 %3487
    %v3491 = vsel %vm565, %v3410, 0
    %3493 = vmatprep.subr.mxu0 0.0
    %3494 = vmatpush1.msra.mxu0 %v3488
    %3495 = vmatprep.subr.mxu0 0.0
    %3496 = vmatpush1.msra.mxu0 0.0
    %3497 = vmatprep.subr.mxu0 0.0
    %3498 = vmatpush1.msra.mxu0 0.0
    %3499 = vmatprep.subr.mxu0 0.0
    %3500 = vmatpush1.msra.mxu0 0.0
    %3501 = vmatprep.subr.mxu0 0.0
    %3502 = vmatpush1.msra.mxu0 0.0
    %3503 = vmatprep.subr.mxu0 0.0
    %3504 = vmatpush1.msra.mxu0 0.0
    %3505 = vmatprep.subr.mxu0 0.0
    %3506 = vmatpush1.msra.mxu0 0.0
    %3507 = vmatprep.subr.mxu0 0.0
    %3508 = vmatpush1.msra.mxu0 0.0
    %3509 = vmatprep.subr.mxu0 0.0
    %3510 = vmatpush1.msra.mxu0 0.0
    %3511 = vmatprep.subr.mxu0 0.0
    %3512 = vmatpush1.msra.mxu0 0.0
    %3513 = vmatprep.subr.mxu0 0.0
    %3514 = vmatpush1.msra.mxu0 0.0
    %3515 = vmatprep.subr.mxu0 0.0
    %3516 = vmatpush1.msra.mxu0 0.0
    %3517 = vmatprep.subr.mxu0 0.0
    %3518 = vmatpush1.msra.mxu0 0.0
    %3519 = vmatprep.subr.mxu0 0.0
    %3520 = vmatpush1.msra.mxu0 0.0
    %3521 = vmatprep.subr.mxu0 0.0
    %3522 = vmatpush1.msra.mxu0 0.0
    %3523 = vmatprep.subr.mxu0 0.0
    %3524 = vmatpush1.msra.mxu0 0.0
    %3525 = vmatprep.subr.mxu0 0.0
    %3526 = vmatpush1.msra.mxu0 0.0
    %3527 = vmatprep.subr.mxu0 0.0
    %3528 = vmatpush1.msra.mxu0 0.0
    %3529 = vmatprep.subr.mxu0 0.0
    %3530 = vmatpush1.msra.mxu0 0.0
    %3531 = vmatprep.subr.mxu0 0.0
    %3532 = vmatpush1.msra.mxu0 0.0
    %3533 = vmatprep.subr.mxu0 0.0
    %3534 = vmatpush1.msra.mxu0 0.0
    %3535 = vmatprep.subr.mxu0 0.0
    %3536 = vmatpush1.msra.mxu0 0.0
    %3537 = vmatprep.subr.mxu0 0.0
    %3538 = vmatpush1.msra.mxu0 0.0
    %3539 = vmatprep.subr.mxu0 0.0
    %3540 = vmatpush1.msra.mxu0 0.0
    %3541 = vmatprep.subr.mxu0 0.0
    %3542 = vmatpush1.msra.mxu0 0.0
    %3543 = vmatprep.subr.mxu0 0.0
    %3544 = vmatpush1.msra.mxu0 0.0
    %3545 = vmatprep.subr.mxu0 0.0
    %3546 = vmatpush1.msra.mxu0 0.0
    %3547 = vmatprep.subr.mxu0 0.0
    %3548 = vmatpush1.msra.mxu0 0.0
    %3549 = vmatprep.subr.mxu0 0.0
    %3550 = vmatpush1.msra.mxu0 0.0
    %3551 = vmatprep.subr.mxu0 0.0
    %3552 = vmatpush1.msra.mxu0 0.0
    %3553 = vmatprep.subr.mxu0 0.0
    %3554 = vmatpush1.msra.mxu0 0.0
    %3555 = vmatprep.subr.mxu0 0.0
    %3556 = vmatpush1.msra.mxu0 0.0
    %3557 = vmatprep.mubr.f32.mxu0 0.0
    %3558 = vmatmul.mubr.f32.gmra.mrb[0].mxu0 %v3491
    %v3559 = vpop.f32.mrb[0].mxu0
    %v3560 = vadd.f32 0.0, %v3559
    %v3561 = vpop.f32.mrb[0].mxu0
    %3562 = vdwg.mxu0
    %3565 = vrot.lane.b32.xlu0 %v2823, 16
    %v3566 = vpop.permute.xlu0 %3565
    %3567 = vrot.lane.b32.xlu0 %v2900, 16
    %v3568 = vpop.permute.xlu0 %3567
    %3573 = vrot.lane.b32.xlu0 %v3154, 32
    %v3574 = vpop.permute.xlu0 %3573
    %3575 = vrot.lane.b32.xlu0 %v3230, 32
    %v3576 = vpop.permute.xlu0 %3575
    %3581 = vrot.lane.b32.xlu0 %v3484, 48
    %v3582 = vpop.permute.xlu0 %3581
    %3583 = vrot.lane.b32.xlu0 %v3560, 48
    %v3584 = vpop.permute.xlu0 %3583
    %v3587 = vsel %vm413, %v2495, %v3566
    %v3588 = vsel %vm413, %v2568, %v3568
    %v3589 = vsel %vm130, %v3587, %v3574
    %v3590 = vsel %vm130, %v3588, %v3576
    %v3591 = vsel %vm1754, %v3589, %v3582
    %v3592 = vsel %vm1754, %v3590, %v3584
    %s3593 = scalar_lea.vmem %s7, 64
    %v3594 = vld [vmem:[%s3593] sm:$0xff]
    %v3595 = vld [vmem:[%s3593 + $0x8] sm:$0xff]
    %v3596 = vld [vmem:[%s3593 + $0x10] sm:$0xff]
    %v3597 = vld [vmem:[%s3593 + $0x18] sm:$0xff]
    %v3598 = vld [vmem:[%s3593 + $0x20] sm:$0xff]
    %v3599 = vld [vmem:[%s3593 + $0x28] sm:$0xff]
    %v3600 = vld [vmem:[%s3593 + $0x30] sm:$0xff]
    %v3601 = vld [vmem:[%s3593 + $0x38] sm:$0xff]
    %s3602 = scalar_lea.vmem %s8, 1
    %v3603 = vld [vmem:[%s3602] sm:$0x1]
    %v3605 = vlaneseq
    %v3606 = vshrl.u32 %v3605, 7
    %v3607 = vsub.s32 0, %v3606
    %v3608 = vrot.slane %v3603, %v3607
    %v3611 = vsel %vm326, %v3591, 0
    %v3614 = vsel %vm326, %v3592, 0
    %3616 = vmatprep.subr.mxu0 0.0
    %3617 = vmatpush1.msra.mxu0 %v3594
    %3618 = vmatprep.subr.mxu0 0.0
    %3619 = vmatpush1.msra.mxu0 %v3595
    %3620 = vmatprep.subr.mxu0 0.0
    %3621 = vmatpush1.msra.mxu0 %v3596
    %3622 = vmatprep.subr.mxu0 0.0
    %3623 = vmatpush1.msra.mxu0 %v3597
    %3624 = vmatprep.subr.mxu0 0.0
    %3625 = vmatpush1.msra.mxu0 %v3598
    %3626 = vmatprep.subr.mxu0 0.0
    %3627 = vmatpush1.msra.mxu0 %v3599
    %3628 = vmatprep.subr.mxu0 0.0
    %3629 = vmatpush1.msra.mxu0 %v3600
    %3630 = vmatprep.subr.mxu0 0.0
    %3631 = vmatpush1.msra.mxu0 %v3601
    %3632 = vmatprep.subr.mxu0 0.0
    %3633 = vmatpush1.msra.mxu0 0.0
    %3634 = vmatprep.subr.mxu0 0.0
    %3635 = vmatpush1.msra.mxu0 0.0
    %3636 = vmatprep.subr.mxu0 0.0
    %3637 = vmatpush1.msra.mxu0 0.0
    %3638 = vmatprep.subr.mxu0 0.0
    %3639 = vmatpush1.msra.mxu0 0.0
    %3640 = vmatprep.subr.mxu0 0.0
    %3641 = vmatpush1.msra.mxu0 0.0
    %3642 = vmatprep.subr.mxu0 0.0
    %3643 = vmatpush1.msra.mxu0 0.0
    %3644 = vmatprep.subr.mxu0 0.0
    %3645 = vmatpush1.msra.mxu0 0.0
    %3646 = vmatprep.subr.mxu0 0.0
    %3647 = vmatpush1.msra.mxu0 0.0
    %3648 = vmatprep.subr.mxu0 0.0
    %3649 = vmatpush1.msra.mxu0 0.0
    %3650 = vmatprep.subr.mxu0 0.0
    %3651 = vmatpush1.msra.mxu0 0.0
    %3652 = vmatprep.subr.mxu0 0.0
    %3653 = vmatpush1.msra.mxu0 0.0
    %3654 = vmatprep.subr.mxu0 0.0
    %3655 = vmatpush1.msra.mxu0 0.0
    %3656 = vmatprep.subr.mxu0 0.0
    %3657 = vmatpush1.msra.mxu0 0.0
    %3658 = vmatprep.subr.mxu0 0.0
    %3659 = vmatpush1.msra.mxu0 0.0
    %3660 = vmatprep.subr.mxu0 0.0
    %3661 = vmatpush1.msra.mxu0 0.0
    %3662 = vmatprep.subr.mxu0 0.0
    %3663 = vmatpush1.msra.mxu0 0.0
    %3664 = vmatprep.subr.mxu0 0.0
    %3665 = vmatpush1.msra.mxu0 0.0
    %3666 = vmatprep.subr.mxu0 0.0
    %3667 = vmatpush1.msra.mxu0 0.0
    %3668 = vmatprep.subr.mxu0 0.0
    %3669 = vmatpush1.msra.mxu0 0.0
    %3670 = vmatprep.subr.mxu0 0.0
    %3671 = vmatpush1.msra.mxu0 0.0
    %3672 = vmatprep.subr.mxu0 0.0
    %3673 = vmatpush1.msra.mxu0 0.0
    %3674 = vmatprep.subr.mxu0 0.0
    %3675 = vmatpush1.msra.mxu0 0.0
    %3676 = vmatprep.subr.mxu0 0.0
    %3677 = vmatpush1.msra.mxu0 0.0
    %3678 = vmatprep.subr.mxu0 0.0
    %3679 = vmatpush1.msra.mxu0 0.0
    %3680 = vmatprep.mubr.f32.mxu0 0.0
    %3681 = vmatmul.mubr.f32.gmra.mrb[0].mxu0 %v3611
    %v3682 = vpop.f32.mrb[0].mxu0
    %v3683 = vadd.f32 %v3608, %v3682
    %v3684 = vpop.f32.mrb[0].mxu0
    %3685 = vmatprep.mubr.f32.mxu0 0.0
    %3686 = vmatmul.mubr.f32.gmra.mrb[0].mxu0 %v3614
    %v3687 = vpop.f32.mrb[0].mxu0
    %v3688 = vadd.f32 %v3608, %v3687
    %v3689 = vpop.f32.mrb[0].mxu0
    %3690 = vdwg.mxu0
    %v3691 = vadd.f32 %v2134, %v3683
    %v3692 = vadd.f32 %v2135, %v3688
    %s3693 = scalar_lea.vmem %s9, 1
    %v3694 = vld [vmem:[%s3693] sm:$0x1]
    %s3695 = scalar_lea.vmem %s10, 1
    %v3696 = vld [vmem:[%s3695] sm:$0x1]
    %v3697 = vsel %vm326, %v3691, 0.0
    %3698 = vadd.xlane.f32.xlu0 %v3697
    %v3699 = vpop.xlane.xlu0 %3698
    %v3700 = vsel %vm326, %v3692, 0.0
    %3701 = vadd.xlane.f32.xlu0 %v3700
    %v3702 = vpop.xlane.xlu0 %3701
    %v3703 = vmul.f32 %v3699, %v1863
    %v3704 = vmul.f32 %v3702, %v1863
    %v3705 = vsub.f32 %v3691, %v3703
    %v3706 = vsub.f32 %v3692, %v3704
    %v3707 = vmul.f32 %v3705, %v3705
    %v3708 = vmul.f32 %v3706, %v3706
    %v3709 = vsel %vm326, %v3707, 0.0
    %3710 = vadd.xlane.f32.xlu0 %v3709
    %v3711 = vpop.xlane.xlu0 %3710
    %v3712 = vsel %vm326, %v3708, 0.0
    %3713 = vadd.xlane.f32.xlu0 %v3712
    %v3714 = vpop.xlane.xlu0 %3713
    %v3715 = vmul.f32 %v3711, %v1863
    %v3716 = vmul.f32 %v3714, %v1863
    %v3717 = vadd.f32 %v3715, 1e-05
    %v3718 = vadd.f32 %v3716, 1e-05
    %v3719 = vrsqrt.pop %v3717
    %v3720 = vrsqrt.pop %v3718
    %v3721 = vmul.f32 %v3705, %v3719
    %v3722 = vmul.f32 %v3706, %v3720
    %v3724 = vlaneseq
    %v3725 = vshrl.u32 %v3724, 7
    %v3726 = vsub.s32 0, %v3725
    %v3727 = vrot.slane %v3694, %v3726
    %v3729 = vmul.f32 %v3721, %v3727
    %v3730 = vmul.f32 %v3722, %v3727
    %v3732 = vlaneseq
    %v3733 = vshrl.u32 %v3732, 7
    %v3734 = vsub.s32 0, %v3733
    %v3735 = vrot.slane %v3696, %v3734
    %v3737 = vadd.f32 %v3729, %v3735
    %v3738 = vadd.f32 %v3730, %v3735
    %s3739 = scalar_lea.vmem %s11, 64
    %v3740 = vld [vmem:[%s3739] sm:$0xff]
    %v3741 = vld [vmem:[%s3739 + $0x8] sm:$0xff]
    %v3742 = vld [vmem:[%s3739 + $0x10] sm:$0xff]
    %v3743 = vld [vmem:[%s3739 + $0x18] sm:$0xff]
    %v3744 = vld [vmem:[%s3739 + $0x20] sm:$0xff]
    %v3745 = vld [vmem:[%s3739 + $0x28] sm:$0xff]
    %v3746 = vld [vmem:[%s3739 + $0x30] sm:$0xff]
    %v3747 = vld [vmem:[%s3739 + $0x38] sm:$0xff]
    %s3748 = scalar_lea.vmem %s12, 1
    %v3749 = vld [vmem:[%s3748] sm:$0x1]
    %v3751 = vlaneseq
    %v3752 = vshrl.u32 %v3751, 7
    %v3753 = vsub.s32 0, %v3752
    %v3754 = vrot.slane %v3749, %v3753
    %v3757 = vsel %vm326, %v3737, 0
    %v3760 = vsel %vm326, %v3738, 0
    %3762 = vmatprep.subr.mxu0 0.0
    %3763 = vmatpush1.msra.mxu0 %v3740
    %3764 = vmatprep.subr.mxu0 0.0
    %3765 = vmatpush1.msra.mxu0 %v3741
    %3766 = vmatprep.subr.mxu0 0.0
    %3767 = vmatpush1.msra.mxu0 %v3742
    %3768 = vmatprep.subr.mxu0 0.0
    %3769 = vmatpush1.msra.mxu0 %v3743
    %3770 = vmatprep.subr.mxu0 0.0
    %3771 = vmatpush1.msra.mxu0 %v3744
    %3772 = vmatprep.subr.mxu0 0.0
    %3773 = vmatpush1.msra.mxu0 %v3745
    %3774 = vmatprep.subr.mxu0 0.0
    %3775 = vmatpush1.msra.mxu0 %v3746
    %3776 = vmatprep.subr.mxu0 0.0
    %3777 = vmatpush1.msra.mxu0 %v3747
    %3778 = vmatprep.subr.mxu0 0.0
    %3779 = vmatpush1.msra.mxu0 0.0
    %3780 = vmatprep.subr.mxu0 0.0
    %3781 = vmatpush1.msra.mxu0 0.0
    %3782 = vmatprep.subr.mxu0 0.0
    %3783 = vmatpush1.msra.mxu0 0.0
    %3784 = vmatprep.subr.mxu0 0.0
    %3785 = vmatpush1.msra.mxu0 0.0
    %3786 = vmatprep.subr.mxu0 0.0
    %3787 = vmatpush1.msra.mxu0 0.0
    %3788 = vmatprep.subr.mxu0 0.0
    %3789 = vmatpush1.msra.mxu0 0.0
    %3790 = vmatprep.subr.mxu0 0.0
    %3791 = vmatpush1.msra.mxu0 0.0
    %3792 = vmatprep.subr.mxu0 0.0
    %3793 = vmatpush1.msra.mxu0 0.0
    %3794 = vmatprep.subr.mxu0 0.0
    %3795 = vmatpush1.msra.mxu0 0.0
    %3796 = vmatprep.subr.mxu0 0.0
    %3797 = vmatpush1.msra.mxu0 0.0
    %3798 = vmatprep.subr.mxu0 0.0
    %3799 = vmatpush1.msra.mxu0 0.0
    %3800 = vmatprep.subr.mxu0 0.0
    %3801 = vmatpush1.msra.mxu0 0.0
    %3802 = vmatprep.subr.mxu0 0.0
    %3803 = vmatpush1.msra.mxu0 0.0
    %3804 = vmatprep.subr.mxu0 0.0
    %3805 = vmatpush1.msra.mxu0 0.0
    %3806 = vmatprep.subr.mxu0 0.0
    %3807 = vmatpush1.msra.mxu0 0.0
    %3808 = vmatprep.subr.mxu0 0.0
    %3809 = vmatpush1.msra.mxu0 0.0
    %3810 = vmatprep.subr.mxu0 0.0
    %3811 = vmatpush1.msra.mxu0 0.0
    %3812 = vmatprep.subr.mxu0 0.0
    %3813 = vmatpush1.msra.mxu0 0.0
    %3814 = vmatprep.subr.mxu0 0.0
    %3815 = vmatpush1.msra.mxu0 0.0
    %3816 = vmatprep.subr.mxu0 0.0
    %3817 = vmatpush1.msra.mxu0 0.0
    %3818 = vmatprep.subr.mxu0 0.0
    %3819 = vmatpush1.msra.mxu0 0.0
    %3820 = vmatprep.subr.mxu0 0.0
    %3821 = vmatpush1.msra.mxu0 0.0
    %3822 = vmatprep.subr.mxu0 0.0
    %3823 = vmatpush1.msra.mxu0 0.0
    %3824 = vmatprep.subr.mxu0 0.0
    %3825 = vmatpush1.msra.mxu0 0.0
    %3826 = vmatprep.mubr.f32.mxu0 0.0
    %3827 = vmatmul.mubr.f32.gmra.mrb[0].mxu0 %v3757
    %v3828 = vpop.f32.mrb[0].mxu0
    %v3829 = vadd.f32 %v3754, %v3828
    %v3830 = vpop.f32.mrb[0].mxu0
    %3831 = vmatprep.mubr.f32.mxu0 0.0
    %3832 = vmatmul.mubr.f32.gmra.mrb[0].mxu0 %v3760
    %v3833 = vpop.f32.mrb[0].mxu0
    %v3834 = vadd.f32 %v3754, %v3833
    %v3835 = vpop.f32.mrb[0].mxu0
    %3836 = vdwg.mxu0
    %v3837 = vmax.f32 %v3829, 0.0
    %v3838 = vmax.f32 %v3834, 0.0
    %s3839 = scalar_lea.vmem %s13, 32
    %v3840 = vld [vmem:[%s3839] sm:$0xff]
    %v3841 = vld [vmem:[%s3839 + $0x8] sm:$0xff]
    %v3842 = vld [vmem:[%s3839 + $0x10] sm:$0xff]
    %v3843 = vld [vmem:[%s3839 + $0x18] sm:$0xff]
    %s3844 = scalar_lea.vmem %s14, 1
    %v3845 = vld [vmem:[%s3844] sm:$0x1]
    %v3847 = vlaneseq
    %v3848 = vshrl.u32 %v3847, 7
    %v3849 = vsub.s32 0, %v3848
    %v3850 = vrot.slane %v3845, %v3849
    %v3853 = vsel %vm130, %v3837, 0
    %v3856 = vsel %vm130, %v3838, 0
    %3858 = vmatprep.subr.mxu0 0.0
    %3859 = vmatpush1.msra.mxu0 %v3840
    %3860 = vmatprep.subr.mxu0 0.0
    %3861 = vmatpush1.msra.mxu0 %v3841
    %3862 = vmatprep.subr.mxu0 0.0
    %3863 = vmatpush1.msra.mxu0 %v3842
    %3864 = vmatprep.subr.mxu0 0.0
    %3865 = vmatpush1.msra.mxu0 %v3843
    %3866 = vmatprep.subr.mxu0 0.0
    %3867 = vmatpush1.msra.mxu0 0.0
    %3868 = vmatprep.subr.mxu0 0.0
    %3869 = vmatpush1.msra.mxu0 0.0
    %3870 = vmatprep.subr.mxu0 0.0
    %3871 = vmatpush1.msra.mxu0 0.0
    %3872 = vmatprep.subr.mxu0 0.0
    %3873 = vmatpush1.msra.mxu0 0.0
    %3874 = vmatprep.subr.mxu0 0.0
    %3875 = vmatpush1.msra.mxu0 0.0
    %3876 = vmatprep.subr.mxu0 0.0
    %3877 = vmatpush1.msra.mxu0 0.0
    %3878 = vmatprep.subr.mxu0 0.0
    %3879 = vmatpush1.msra.mxu0 0.0
    %3880 = vmatprep.subr.mxu0 0.0
    %3881 = vmatpush1.msra.mxu0 0.0
    %3882 = vmatprep.subr.mxu0 0.0
    %3883 = vmatpush1.msra.mxu0 0.0
    %3884 = vmatprep.subr.mxu0 0.0
    %3885 = vmatpush1.msra.mxu0 0.0
    %3886 = vmatprep.subr.mxu0 0.0
    %3887 = vmatpush1.msra.mxu0 0.0
    %3888 = vmatprep.subr.mxu0 0.0
    %3889 = vmatpush1.msra.mxu0 0.0
    %3890 = vmatprep.subr.mxu0 0.0
    %3891 = vmatpush1.msra.mxu0 0.0
    %3892 = vmatprep.subr.mxu0 0.0
    %3893 = vmatpush1.msra.mxu0 0.0
    %3894 = vmatprep.subr.mxu0 0.0
    %3895 = vmatpush1.msra.mxu0 0.0
    %3896 = vmatprep.subr.mxu0 0.0
    %3897 = vmatpush1.msra.mxu0 0.0
    %3898 = vmatprep.subr.mxu0 0.0
    %3899 = vmatpush1.msra.mxu0 0.0
    %3900 = vmatprep.subr.mxu0 0.0
    %3901 = vmatpush1.msra.mxu0 0.0
    %3902 = vmatprep.subr.mxu0 0.0
    %3903 = vmatpush1.msra.mxu0 0.0
    %3904 = vmatprep.subr.mxu0 0.0
    %3905 = vmatpush1.msra.mxu0 0.0
    %3906 = vmatprep.subr.mxu0 0.0
    %3907 = vmatpush1.msra.mxu0 0.0
    %3908 = vmatprep.subr.mxu0 0.0
    %3909 = vmatpush1.msra.mxu0 0.0
    %3910 = vmatprep.subr.mxu0 0.0
    %3911 = vmatpush1.msra.mxu0 0.0
    %3912 = vmatprep.subr.mxu0 0.0
    %3913 = vmatpush1.msra.mxu0 0.0
    %3914 = vmatprep.subr.mxu0 0.0
    %3915 = vmatpush1.msra.mxu0 0.0
    %3916 = vmatprep.subr.mxu0 0.0
    %3917 = vmatpush1.msra.mxu0 0.0
    %3918 = vmatprep.subr.mxu0 0.0
    %3919 = vmatpush1.msra.mxu0 0.0
    %3920 = vmatprep.subr.mxu0 0.0
    %3921 = vmatpush1.msra.mxu0 0.0
    %3922 = vmatprep.mubr.f32.mxu0 0.0
    %3923 = vmatmul.mubr.f32.gmra.mrb[0].mxu0 %v3853
    %v3924 = vpop.f32.mrb[0].mxu0
    %v3925 = vadd.f32 %v3850, %v3924
    %v3926 = vpop.f32.mrb[0].mxu0
    %3927 = vmatprep.mubr.f32.mxu0 0.0
    %3928 = vmatmul.mubr.f32.gmra.mrb[0].mxu0 %v3856
    %v3929 = vpop.f32.mrb[0].mxu0
    %v3930 = vadd.f32 %v3850, %v3929
    %v3931 = vpop.f32.mrb[0].mxu0
    %3932 = vdwg.mxu0
    %v3933 = vadd.f32 %v3737, %v3925
    %v3934 = vadd.f32 %v3738, %v3930
    %s3935 = scalar_lea.vmem %s15, 1
    %v3936 = vld [vmem:[%s3935] sm:$0x1]
    %s3937 = scalar_lea.vmem %s16, 1
    %v3938 = vld [vmem:[%s3937] sm:$0x1]
    %v3939 = vsel %vm326, %v3933, 0.0
    %3940 = vadd.xlane.f32.xlu0 %v3939
    %v3941 = vpop.xlane.xlu0 %3940
    %v3942 = vsel %vm326, %v3934, 0.0
    %3943 = vadd.xlane.f32.xlu0 %v3942
    %v3944 = vpop.xlane.xlu0 %3943
    %v3945 = vmul.f32 %v3941, %v1863
    %v3946 = vmul.f32 %v3944, %v1863
    %v3947 = vsub.f32 %v3933, %v3945
    %v3948 = vsub.f32 %v3934, %v3946
    %v3949 = vmul.f32 %v3947, %v3947
    %v3950 = vmul.f32 %v3948, %v3948
    %v3951 = vsel %vm326, %v3949, 0.0
    %3952 = vadd.xlane.f32.xlu0 %v3951
    %v3953 = vpop.xlane.xlu0 %3952
    %v3954 = vsel %vm326, %v3950, 0.0
    %3955 = vadd.xlane.f32.xlu0 %v3954
    %v3956 = vpop.xlane.xlu0 %3955
    %v3957 = vmul.f32 %v3953, %v1863
    %v3958 = vmul.f32 %v3956, %v1863
    %v3959 = vadd.f32 %v3957, 1e-05
    %v3960 = vadd.f32 %v3958, 1e-05
    %v3961 = vrsqrt.pop %v3959
    %v3962 = vrsqrt.pop %v3960
    %v3963 = vmul.f32 %v3947, %v3961
    %v3964 = vmul.f32 %v3948, %v3962
    %v3966 = vlaneseq
    %v3967 = vshrl.u32 %v3966, 7
    %v3968 = vsub.s32 0, %v3967
    %v3969 = vrot.slane %v3936, %v3968
    %v3971 = vmul.f32 %v3963, %v3969
    %v3972 = vmul.f32 %v3964, %v3969
    %v3974 = vlaneseq
    %v3975 = vshrl.u32 %v3974, 7
    %v3976 = vsub.s32 0, %v3975
    %v3977 = vrot.slane %v3938, %v3976
    %v3979 = vadd.f32 %v3971, %v3977
    %v3980 = vadd.f32 %v3972, %v3977
    %3981 = vst.msk [vmem:[#allocation11] sm:$0xff] %vm326, %v3979
    %3982 = vst.msk [vmem:[#allocation11 + $0x8] sm:$0xff] %vm326, %v3980
    // Predicated region
    $region90: #{tpu_custom_call.1} parent=1 // pred_check
      _
    $region91: #{tpu_custom_call.1} parent=1 // pred_check_branch
      %3984 = sbr.rel (0) target = $region93
    $region92: #{tpu_custom_call.1} parent=1 // pred_region
      %s3986 = ssub.s32 256, 256
      %3987 = vsyncadd [#allocation4], %s3986
      %s3988 = sshll.u32 [#allocation11], 4
      %s3989 = int_to_ptr.vmem [resolvable:$true] %s3988
      %3994 = dma.vmem_to_hbm [thread:$0]  %s3989, 256, %s17, [#allocation4], 128, 128, 8
    $region93: #{tpu_custom_call.1} parent=1 // pred_fallthru
      _
    // Predicated region
    $region94: #{tpu_custom_call.1} parent=1 // pred_check
      _
    $region95: #{tpu_custom_call.1} parent=1 // pred_check_branch
      %3996 = sbr.rel (0) target = $region97
    $region96: #{tpu_custom_call.1} parent=1 // pred_region
      %3997 = dma.done [#allocation4], 256
    $region97: #{tpu_custom_call.1} parent=1 // pred_fallthru
      _
    %3998 = vsyncpa [#allocation3], 1
    %3999 = vsyncpa [#allocation6], 1
    %4000 = vsyncpa [#allocation9], 1
    %4001 = vsyncpa [#allocation4], 1

</llo_original>
